<compile_context>
chip_gen: v7x
topology: tpu7x:2x2x1
jax: 0.10.0
libtpu: 0.0.40
codegen_flags: <defaults>
</compile_context>

<pallas_src>
import functools

import jax
import jax.numpy as jnp
from jax.experimental import pallas as pl
from jax.experimental.pallas import tpu as pltpu


def _round_up(v, m):
    return ((v + m - 1) // m) * m


def _sum_project_kernel(x_ref, w1_ref, b1_ref, w3_ref, b3_ref, row_ref, acc_ref,
                        *, n_nodes):
    """Pass 1. Grid axis 0 = packed node-row tiles (reduction, 'arbitrary').

    Streams lane-dense (tile, Fp) blocks of x, accumulates an (8, Fp) f32 partial
    column-sum with pure VPU adds, then at the last tile runs both HypergraphConv
    projections on the mean row (one XLU sublane-reduce total).
    """
    i = pl.program_id(0)

    @pl.when(i == 0)
    def _():
        acc_ref[...] = jnp.zeros_like(acc_ref)

    # Padded rows are zeros, so no ragged-tail masking is needed.
    x = x_ref[...].astype(jnp.float32)                               # (tile, Fp)
    fp = x.shape[-1]
    # Fold the tile's (8, Fp) sub-blocks into the accumulator: pure VPU vreg adds.
    acc_ref[...] += jnp.sum(x.reshape(-1, 8, fp), axis=0)

    @pl.when(i == pl.num_programs(0) - 1)
    def _():
        # All-ones incidence:  D^-1 H B^-1 H^T Y  == mean(Y, 0) broadcast to every node.
        colsum = jnp.sum(acc_ref[...], axis=0, keepdims=True)        # (1, Fp) one XLU reduce
        xbar = (colsum * (1.0 / n_nodes)).astype(jnp.bfloat16)       # mean over true N nodes
        # fc_encode1 (+relu).  W1 is pre-tiled to [Fp, A]: the packed-lane partial sums
        # collapse inside the MXU contraction.  Dropout(0.3) is identity at inference.
        h = jnp.dot(xbar, w1_ref[...], preferred_element_type=jnp.float32) + b1_ref[...]
        h = jnp.maximum(h, 0.0)                                       # (1, A)
        # fc_encode2 (+tanh, alpha == 1).  W3 pre-tiled to [A, Cw]: result is the code
        # row already repeated Cw/C times across lanes (lane-dense for pass 2).
        z = jnp.dot(h.astype(jnp.bfloat16), w3_ref[...],
                    preferred_element_type=jnp.float32) + b3_ref[...]  # (1, Cw)
        row_ref[...] = jnp.tanh(z)


def _broadcast_code_kernel(row_ref, out_ref):
    """Pass 2. Grid axis 0 = output-row tiles (parallel). Every row gets the code row."""
    out_ref[...] = pl.broadcast_to(row_ref[...], out_ref.shape)


def imgnet_hy_forward(x, w1, b1, w3, b3, *, block_rows_in=2048, block_rows_out=4096):
    """ImgNetHY.forward(x) -> hash codes [N, code_len]."""
    N, F = x.shape
    A = w1.shape[1]
    C = w3.shape[1]

    # ---- lane-dense input packing: [N, F] -> [rows_in, Fp] with Fp == 128 when possible.
    pack_in = (128 // F) if (F <= 128 and 128 % F == 0) else 1
    Fp = F * pack_in

    rows_in = pl.cdiv(N, pack_in)
    tile_in = min(block_rows_in, _round_up(rows_in, 8))               # multiple of 8
    rows_in_pad = _round_up(rows_in, tile_in)
    n_tiles_in = rows_in_pad // tile_in

    n_pad = rows_in_pad * pack_in
    if n_pad != N:
        x = jnp.pad(x, ((0, n_pad - N), (0, 0)))      # zero rows: sums unaffected,
    x_packed = x.reshape(rows_in_pad, Fp)             # so no in-kernel ragged masking.

    # ---- lane-dense output packing: [N, C] -> [rows_out, Cw] with Cw == 128 when possible.
    pack_out = (128 // C) if (C <= 128 and 128 % C == 0) else 1
    Cw = C * pack_out

    rows_out = pl.cdiv(N, pack_out)
    tile_out = min(block_rows_out, _round_up(rows_out, 8))            # multiple of 8
    rows_out_pad = _round_up(rows_out, tile_out)
    n_tiles_out = rows_out_pad // tile_out

    # ---- pre-tiled weights (wrapper-side, done once):
    #   W1: [F, A] -> [Fp, A]  (vertical tiling: packed-lane fold happens inside the dot)
    #   W3: [A, C] -> [A, Cw]  (horizontal tiling: code row produced lane-dense)
    # bf16 operands = native MXU rate and half the weight DMA/VMEM; biases stay f32.
    w1_t = jnp.tile(w1, (pack_in, 1)).astype(jnp.bfloat16)            # [Fp, A]
    b1_f = b1.reshape(1, A).astype(jnp.float32)
    w3_t = jnp.tile(w3, (1, pack_out)).astype(jnp.bfloat16)           # [A, Cw]
    b3_t = jnp.tile(b3.reshape(1, C), (1, pack_out)).astype(jnp.float32)

    # Pass 1: reduce x over the node axis and run both conv layers on the mean row.
    row = pl.pallas_call(
        functools.partial(_sum_project_kernel, n_nodes=N),
        out_shape=jax.ShapeDtypeStruct((1, Cw), jnp.float32),
        grid=(n_tiles_in,),
        in_specs=[
            pl.BlockSpec((tile_in, Fp), lambda i: (i, 0)),   # x: streamed, lane-dense
            pl.BlockSpec((Fp, A), lambda i: (0, 0)),         # W1 (tiled): resident
            pl.BlockSpec((1, A), lambda i: (0, 0)),          # b1: resident
            pl.BlockSpec((A, Cw), lambda i: (0, 0)),         # W3 (tiled): resident
            pl.BlockSpec((1, Cw), lambda i: (0, 0)),         # b3 (tiled): resident
        ],
        out_specs=pl.BlockSpec((1, Cw), lambda i: (0, 0)),
        scratch_shapes=[pltpu.VMEM((8, Fp), jnp.float32)],
        compiler_params=pltpu.CompilerParams(
            dimension_semantics=("arbitrary",)),              # reduction over nodes
    )(x_packed, w1_t, b1_f, w3_t, b3_t)

    # Pass 2: broadcast the lane-dense code row into the lane-dense output slab
    # (big unmasked 128-wide stores; no masked vst on the store-bound pass).
    out_packed = pl.pallas_call(
        _broadcast_code_kernel,
        out_shape=jax.ShapeDtypeStruct((rows_out_pad, Cw), jnp.float32),
        grid=(n_tiles_out,),
        in_specs=[pl.BlockSpec((1, Cw), lambda i: (0, 0))],
        out_specs=pl.BlockSpec((tile_out, Cw), lambda i: (i, 0)),
        compiler_params=pltpu.CompilerParams(
            dimension_semantics=("parallel",)),
    )(row)

    # Free row-major reshape back to [*, C]; slice off the padding rows.
    return out_packed.reshape(rows_out_pad * pack_out, C)[:N]


def _reference(x, H, w1, b1, w3, b3):
    # Pure-JAX PyG HypergraphConv (use_attention=False, heads=1, unit edge weights):
    #   D^-1 H W B^-1 H^T (X Theta) + bias   applied twice, with relu / tanh, f32 math.
    deg_n = jnp.sum(H, axis=1, keepdims=True)
    deg_e = jnp.sum(H, axis=0, keepdims=True)
    d_inv = jnp.where(deg_n > 0.0, 1.0 / deg_n, 0.0)
    b_inv = jnp.where(deg_e > 0.0, 1.0 / deg_e, 0.0)
    h = jax.nn.relu(d_inv * (H @ (b_inv.T * (H.T @ (x @ w1)))) + b1)
    return jnp.tanh(d_inv * (H @ (b_inv.T * (H.T @ (h @ w3)))) + b3)


if __name__ == "__main__":
    # Small shapes consistent with the module: N nodes (batch of image features),
    # img_feat_len input dim, code_len hash bits; hidden b = 4096 as hard-coded.
    N, IMG_FEAT_LEN, CODE_LEN = 8, 32, 16
    B_HIDDEN = 4096

    key = jax.random.PRNGKey(0)
    kx, k1, k2, k3, k4 = jax.random.split(key, 5)

    x = jax.random.normal(kx, (N, IMG_FEAT_LEN), jnp.float32)

    def glorot(k, fan_in, fan_out):
        lim = (6.0 / (fan_in + fan_out)) ** 0.5
        return jax.random.uniform(k, (fan_in, fan_out), jnp.float32, -lim, lim)

    # HypergraphConv params: lin weight (glorot, no bias) + output bias.
    w1 = glorot(k1, IMG_FEAT_LEN, B_HIDDEN)
    b1 = 0.01 * jax.random.normal(k2, (1, B_HIDDEN), jnp.float32)
    w3 = glorot(k3, B_HIDDEN, CODE_LEN)
    b3 = 0.01 * jax.random.normal(k4, (1, CODE_LEN), jnp.float32)

    code = imgnet_hy_forward(x, w1, b1, w3, b3)
    code = jax.block_until_ready(code)
    assert code.shape == (N, CODE_LEN)

    # Validate against the general PyG formula with the effective (all-ones) incidence.
    H = jnp.ones((N, N), jnp.float32)
    ref = _reference(x, H, w1, b1, w3, b3)
    assert jnp.allclose(code, ref, atol=1e-2, rtol=1e-2), "kernel mismatch vs reference"

    print("KERNEL_OK")
</pallas_src>

<mosaic_0001>
module attributes {stable_mosaic.version = 11 : i64} {
  func.func @_sum_project_kernel(%arg0: i32, %arg1: memref<8x128xf32, #tpu.memory_space<vmem>>, %arg2: memref<128x4096xbf16, #tpu.memory_space<vmem>>, %arg3: memref<1x4096xf32, #tpu.memory_space<vmem>>, %arg4: memref<4096x128xbf16, #tpu.memory_space<vmem>>, %arg5: memref<1x128xf32, #tpu.memory_space<vmem>>, %arg6: memref<1x128xf32, #tpu.memory_space<vmem>>, %arg7: memref<8x128xf32, #tpu.memory_space<vmem>>) attributes {dimension_semantics = [#tpu.dimension_semantics<arbitrary>], iteration_bounds = array<i64: 1>, scalar_prefetch = 0 : i64, scratch_operands = 1 : i64, tpu.core_type = #tpu.core_type<tc>, window_params = [{transform_indices = @transform_0, window_bounds = array<i64: 8, 128>}, {pipeline_mode = #tpu.pipeline_mode<synchronous>, transform_indices = @transform_1, window_bounds = array<i64: 128, 4096>}, {pipeline_mode = #tpu.pipeline_mode<synchronous>, transform_indices = @transform_2, window_bounds = array<i64: 1, 4096>}, {pipeline_mode = #tpu.pipeline_mode<synchronous>, transform_indices = @transform_3, window_bounds = array<i64: 4096, 128>}, {pipeline_mode = #tpu.pipeline_mode<synchronous>, transform_indices = @transform_4, window_bounds = array<i64: 1, 128>}, {pipeline_mode = #tpu.pipeline_mode<synchronous>, transform_indices = @transform_5, window_bounds = array<i64: 1, 128>}]} {
    %c0_i32 = arith.constant 0 : i32
    %0 = arith.cmpi eq, %arg0, %c0_i32 : i32
    %1 = arith.extui %0 : i1 to i32
    %c0_i32_0 = arith.constant 0 : i32
    %2 = arith.cmpi ne, %1, %c0_i32_0 : i32
    scf.if %2 {
      %cst_8 = arith.constant 0.000000e+00 : f32
      %12 = vector.broadcast %cst_8 : f32 to vector<8x128xf32>
      %c0_9 = arith.constant 0 : index
      %c0_10 = arith.constant 0 : index
      %13 = vector.load %arg7[%c0_9, %c0_10] : memref<8x128xf32, #tpu.memory_space<vmem>>, vector<8x128xf32>
      tpu.vector_store %arg7[%c0_9, %c0_10], %12 {strides = array<i32>} : memref<8x128xf32, #tpu.memory_space<vmem>>, vector<8x128xf32>,
    } else {
    }
    %c0 = arith.constant 0 : index
    %c0_1 = arith.constant 0 : index
    %3 = vector.load %arg1[%c0, %c0_1] : memref<8x128xf32, #tpu.memory_space<vmem>>, vector<8x128xf32>
    %c0_2 = arith.constant 0 : index
    %c0_3 = arith.constant 0 : index
    %4 = vector.load %arg7[%c0_2, %c0_3] : memref<8x128xf32, #tpu.memory_space<vmem>>, vector<8x128xf32>
    %5 = vector.shape_cast %3 : vector<8x128xf32> to vector<1x8x128xf32>
    %cst = arith.constant dense<0.000000e+00> : vector<8x128xf32>
    %6 = vector.multi_reduction <add>, %5, %cst [0] : vector<1x8x128xf32> to vector<8x128xf32>
    %7 = arith.addf %4, %6 : vector<8x128xf32>
    %c0_4 = arith.constant 0 : index
    %c0_5 = arith.constant 0 : index
    %8 = vector.load %arg7[%c0_4, %c0_5] : memref<8x128xf32, #tpu.memory_space<vmem>>, vector<8x128xf32>
    tpu.vector_store %arg7[%c0_4, %c0_5], %7 {strides = array<i32>} : memref<8x128xf32, #tpu.memory_space<vmem>>, vector<8x128xf32>,
    %c0_i32_6 = arith.constant 0 : i32
    %9 = arith.cmpi eq, %arg0, %c0_i32_6 : i32
    %10 = arith.extui %9 : i1 to i32
    %c0_i32_7 = arith.constant 0 : i32
    %11 = arith.cmpi ne, %10, %c0_i32_7 : i32
    scf.if %11 {
      %c0_8 = arith.constant 0 : index
      %c0_9 = arith.constant 0 : index
      %12 = vector.load %arg7[%c0_8, %c0_9] : memref<8x128xf32, #tpu.memory_space<vmem>>, vector<8x128xf32>
      %cst_10 = arith.constant dense<0.000000e+00> : vector<128xf32>
      %13 = vector.multi_reduction <add>, %12, %cst_10 [0] : vector<8x128xf32> to vector<128xf32>
      %14 = vector.shape_cast %13 : vector<128xf32> to vector<1x128xf32>
      %cst_11 = arith.constant 1.250000e-01 : f32
      %15 = vector.broadcast %cst_11 : f32 to vector<1x128xf32>
      %16 = arith.mulf %14, %15 : vector<1x128xf32>
      %17 = arith.truncf %16 : vector<1x128xf32> to vector<1x128xbf16>
      %c0_12 = arith.constant 0 : index
      %c0_13 = arith.constant 0 : index
      %18 = vector.load %arg2[%c0_12, %c0_13] : memref<128x4096xbf16, #tpu.memory_space<vmem>>, vector<128x4096xbf16>
      %cst_14 = arith.constant dense<0.000000e+00> : vector<1x4096xf32>
      %19 = tpu.matmul %17, %18, %cst_14 {dimension_numbers = #tpu.dot_dimension_numbers<[1], [0], [0], [1], [0, 0, 1, 1], [], []>} : vector<1x128xbf16>, vector<128x4096xbf16>, vector<1x4096xf32> -> vector<1x4096xf32>
      %c0_15 = arith.constant 0 : index
      %c0_16 = arith.constant 0 : index
      %20 = vector.load %arg3[%c0_15, %c0_16] : memref<1x4096xf32, #tpu.memory_space<vmem>>, vector<1x4096xf32>
      %21 = arith.addf %19, %20 : vector<1x4096xf32>
      %cst_17 = arith.constant 0.000000e+00 : f32
      %22 = vector.broadcast %cst_17 : f32 to vector<1x4096xf32>
      %23 = arith.maximumf %21, %22 : vector<1x4096xf32>
      %24 = arith.truncf %23 : vector<1x4096xf32> to vector<1x4096xbf16>
      %c0_18 = arith.constant 0 : index
      %c0_19 = arith.constant 0 : index
      %25 = vector.load %arg4[%c0_18, %c0_19] : memref<4096x128xbf16, #tpu.memory_space<vmem>>, vector<4096x128xbf16>
      %cst_20 = arith.constant dense<0.000000e+00> : vector<1x128xf32>
      %26 = tpu.matmul %24, %25, %cst_20 {dimension_numbers = #tpu.dot_dimension_numbers<[1], [0], [0], [1], [0, 0, 1, 1], [], []>} : vector<1x4096xbf16>, vector<4096x128xbf16>, vector<1x128xf32> -> vector<1x128xf32>
      %c0_21 = arith.constant 0 : index
      %c0_22 = arith.constant 0 : index
      %27 = vector.load %arg5[%c0_21, %c0_22] : memref<1x128xf32, #tpu.memory_space<vmem>>, vector<1x128xf32>
      %28 = arith.addf %26, %27 : vector<1x128xf32>
      %29 = math.tanh %28 : vector<1x128xf32>
      %c0_23 = arith.constant 0 : index
      %c0_24 = arith.constant 0 : index
      %30 = vector.load %arg6[%c0_23, %c0_24] : memref<1x128xf32, #tpu.memory_space<vmem>>, vector<1x128xf32>
      tpu.vector_store %arg6[%c0_23, %c0_24], %29 {strides = array<i32>} : memref<1x128xf32, #tpu.memory_space<vmem>>, vector<1x128xf32>,
    } else {
    }
    return
  }
  func.func @transform_0(%arg0: i32) -> (i32, i32) {
    %c0_i32 = arith.constant 0 : i32
    %c0_i32_0 = arith.constant 0 : i32
    return %arg0, %c0_i32 : i32, i32
  }
  func.func @transform_1(%arg0: i32) -> (i32, i32) {
    %c0_i32 = arith.constant 0 : i32
    %c0_i32_0 = arith.constant 0 : i32
    %c0_i32_1 = arith.constant 0 : i32
    return %c0_i32, %c0_i32_0 : i32, i32
  }
  func.func @transform_2(%arg0: i32) -> (i32, i32) {
    %c0_i32 = arith.constant 0 : i32
    %c0_i32_0 = arith.constant 0 : i32
    %c0_i32_1 = arith.constant 0 : i32
    return %c0_i32, %c0_i32_0 : i32, i32
  }
  func.func @transform_3(%arg0: i32) -> (i32, i32) {
    %c0_i32 = arith.constant 0 : i32
    %c0_i32_0 = arith.constant 0 : i32
    %c0_i32_1 = arith.constant 0 : i32
    return %c0_i32, %c0_i32_0 : i32, i32
  }
  func.func @transform_4(%arg0: i32) -> (i32, i32) {
    %c0_i32 = arith.constant 0 : i32
    %c0_i32_0 = arith.constant 0 : i32
    %c0_i32_1 = arith.constant 0 : i32
    return %c0_i32, %c0_i32_0 : i32, i32
  }
  func.func @transform_5(%arg0: i32) -> (i32, i32) {
    %c0_i32 = arith.constant 0 : i32
    %c0_i32_0 = arith.constant 0 : i32
    %c0_i32_1 = arith.constant 0 : i32
    return %c0_i32, %c0_i32_0 : i32, i32
  }
}

</mosaic_0001>

<llo_original>
// kernel: tpu_custom_call.1
$region0: #{tpu_custom_call.1}
  #allocation0 [shape = 'u32[]', space=smem, size = 0x4, offset = 0x4, fixed_abs, tag = 'smem constant byte address 0x4 - core index']
  #allocation1 [shape = 'u32[144,128]{1,0:T(1,128)}', space=vmem, size = 0x12000, scoped, tag = 'internal scratch']
  #allocation2 [shape = 'f32[8,128]{1,0:T(8,128)}', space=vmem, size = 0x1000, scoped, tag = 'scratch operand']
  %s0 = inlined_call_operand.hbm [shape: f32[8,128], index: 0, kind: input, shape index: {}]
  %s1 = inlined_call_operand.hbm [shape: bf16[128,4096], index: 1, kind: input, shape index: {}]
  %s2 = inlined_call_operand.hbm [shape: f32[1,4096], index: 2, kind: input, shape index: {}]
  %s3 = inlined_call_operand.hbm [shape: bf16[4096,128], index: 3, kind: input, shape index: {}]
  %s4 = inlined_call_operand.vmem [shape: f32[1,128], index: 4, kind: input, shape index: {}]
  %s5 = inlined_call_operand.hbm [shape: f32[1,128], index: 5, kind: output, shape index: {}]
  %s6 = sld [smem:[#allocation0]]
  $region54: #{tpu_custom_call.1} parent=0
    _
  %s8 = ssub.s32 1, %s6
  %s9 = scalar_select 0, %s8, %s6
  $region1: #{tpu_custom_call.1} parent=0
    #allocation3 [shape = 'u8[4096]{0}', space=vmem, size = 0x1000, scoped, tag = 'input window, operand 0, single buffered']
    #allocation4 [shape = 's32[1]{0}', space=sflag, size = 0x4, scoped, tag = 'scoped memory for tpu_custom_call.1']
    #allocation5 [shape = 's32[1]{0}', space=sflag, size = 0x4, scoped, tag = 'scoped memory for tpu_custom_call.1']
    #allocation6 [shape = 'u8[1048576]{0}', space=vmem, size = 0x100000, scoped, tag = 'input window, operand 1, single buffered']
    #allocation7 [shape = 's32[1]{0}', space=sflag, size = 0x4, scoped, tag = 'scoped memory for tpu_custom_call.1']
    #allocation8 [shape = 'u8[16384]{0}', space=vmem, size = 0x4000, scoped, tag = 'input window, operand 2, single buffered']
    #allocation9 [shape = 'u8[1048576]{0}', space=vmem, size = 0x100000, scoped, tag = 'input window, operand 3, single buffered']
    #allocation10 [shape = 's32[1]{0}', space=sflag, size = 0x4, scoped, tag = 'scoped memory for tpu_custom_call.1']
    #allocation11 [shape = 'u8[512]{0}', space=vmem, size = 0x400, scoped, tag = 'output window, operand 0, single buffered']
    %10 = vsyncpa [#allocation4], 0
    %11 = vsyncpa [#allocation7], 0
    %12 = vsyncpa [#allocation10], 0
    %13 = vsyncpa [#allocation5], 0
    // Predicated region
    $region2: #{tpu_custom_call.1} parent=1 // pred_check
      _
    $region3: #{tpu_custom_call.1} parent=1 // pred_check_branch
      %15 = sbr.rel (0) target = $region5
    $region4: #{tpu_custom_call.1} parent=1 // pred_region
      %s17 = ssub.s32 128, 128
      %18 = vsyncadd [#allocation4], %s17
      %s20 = sshll.u32 [#allocation3], 4
      %s21 = int_to_ptr.vmem [resolvable:$true] %s20
      %23 = dma.hbm_to_vmem [thread:$0]  %s0, 128, %s21, [#allocation4]
    $region5: #{tpu_custom_call.1} parent=1 // pred_fallthru
      _
    // Predicated region
    $region6: #{tpu_custom_call.1} parent=1 // pred_check
      _
    $region7: #{tpu_custom_call.1} parent=1 // pred_check_branch
      %25 = sbr.rel (0) target = $region9
    $region8: #{tpu_custom_call.1} parent=1 // pred_region
      %s27 = ssub.s32 32768, 32768
      %28 = vsyncadd [#allocation7], %s27
      %s29 = sshll.u32 [#allocation6], 4
      %s30 = int_to_ptr.vmem [resolvable:$true] %s29
      %35 = dma.hbm_to_vmem [thread:$0]  %s1, 32768, %s30, [#allocation7], 2048, 2048, 128
    $region9: #{tpu_custom_call.1} parent=1 // pred_fallthru
      _
    // Predicated region
    $region10: #{tpu_custom_call.1} parent=1 // pred_check
      _
    $region11: #{tpu_custom_call.1} parent=1 // pred_check_branch
      %37 = sbr.rel (0) target = $region13
    $region12: #{tpu_custom_call.1} parent=1 // pred_region
      %s39 = ssub.s32 512, 512
      %40 = vsyncadd [#allocation7], %s39
      %s42 = sshll.u32 [#allocation8], 4
      %s43 = int_to_ptr.vmem [resolvable:$true] %s42
      %45 = dma.hbm_to_vmem [thread:$0]  %s2, 512, %s43, [#allocation7]
    $region13: #{tpu_custom_call.1} parent=1 // pred_fallthru
      _
    // Predicated region
    $region14: #{tpu_custom_call.1} parent=1 // pred_check
      _
    $region15: #{tpu_custom_call.1} parent=1 // pred_check_branch
      %47 = sbr.rel (0) target = $region17
    $region16: #{tpu_custom_call.1} parent=1 // pred_region
      %s49 = ssub.s32 32768, 32768
      %50 = vsyncadd [#allocation10], %s49
      %s51 = sshll.u32 [#allocation9], 4
      %s52 = int_to_ptr.vmem [resolvable:$true] %s51
      %57 = dma.hbm_to_vmem [thread:$0]  %s3, 32768, %s52, [#allocation10], 64, 64, 4
    $region17: #{tpu_custom_call.1} parent=1 // pred_fallthru
      _
    // Predicated region
    $region18: #{tpu_custom_call.1} parent=1 // pred_check
      _
    $region19: #{tpu_custom_call.1} parent=1 // pred_check_branch
      %59 = sbr.rel (0) target = $region21
    $region20: #{tpu_custom_call.1} parent=1 // pred_region
      _
    $region21: #{tpu_custom_call.1} parent=1 // pred_fallthru
      _
    // Predicated region
    $region22: #{tpu_custom_call.1} parent=1 // pred_check
      _
    $region23: #{tpu_custom_call.1} parent=1 // pred_check_branch
      %61 = sbr.rel (0) target = $region25
    $region24: #{tpu_custom_call.1} parent=1 // pred_region
      %62 = dma.done [#allocation4], 128
    $region25: #{tpu_custom_call.1} parent=1 // pred_fallthru
      _
    // Predicated region
    $region26: #{tpu_custom_call.1} parent=1 // pred_check
      _
    $region27: #{tpu_custom_call.1} parent=1 // pred_check_branch
      %64 = sbr.rel (0) target = $region29
    $region28: #{tpu_custom_call.1} parent=1 // pred_region
      %65 = dma.done [#allocation7], 32768
    $region29: #{tpu_custom_call.1} parent=1 // pred_fallthru
      _
    // Predicated region
    $region30: #{tpu_custom_call.1} parent=1 // pred_check
      _
    $region31: #{tpu_custom_call.1} parent=1 // pred_check_branch
      %67 = sbr.rel (0) target = $region33
    $region32: #{tpu_custom_call.1} parent=1 // pred_region
      %68 = dma.done [#allocation7], 512
    $region33: #{tpu_custom_call.1} parent=1 // pred_fallthru
      _
    // Predicated region
    $region34: #{tpu_custom_call.1} parent=1 // pred_check
      _
    $region35: #{tpu_custom_call.1} parent=1 // pred_check_branch
      %70 = sbr.rel (0) target = $region37
    $region36: #{tpu_custom_call.1} parent=1 // pred_region
      %71 = dma.done [#allocation10], 32768
    $region37: #{tpu_custom_call.1} parent=1 // pred_fallthru
      _
    %p73 = scmp.eq.s32.totalorder 0, 0
    // Predicated region
    $region38: #{tpu_custom_call.1} parent=1 // pred_check
      %p74 = pneg %p73
    $region39: #{tpu_custom_call.1} parent=1 // pred_check_branch
      %76 = sbr.rel (%p74) target = $region41
    $region40: #{tpu_custom_call.1} parent=1 // pred_region
      %77 = vst [vmem:[#allocation2] sm:$0xff] 0.0
    $region41: #{tpu_custom_call.1} parent=1 // pred_fallthru
      _
    %v78 = vld [vmem:[#allocation3] sm:$0xff]
    %v79 = vld [vmem:[#allocation2] sm:$0xff]
    %v80 = vadd.f32 %v78, 0.0
    %v81 = vadd.f32 %v79, %v80
    %82 = vst [vmem:[#allocation2] sm:$0xff] %v81
    // Predicated region
    $region42: #{tpu_custom_call.1} parent=1 // pred_check
      %p83 = pneg %p73
    $region43: #{tpu_custom_call.1} parent=1 // pred_check_branch
      %85 = sbr.rel (%p83) target = $region45
    $region44: #{tpu_custom_call.1} parent=1 // pred_region
      %v86 = vld [vmem:[#allocation2] sm:$0xff]
      %v87 = vrot.slane %v86, 4
      %v88 = vadd.f32 %v86, %v87
      %v89 = vrot.slane %v88, 2
      %v90 = vadd.f32 %v88, %v89
      %v91 = vrot.slane %v90, 1
      %v92 = vadd.f32 %v90, %v91
      %v93 = vmul.f32 %v92, 0.125
      %v94 = vpack.c.bf16 %v93, %v93
      %v95 = vld [vmem:[#allocation6] sm:$0xff]
      %v96 = vld [vmem:[#allocation6 + $0x8] sm:$0xff]
      %v97 = vld [vmem:[#allocation6 + $0x10] sm:$0xff]
      %v98 = vld [vmem:[#allocation6 + $0x18] sm:$0xff]
      %v99 = vld [vmem:[#allocation6 + $0x20] sm:$0xff]
      %v100 = vld [vmem:[#allocation6 + $0x28] sm:$0xff]
      %v101 = vld [vmem:[#allocation6 + $0x30] sm:$0xff]
      %v102 = vld [vmem:[#allocation6 + $0x38] sm:$0xff]
      %v103 = vld [vmem:[#allocation6 + $0x40] sm:$0xff]
      %v104 = vld [vmem:[#allocation6 + $0x48] sm:$0xff]
      %v105 = vld [vmem:[#allocation6 + $0x50] sm:$0xff]
      %v106 = vld [vmem:[#allocation6 + $0x58] sm:$0xff]
      %v107 = vld [vmem:[#allocation6 + $0x60] sm:$0xff]
      %v108 = vld [vmem:[#allocation6 + $0x68] sm:$0xff]
      %v109 = vld [vmem:[#allocation6 + $0x70] sm:$0xff]
      %v110 = vld [vmem:[#allocation6 + $0x78] sm:$0xff]
      %v111 = vld [vmem:[#allocation6 + $0x80] sm:$0xff]
      %v112 = vld [vmem:[#allocation6 + $0x88] sm:$0xff]
      %v113 = vld [vmem:[#allocation6 + $0x90] sm:$0xff]
      %v114 = vld [vmem:[#allocation6 + $0x98] sm:$0xff]
      %v115 = vld [vmem:[#allocation6 + $0xa0] sm:$0xff]
      %v116 = vld [vmem:[#allocation6 + $0xa8] sm:$0xff]
      %v117 = vld [vmem:[#allocation6 + $0xb0] sm:$0xff]
      %v118 = vld [vmem:[#allocation6 + $0xb8] sm:$0xff]
      %v119 = vld [vmem:[#allocation6 + $0xc0] sm:$0xff]
      %v120 = vld [vmem:[#allocation6 + $0xc8] sm:$0xff]
      %v121 = vld [vmem:[#allocation6 + $0xd0] sm:$0xff]
      %v122 = vld [vmem:[#allocation6 + $0xd8] sm:$0xff]
      %v123 = vld [vmem:[#allocation6 + $0xe0] sm:$0xff]
      %v124 = vld [vmem:[#allocation6 + $0xe8] sm:$0xff]
      %v125 = vld [vmem:[#allocation6 + $0xf0] sm:$0xff]
      %v126 = vld [vmem:[#allocation6 + $0xf8] sm:$0xff]
      %v127 = vld [vmem:[#allocation6 + $0x100] sm:$0xff]
      %v128 = vld [vmem:[#allocation6 + $0x108] sm:$0xff]
      %v129 = vld [vmem:[#allocation6 + $0x110] sm:$0xff]
      %v130 = vld [vmem:[#allocation6 + $0x118] sm:$0xff]
      %v131 = vld [vmem:[#allocation6 + $0x120] sm:$0xff]
      %v132 = vld [vmem:[#allocation6 + $0x128] sm:$0xff]
      %v133 = vld [vmem:[#allocation6 + $0x130] sm:$0xff]
      %v134 = vld [vmem:[#allocation6 + $0x138] sm:$0xff]
      %v135 = vld [vmem:[#allocation6 + $0x140] sm:$0xff]
      %v136 = vld [vmem:[#allocation6 + $0x148] sm:$0xff]
      %v137 = vld [vmem:[#allocation6 + $0x150] sm:$0xff]
      %v138 = vld [vmem:[#allocation6 + $0x158] sm:$0xff]
      %v139 = vld [vmem:[#allocation6 + $0x160] sm:$0xff]
      %v140 = vld [vmem:[#allocation6 + $0x168] sm:$0xff]
      %v141 = vld [vmem:[#allocation6 + $0x170] sm:$0xff]
      %v142 = vld [vmem:[#allocation6 + $0x178] sm:$0xff]
      %v143 = vld [vmem:[#allocation6 + $0x180] sm:$0xff]
      %v144 = vld [vmem:[#allocation6 + $0x188] sm:$0xff]
      %v145 = vld [vmem:[#allocation6 + $0x190] sm:$0xff]
      %v146 = vld [vmem:[#allocation6 + $0x198] sm:$0xff]
      %v147 = vld [vmem:[#allocation6 + $0x1a0] sm:$0xff]
      %v148 = vld [vmem:[#allocation6 + $0x1a8] sm:$0xff]
      %v149 = vld [vmem:[#allocation6 + $0x1b0] sm:$0xff]
      %v150 = vld [vmem:[#allocation6 + $0x1b8] sm:$0xff]
      %v151 = vld [vmem:[#allocation6 + $0x1c0] sm:$0xff]
      %v152 = vld [vmem:[#allocation6 + $0x1c8] sm:$0xff]
      %v153 = vld [vmem:[#allocation6 + $0x1d0] sm:$0xff]
      %v154 = vld [vmem:[#allocation6 + $0x1d8] sm:$0xff]
      %v155 = vld [vmem:[#allocation6 + $0x1e0] sm:$0xff]
      %v156 = vld [vmem:[#allocation6 + $0x1e8] sm:$0xff]
      %v157 = vld [vmem:[#allocation6 + $0x1f0] sm:$0xff]
      %v158 = vld [vmem:[#allocation6 + $0x1f8] sm:$0xff]
      %v159 = vld [vmem:[#allocation6 + $0x200] sm:$0xff]
      %v160 = vld [vmem:[#allocation6 + $0x208] sm:$0xff]
      %v161 = vld [vmem:[#allocation6 + $0x210] sm:$0xff]
      %v162 = vld [vmem:[#allocation6 + $0x218] sm:$0xff]
      %v163 = vld [vmem:[#allocation6 + $0x220] sm:$0xff]
      %v164 = vld [vmem:[#allocation6 + $0x228] sm:$0xff]
      %v165 = vld [vmem:[#allocation6 + $0x230] sm:$0xff]
      %v166 = vld [vmem:[#allocation6 + $0x238] sm:$0xff]
      %v167 = vld [vmem:[#allocation6 + $0x240] sm:$0xff]
      %v168 = vld [vmem:[#allocation6 + $0x248] sm:$0xff]
      %v169 = vld [vmem:[#allocation6 + $0x250] sm:$0xff]
      %v170 = vld [vmem:[#allocation6 + $0x258] sm:$0xff]
      %v171 = vld [vmem:[#allocation6 + $0x260] sm:$0xff]
      %v172 = vld [vmem:[#allocation6 + $0x268] sm:$0xff]
      %v173 = vld [vmem:[#allocation6 + $0x270] sm:$0xff]
      %v174 = vld [vmem:[#allocation6 + $0x278] sm:$0xff]
      %v175 = vld [vmem:[#allocation6 + $0x280] sm:$0xff]
      %v176 = vld [vmem:[#allocation6 + $0x288] sm:$0xff]
      %v177 = vld [vmem:[#allocation6 + $0x290] sm:$0xff]
      %v178 = vld [vmem:[#allocation6 + $0x298] sm:$0xff]
      %v179 = vld [vmem:[#allocation6 + $0x2a0] sm:$0xff]
      %v180 = vld [vmem:[#allocation6 + $0x2a8] sm:$0xff]
      %v181 = vld [vmem:[#allocation6 + $0x2b0] sm:$0xff]
      %v182 = vld [vmem:[#allocation6 + $0x2b8] sm:$0xff]
      %v183 = vld [vmem:[#allocation6 + $0x2c0] sm:$0xff]
      %v184 = vld [vmem:[#allocation6 + $0x2c8] sm:$0xff]
      %v185 = vld [vmem:[#allocation6 + $0x2d0] sm:$0xff]
      %v186 = vld [vmem:[#allocation6 + $0x2d8] sm:$0xff]
      %v187 = vld [vmem:[#allocation6 + $0x2e0] sm:$0xff]
      %v188 = vld [vmem:[#allocation6 + $0x2e8] sm:$0xff]
      %v189 = vld [vmem:[#allocation6 + $0x2f0] sm:$0xff]
      %v190 = vld [vmem:[#allocation6 + $0x2f8] sm:$0xff]
      %v191 = vld [vmem:[#allocation6 + $0x300] sm:$0xff]
      %v192 = vld [vmem:[#allocation6 + $0x308] sm:$0xff]
      %v193 = vld [vmem:[#allocation6 + $0x310] sm:$0xff]
      %v194 = vld [vmem:[#allocation6 + $0x318] sm:$0xff]
      %v195 = vld [vmem:[#allocation6 + $0x320] sm:$0xff]
      %v196 = vld [vmem:[#allocation6 + $0x328] sm:$0xff]
      %v197 = vld [vmem:[#allocation6 + $0x330] sm:$0xff]
      %v198 = vld [vmem:[#allocation6 + $0x338] sm:$0xff]
      %v199 = vld [vmem:[#allocation6 + $0x340] sm:$0xff]
      %v200 = vld [vmem:[#allocation6 + $0x348] sm:$0xff]
      %v201 = vld [vmem:[#allocation6 + $0x350] sm:$0xff]
      %v202 = vld [vmem:[#allocation6 + $0x358] sm:$0xff]
      %v203 = vld [vmem:[#allocation6 + $0x360] sm:$0xff]
      %v204 = vld [vmem:[#allocation6 + $0x368] sm:$0xff]
      %v205 = vld [vmem:[#allocation6 + $0x370] sm:$0xff]
      %v206 = vld [vmem:[#allocation6 + $0x378] sm:$0xff]
      %v207 = vld [vmem:[#allocation6 + $0x380] sm:$0xff]
      %v208 = vld [vmem:[#allocation6 + $0x388] sm:$0xff]
      %v209 = vld [vmem:[#allocation6 + $0x390] sm:$0xff]
      %v210 = vld [vmem:[#allocation6 + $0x398] sm:$0xff]
      %v211 = vld [vmem:[#allocation6 + $0x3a0] sm:$0xff]
      %v212 = vld [vmem:[#allocation6 + $0x3a8] sm:$0xff]
      %v213 = vld [vmem:[#allocation6 + $0x3b0] sm:$0xff]
      %v214 = vld [vmem:[#allocation6 + $0x3b8] sm:$0xff]
      %v215 = vld [vmem:[#allocation6 + $0x3c0] sm:$0xff]
      %v216 = vld [vmem:[#allocation6 + $0x3c8] sm:$0xff]
      %v217 = vld [vmem:[#allocation6 + $0x3d0] sm:$0xff]
      %v218 = vld [vmem:[#allocation6 + $0x3d8] sm:$0xff]
      %v219 = vld [vmem:[#allocation6 + $0x3e0] sm:$0xff]
      %v220 = vld [vmem:[#allocation6 + $0x3e8] sm:$0xff]
      %v221 = vld [vmem:[#allocation6 + $0x3f0] sm:$0xff]
      %v222 = vld [vmem:[#allocation6 + $0x3f8] sm:$0xff]
      %v223 = vld [vmem:[#allocation6 + $0x400] sm:$0xff]
      %v224 = vld [vmem:[#allocation6 + $0x408] sm:$0xff]
      %v225 = vld [vmem:[#allocation6 + $0x410] sm:$0xff]
      %v226 = vld [vmem:[#allocation6 + $0x418] sm:$0xff]
      %v227 = vld [vmem:[#allocation6 + $0x420] sm:$0xff]
      %v228 = vld [vmem:[#allocation6 + $0x428] sm:$0xff]
      %v229 = vld [vmem:[#allocation6 + $0x430] sm:$0xff]
      %v230 = vld [vmem:[#allocation6 + $0x438] sm:$0xff]
      %v231 = vld [vmem:[#allocation6 + $0x440] sm:$0xff]
      %v232 = vld [vmem:[#allocation6 + $0x448] sm:$0xff]
      %v233 = vld [vmem:[#allocation6 + $0x450] sm:$0xff]
      %v234 = vld [vmem:[#allocation6 + $0x458] sm:$0xff]
      %v235 = vld [vmem:[#allocation6 + $0x460] sm:$0xff]
      %v236 = vld [vmem:[#allocation6 + $0x468] sm:$0xff]
      %v237 = vld [vmem:[#allocation6 + $0x470] sm:$0xff]
      %v238 = vld [vmem:[#allocation6 + $0x478] sm:$0xff]
      %v239 = vld [vmem:[#allocation6 + $0x480] sm:$0xff]
      %v240 = vld [vmem:[#allocation6 + $0x488] sm:$0xff]
      %v241 = vld [vmem:[#allocation6 + $0x490] sm:$0xff]
      %v242 = vld [vmem:[#allocation6 + $0x498] sm:$0xff]
      %v243 = vld [vmem:[#allocation6 + $0x4a0] sm:$0xff]
      %v244 = vld [vmem:[#allocation6 + $0x4a8] sm:$0xff]
      %v245 = vld [vmem:[#allocation6 + $0x4b0] sm:$0xff]
      %v246 = vld [vmem:[#allocation6 + $0x4b8] sm:$0xff]
      %v247 = vld [vmem:[#allocation6 + $0x4c0] sm:$0xff]
      %v248 = vld [vmem:[#allocation6 + $0x4c8] sm:$0xff]
      %v249 = vld [vmem:[#allocation6 + $0x4d0] sm:$0xff]
      %v250 = vld [vmem:[#allocation6 + $0x4d8] sm:$0xff]
      %v251 = vld [vmem:[#allocation6 + $0x4e0] sm:$0xff]
      %v252 = vld [vmem:[#allocation6 + $0x4e8] sm:$0xff]
      %v253 = vld [vmem:[#allocation6 + $0x4f0] sm:$0xff]
      %v254 = vld [vmem:[#allocation6 + $0x4f8] sm:$0xff]
      %v255 = vld [vmem:[#allocation6 + $0x500] sm:$0xff]
      %v256 = vld [vmem:[#allocation6 + $0x508] sm:$0xff]
      %v257 = vld [vmem:[#allocation6 + $0x510] sm:$0xff]
      %v258 = vld [vmem:[#allocation6 + $0x518] sm:$0xff]
      %v259 = vld [vmem:[#allocation6 + $0x520] sm:$0xff]
      %v260 = vld [vmem:[#allocation6 + $0x528] sm:$0xff]
      %v261 = vld [vmem:[#allocation6 + $0x530] sm:$0xff]
      %v262 = vld [vmem:[#allocation6 + $0x538] sm:$0xff]
      %v263 = vld [vmem:[#allocation6 + $0x540] sm:$0xff]
      %v264 = vld [vmem:[#allocation6 + $0x548] sm:$0xff]
      %v265 = vld [vmem:[#allocation6 + $0x550] sm:$0xff]
      %v266 = vld [vmem:[#allocation6 + $0x558] sm:$0xff]
      %v267 = vld [vmem:[#allocation6 + $0x560] sm:$0xff]
      %v268 = vld [vmem:[#allocation6 + $0x568] sm:$0xff]
      %v269 = vld [vmem:[#allocation6 + $0x570] sm:$0xff]
      %v270 = vld [vmem:[#allocation6 + $0x578] sm:$0xff]
      %v271 = vld [vmem:[#allocation6 + $0x580] sm:$0xff]
      %v272 = vld [vmem:[#allocation6 + $0x588] sm:$0xff]
      %v273 = vld [vmem:[#allocation6 + $0x590] sm:$0xff]
      %v274 = vld [vmem:[#allocation6 + $0x598] sm:$0xff]
      %v275 = vld [vmem:[#allocation6 + $0x5a0] sm:$0xff]
      %v276 = vld [vmem:[#allocation6 + $0x5a8] sm:$0xff]
      %v277 = vld [vmem:[#allocation6 + $0x5b0] sm:$0xff]
      %v278 = vld [vmem:[#allocation6 + $0x5b8] sm:$0xff]
      %v279 = vld [vmem:[#allocation6 + $0x5c0] sm:$0xff]
      %v280 = vld [vmem:[#allocation6 + $0x5c8] sm:$0xff]
      %v281 = vld [vmem:[#allocation6 + $0x5d0] sm:$0xff]
      %v282 = vld [vmem:[#allocation6 + $0x5d8] sm:$0xff]
      %v283 = vld [vmem:[#allocation6 + $0x5e0] sm:$0xff]
      %v284 = vld [vmem:[#allocation6 + $0x5e8] sm:$0xff]
      %v285 = vld [vmem:[#allocation6 + $0x5f0] sm:$0xff]
      %v286 = vld [vmem:[#allocation6 + $0x5f8] sm:$0xff]
      %v287 = vld [vmem:[#allocation6 + $0x600] sm:$0xff]
      %v288 = vld [vmem:[#allocation6 + $0x608] sm:$0xff]
      %v289 = vld [vmem:[#allocation6 + $0x610] sm:$0xff]
      %v290 = vld [vmem:[#allocation6 + $0x618] sm:$0xff]
      %v291 = vld [vmem:[#allocation6 + $0x620] sm:$0xff]
      %v292 = vld [vmem:[#allocation6 + $0x628] sm:$0xff]
      %v293 = vld [vmem:[#allocation6 + $0x630] sm:$0xff]
      %v294 = vld [vmem:[#allocation6 + $0x638] sm:$0xff]
      %v295 = vld [vmem:[#allocation6 + $0x640] sm:$0xff]
      %v296 = vld [vmem:[#allocation6 + $0x648] sm:$0xff]
      %v297 = vld [vmem:[#allocation6 + $0x650] sm:$0xff]
      %v298 = vld [vmem:[#allocation6 + $0x658] sm:$0xff]
      %v299 = vld [vmem:[#allocation6 + $0x660] sm:$0xff]
      %v300 = vld [vmem:[#allocation6 + $0x668] sm:$0xff]
      %v301 = vld [vmem:[#allocation6 + $0x670] sm:$0xff]
      %v302 = vld [vmem:[#allocation6 + $0x678] sm:$0xff]
      %v303 = vld [vmem:[#allocation6 + $0x680] sm:$0xff]
      %v304 = vld [vmem:[#allocation6 + $0x688] sm:$0xff]
      %v305 = vld [vmem:[#allocation6 + $0x690] sm:$0xff]
      %v306 = vld [vmem:[#allocation6 + $0x698] sm:$0xff]
      %v307 = vld [vmem:[#allocation6 + $0x6a0] sm:$0xff]
      %v308 = vld [vmem:[#allocation6 + $0x6a8] sm:$0xff]
      %v309 = vld [vmem:[#allocation6 + $0x6b0] sm:$0xff]
      %v310 = vld [vmem:[#allocation6 + $0x6b8] sm:$0xff]
      %v311 = vld [vmem:[#allocation6 + $0x6c0] sm:$0xff]
      %v312 = vld [vmem:[#allocation6 + $0x6c8] sm:$0xff]
      %v313 = vld [vmem:[#allocation6 + $0x6d0] sm:$0xff]
      %v314 = vld [vmem:[#allocation6 + $0x6d8] sm:$0xff]
      %v315 = vld [vmem:[#allocation6 + $0x6e0] sm:$0xff]
      %v316 = vld [vmem:[#allocation6 + $0x6e8] sm:$0xff]
      %v317 = vld [vmem:[#allocation6 + $0x6f0] sm:$0xff]
      %v318 = vld [vmem:[#allocation6 + $0x6f8] sm:$0xff]
      %v319 = vld [vmem:[#allocation6 + $0x700] sm:$0xff]
      %v320 = vld [vmem:[#allocation6 + $0x708] sm:$0xff]
      %v321 = vld [vmem:[#allocation6 + $0x710] sm:$0xff]
      %v322 = vld [vmem:[#allocation6 + $0x718] sm:$0xff]
      %v323 = vld [vmem:[#allocation6 + $0x720] sm:$0xff]
      %v324 = vld [vmem:[#allocation6 + $0x728] sm:$0xff]
      %v325 = vld [vmem:[#allocation6 + $0x730] sm:$0xff]
      %v326 = vld [vmem:[#allocation6 + $0x738] sm:$0xff]
      %v327 = vld [vmem:[#allocation6 + $0x740] sm:$0xff]
      %v328 = vld [vmem:[#allocation6 + $0x748] sm:$0xff]
      %v329 = vld [vmem:[#allocation6 + $0x750] sm:$0xff]
      %v330 = vld [vmem:[#allocation6 + $0x758] sm:$0xff]
      %v331 = vld [vmem:[#allocation6 + $0x760] sm:$0xff]
      %v332 = vld [vmem:[#allocation6 + $0x768] sm:$0xff]
      %v333 = vld [vmem:[#allocation6 + $0x770] sm:$0xff]
      %v334 = vld [vmem:[#allocation6 + $0x778] sm:$0xff]
      %v335 = vld [vmem:[#allocation6 + $0x780] sm:$0xff]
      %v336 = vld [vmem:[#allocation6 + $0x788] sm:$0xff]
      %v337 = vld [vmem:[#allocation6 + $0x790] sm:$0xff]
      %v338 = vld [vmem:[#allocation6 + $0x798] sm:$0xff]
      %v339 = vld [vmem:[#allocation6 + $0x7a0] sm:$0xff]
      %v340 = vld [vmem:[#allocation6 + $0x7a8] sm:$0xff]
      %v341 = vld [vmem:[#allocation6 + $0x7b0] sm:$0xff]
      %v342 = vld [vmem:[#allocation6 + $0x7b8] sm:$0xff]
      %v343 = vld [vmem:[#allocation6 + $0x7c0] sm:$0xff]
      %v344 = vld [vmem:[#allocation6 + $0x7c8] sm:$0xff]
      %v345 = vld [vmem:[#allocation6 + $0x7d0] sm:$0xff]
      %v346 = vld [vmem:[#allocation6 + $0x7d8] sm:$0xff]
      %v347 = vld [vmem:[#allocation6 + $0x7e0] sm:$0xff]
      %v348 = vld [vmem:[#allocation6 + $0x7e8] sm:$0xff]
      %v349 = vld [vmem:[#allocation6 + $0x7f0] sm:$0xff]
      %v350 = vld [vmem:[#allocation6 + $0x7f8] sm:$0xff]
      %v351 = vld [vmem:[#allocation8] sm:$0xff]
      %v352 = vld [vmem:[#allocation8 + $0x8] sm:$0xff]
      %v353 = vld [vmem:[#allocation8 + $0x10] sm:$0xff]
      %v354 = vld [vmem:[#allocation8 + $0x18] sm:$0xff]
      %v611 = vunpack.c.l.b16 %v95
      %v612 = vunpack.c.h.b16 %v95
      %v613 = vunpack.c.l.b16 %v96
      %v614 = vunpack.c.h.b16 %v96
      %v615 = vunpack.c.l.b16 %v97
      %v616 = vunpack.c.h.b16 %v97
      %v617 = vunpack.c.l.b16 %v98
      %v618 = vunpack.c.h.b16 %v98
      %v619 = vunpack.c.l.b16 %v99
      %v620 = vunpack.c.h.b16 %v99
      %v621 = vunpack.c.l.b16 %v100
      %v622 = vunpack.c.h.b16 %v100
      %v623 = vunpack.c.l.b16 %v101
      %v624 = vunpack.c.h.b16 %v101
      %v625 = vunpack.c.l.b16 %v102
      %v626 = vunpack.c.h.b16 %v102
      %v627 = vunpack.c.l.b16 %v103
      %v628 = vunpack.c.h.b16 %v103
      %v629 = vunpack.c.l.b16 %v104
      %v630 = vunpack.c.h.b16 %v104
      %v631 = vunpack.c.l.b16 %v105
      %v632 = vunpack.c.h.b16 %v105
      %v633 = vunpack.c.l.b16 %v106
      %v634 = vunpack.c.h.b16 %v106
      %v635 = vunpack.c.l.b16 %v107
      %v636 = vunpack.c.h.b16 %v107
      %v637 = vunpack.c.l.b16 %v108
      %v638 = vunpack.c.h.b16 %v108
      %v639 = vunpack.c.l.b16 %v109
      %v640 = vunpack.c.h.b16 %v109
      %v641 = vunpack.c.l.b16 %v110
      %v642 = vunpack.c.h.b16 %v110
      %v643 = vunpack.c.l.b16 %v111
      %v644 = vunpack.c.h.b16 %v111
      %v645 = vunpack.c.l.b16 %v112
      %v646 = vunpack.c.h.b16 %v112
      %v647 = vunpack.c.l.b16 %v113
      %v648 = vunpack.c.h.b16 %v113
      %v649 = vunpack.c.l.b16 %v114
      %v650 = vunpack.c.h.b16 %v114
      %v651 = vunpack.c.l.b16 %v115
      %v652 = vunpack.c.h.b16 %v115
      %v653 = vunpack.c.l.b16 %v116
      %v654 = vunpack.c.h.b16 %v116
      %v655 = vunpack.c.l.b16 %v117
      %v656 = vunpack.c.h.b16 %v117
      %v657 = vunpack.c.l.b16 %v118
      %v658 = vunpack.c.h.b16 %v118
      %v659 = vunpack.c.l.b16 %v119
      %v660 = vunpack.c.h.b16 %v119
      %v661 = vunpack.c.l.b16 %v120
      %v662 = vunpack.c.h.b16 %v120
      %v663 = vunpack.c.l.b16 %v121
      %v664 = vunpack.c.h.b16 %v121
      %v665 = vunpack.c.l.b16 %v122
      %v666 = vunpack.c.h.b16 %v122
      %v667 = vunpack.c.l.b16 %v123
      %v668 = vunpack.c.h.b16 %v123
      %v669 = vunpack.c.l.b16 %v124
      %v670 = vunpack.c.h.b16 %v124
      %v671 = vunpack.c.l.b16 %v125
      %v672 = vunpack.c.h.b16 %v125
      %v673 = vunpack.c.l.b16 %v126
      %v674 = vunpack.c.h.b16 %v126
      %v675 = vunpack.c.l.b16 %v127
      %v676 = vunpack.c.h.b16 %v127
      %v677 = vunpack.c.l.b16 %v128
      %v678 = vunpack.c.h.b16 %v128
      %v679 = vunpack.c.l.b16 %v129
      %v680 = vunpack.c.h.b16 %v129
      %v681 = vunpack.c.l.b16 %v130
      %v682 = vunpack.c.h.b16 %v130
      %v683 = vunpack.c.l.b16 %v131
      %v684 = vunpack.c.h.b16 %v131
      %v685 = vunpack.c.l.b16 %v132
      %v686 = vunpack.c.h.b16 %v132
      %v687 = vunpack.c.l.b16 %v133
      %v688 = vunpack.c.h.b16 %v133
      %v689 = vunpack.c.l.b16 %v134
      %v690 = vunpack.c.h.b16 %v134
      %v691 = vunpack.c.l.b16 %v135
      %v692 = vunpack.c.h.b16 %v135
      %v693 = vunpack.c.l.b16 %v136
      %v694 = vunpack.c.h.b16 %v136
      %v695 = vunpack.c.l.b16 %v137
      %v696 = vunpack.c.h.b16 %v137
      %v697 = vunpack.c.l.b16 %v138
      %v698 = vunpack.c.h.b16 %v138
      %v699 = vunpack.c.l.b16 %v139
      %v700 = vunpack.c.h.b16 %v139
      %v701 = vunpack.c.l.b16 %v140
      %v702 = vunpack.c.h.b16 %v140
      %v703 = vunpack.c.l.b16 %v141
      %v704 = vunpack.c.h.b16 %v141
      %v705 = vunpack.c.l.b16 %v142
      %v706 = vunpack.c.h.b16 %v142
      %v707 = vunpack.c.l.b16 %v143
      %v708 = vunpack.c.h.b16 %v143
      %v709 = vunpack.c.l.b16 %v144
      %v710 = vunpack.c.h.b16 %v144
      %v711 = vunpack.c.l.b16 %v145
      %v712 = vunpack.c.h.b16 %v145
      %v713 = vunpack.c.l.b16 %v146
      %v714 = vunpack.c.h.b16 %v146
      %v715 = vunpack.c.l.b16 %v147
      %v716 = vunpack.c.h.b16 %v147
      %v717 = vunpack.c.l.b16 %v148
      %v718 = vunpack.c.h.b16 %v148
      %v719 = vunpack.c.l.b16 %v149
      %v720 = vunpack.c.h.b16 %v149
      %v721 = vunpack.c.l.b16 %v150
      %v722 = vunpack.c.h.b16 %v150
      %v723 = vunpack.c.l.b16 %v151
      %v724 = vunpack.c.h.b16 %v151
      %v725 = vunpack.c.l.b16 %v152
      %v726 = vunpack.c.h.b16 %v152
      %v727 = vunpack.c.l.b16 %v153
      %v728 = vunpack.c.h.b16 %v153
      %v729 = vunpack.c.l.b16 %v154
      %v730 = vunpack.c.h.b16 %v154
      %v731 = vunpack.c.l.b16 %v155
      %v732 = vunpack.c.h.b16 %v155
      %v733 = vunpack.c.l.b16 %v156
      %v734 = vunpack.c.h.b16 %v156
      %v735 = vunpack.c.l.b16 %v157
      %v736 = vunpack.c.h.b16 %v157
      %v737 = vunpack.c.l.b16 %v158
      %v738 = vunpack.c.h.b16 %v158
      %v739 = vunpack.c.l.b16 %v159
      %v740 = vunpack.c.h.b16 %v159
      %v741 = vunpack.c.l.b16 %v160
      %v742 = vunpack.c.h.b16 %v160
      %v743 = vunpack.c.l.b16 %v161
      %v744 = vunpack.c.h.b16 %v161
      %v745 = vunpack.c.l.b16 %v162
      %v746 = vunpack.c.h.b16 %v162
      %v747 = vunpack.c.l.b16 %v163
      %v748 = vunpack.c.h.b16 %v163
      %v749 = vunpack.c.l.b16 %v164
      %v750 = vunpack.c.h.b16 %v164
      %v751 = vunpack.c.l.b16 %v165
      %v752 = vunpack.c.h.b16 %v165
      %v753 = vunpack.c.l.b16 %v166
      %v754 = vunpack.c.h.b16 %v166
      %v755 = vunpack.c.l.b16 %v167
      %v756 = vunpack.c.h.b16 %v167
      %v757 = vunpack.c.l.b16 %v168
      %v758 = vunpack.c.h.b16 %v168
      %v759 = vunpack.c.l.b16 %v169
      %v760 = vunpack.c.h.b16 %v169
      %v761 = vunpack.c.l.b16 %v170
      %v762 = vunpack.c.h.b16 %v170
      %v763 = vunpack.c.l.b16 %v171
      %v764 = vunpack.c.h.b16 %v171
      %v765 = vunpack.c.l.b16 %v172
      %v766 = vunpack.c.h.b16 %v172
      %v767 = vunpack.c.l.b16 %v173
      %v768 = vunpack.c.h.b16 %v173
      %v769 = vunpack.c.l.b16 %v174
      %v770 = vunpack.c.h.b16 %v174
      %v771 = vunpack.c.l.b16 %v175
      %v772 = vunpack.c.h.b16 %v175
      %v773 = vunpack.c.l.b16 %v176
      %v774 = vunpack.c.h.b16 %v176
      %v775 = vunpack.c.l.b16 %v177
      %v776 = vunpack.c.h.b16 %v177
      %v777 = vunpack.c.l.b16 %v178
      %v778 = vunpack.c.h.b16 %v178
      %v779 = vunpack.c.l.b16 %v179
      %v780 = vunpack.c.h.b16 %v179
      %v781 = vunpack.c.l.b16 %v180
      %v782 = vunpack.c.h.b16 %v180
      %v783 = vunpack.c.l.b16 %v181
      %v784 = vunpack.c.h.b16 %v181
      %v785 = vunpack.c.l.b16 %v182
      %v786 = vunpack.c.h.b16 %v182
      %v787 = vunpack.c.l.b16 %v183
      %v788 = vunpack.c.h.b16 %v183
      %v789 = vunpack.c.l.b16 %v184
      %v790 = vunpack.c.h.b16 %v184
      %v791 = vunpack.c.l.b16 %v185
      %v792 = vunpack.c.h.b16 %v185
      %v793 = vunpack.c.l.b16 %v186
      %v794 = vunpack.c.h.b16 %v186
      %v795 = vunpack.c.l.b16 %v187
      %v796 = vunpack.c.h.b16 %v187
      %v797 = vunpack.c.l.b16 %v188
      %v798 = vunpack.c.h.b16 %v188
      %v799 = vunpack.c.l.b16 %v189
      %v800 = vunpack.c.h.b16 %v189
      %v801 = vunpack.c.l.b16 %v190
      %v802 = vunpack.c.h.b16 %v190
      %v803 = vunpack.c.l.b16 %v191
      %v804 = vunpack.c.h.b16 %v191
      %v805 = vunpack.c.l.b16 %v192
      %v806 = vunpack.c.h.b16 %v192
      %v807 = vunpack.c.l.b16 %v193
      %v808 = vunpack.c.h.b16 %v193
      %v809 = vunpack.c.l.b16 %v194
      %v810 = vunpack.c.h.b16 %v194
      %v811 = vunpack.c.l.b16 %v195
      %v812 = vunpack.c.h.b16 %v195
      %v813 = vunpack.c.l.b16 %v196
      %v814 = vunpack.c.h.b16 %v196
      %v815 = vunpack.c.l.b16 %v197
      %v816 = vunpack.c.h.b16 %v197
      %v817 = vunpack.c.l.b16 %v198
      %v818 = vunpack.c.h.b16 %v198
      %v819 = vunpack.c.l.b16 %v199
      %v820 = vunpack.c.h.b16 %v199
      %v821 = vunpack.c.l.b16 %v200
      %v822 = vunpack.c.h.b16 %v200
      %v823 = vunpack.c.l.b16 %v201
      %v824 = vunpack.c.h.b16 %v201
      %v825 = vunpack.c.l.b16 %v202
      %v826 = vunpack.c.h.b16 %v202
      %v827 = vunpack.c.l.b16 %v203
      %v828 = vunpack.c.h.b16 %v203
      %v829 = vunpack.c.l.b16 %v204
      %v830 = vunpack.c.h.b16 %v204
      %v831 = vunpack.c.l.b16 %v205
      %v832 = vunpack.c.h.b16 %v205
      %v833 = vunpack.c.l.b16 %v206
      %v834 = vunpack.c.h.b16 %v206
      %v835 = vunpack.c.l.b16 %v207
      %v836 = vunpack.c.h.b16 %v207
      %v837 = vunpack.c.l.b16 %v208
      %v838 = vunpack.c.h.b16 %v208
      %v839 = vunpack.c.l.b16 %v209
      %v840 = vunpack.c.h.b16 %v209
      %v841 = vunpack.c.l.b16 %v210
      %v842 = vunpack.c.h.b16 %v210
      %v843 = vunpack.c.l.b16 %v211
      %v844 = vunpack.c.h.b16 %v211
      %v845 = vunpack.c.l.b16 %v212
      %v846 = vunpack.c.h.b16 %v212
      %v847 = vunpack.c.l.b16 %v213
      %v848 = vunpack.c.h.b16 %v213
      %v849 = vunpack.c.l.b16 %v214
      %v850 = vunpack.c.h.b16 %v214
      %v851 = vunpack.c.l.b16 %v215
      %v852 = vunpack.c.h.b16 %v215
      %v853 = vunpack.c.l.b16 %v216
      %v854 = vunpack.c.h.b16 %v216
      %v855 = vunpack.c.l.b16 %v217
      %v856 = vunpack.c.h.b16 %v217
      %v857 = vunpack.c.l.b16 %v218
      %v858 = vunpack.c.h.b16 %v218
      %v859 = vunpack.c.l.b16 %v219
      %v860 = vunpack.c.h.b16 %v219
      %v861 = vunpack.c.l.b16 %v220
      %v862 = vunpack.c.h.b16 %v220
      %v863 = vunpack.c.l.b16 %v221
      %v864 = vunpack.c.h.b16 %v221
      %v865 = vunpack.c.l.b16 %v222
      %v866 = vunpack.c.h.b16 %v222
      %v867 = vunpack.c.l.b16 %v223
      %v868 = vunpack.c.h.b16 %v223
      %v869 = vunpack.c.l.b16 %v224
      %v870 = vunpack.c.h.b16 %v224
      %v871 = vunpack.c.l.b16 %v225
      %v872 = vunpack.c.h.b16 %v225
      %v873 = vunpack.c.l.b16 %v226
      %v874 = vunpack.c.h.b16 %v226
      %v875 = vunpack.c.l.b16 %v227
      %v876 = vunpack.c.h.b16 %v227
      %v877 = vunpack.c.l.b16 %v228
      %v878 = vunpack.c.h.b16 %v228
      %v879 = vunpack.c.l.b16 %v229
      %v880 = vunpack.c.h.b16 %v229
      %v881 = vunpack.c.l.b16 %v230
      %v882 = vunpack.c.h.b16 %v230
      %v883 = vunpack.c.l.b16 %v231
      %v884 = vunpack.c.h.b16 %v231
      %v885 = vunpack.c.l.b16 %v232
      %v886 = vunpack.c.h.b16 %v232
      %v887 = vunpack.c.l.b16 %v233
      %v888 = vunpack.c.h.b16 %v233
      %v889 = vunpack.c.l.b16 %v234
      %v890 = vunpack.c.h.b16 %v234
      %v891 = vunpack.c.l.b16 %v235
      %v892 = vunpack.c.h.b16 %v235
      %v893 = vunpack.c.l.b16 %v236
      %v894 = vunpack.c.h.b16 %v236
      %v895 = vunpack.c.l.b16 %v237
      %v896 = vunpack.c.h.b16 %v237
      %v897 = vunpack.c.l.b16 %v238
      %v898 = vunpack.c.h.b16 %v238
      %v899 = vunpack.c.l.b16 %v239
      %v900 = vunpack.c.h.b16 %v239
      %v901 = vunpack.c.l.b16 %v240
      %v902 = vunpack.c.h.b16 %v240
      %v903 = vunpack.c.l.b16 %v241
      %v904 = vunpack.c.h.b16 %v241
      %v905 = vunpack.c.l.b16 %v242
      %v906 = vunpack.c.h.b16 %v242
      %v907 = vunpack.c.l.b16 %v243
      %v908 = vunpack.c.h.b16 %v243
      %v909 = vunpack.c.l.b16 %v244
      %v910 = vunpack.c.h.b16 %v244
      %v911 = vunpack.c.l.b16 %v245
      %v912 = vunpack.c.h.b16 %v245
      %v913 = vunpack.c.l.b16 %v246
      %v914 = vunpack.c.h.b16 %v246
      %v915 = vunpack.c.l.b16 %v247
      %v916 = vunpack.c.h.b16 %v247
      %v917 = vunpack.c.l.b16 %v248
      %v918 = vunpack.c.h.b16 %v248
      %v919 = vunpack.c.l.b16 %v249
      %v920 = vunpack.c.h.b16 %v249
      %v921 = vunpack.c.l.b16 %v250
      %v922 = vunpack.c.h.b16 %v250
      %v923 = vunpack.c.l.b16 %v251
      %v924 = vunpack.c.h.b16 %v251
      %v925 = vunpack.c.l.b16 %v252
      %v926 = vunpack.c.h.b16 %v252
      %v927 = vunpack.c.l.b16 %v253
      %v928 = vunpack.c.h.b16 %v253
      %v929 = vunpack.c.l.b16 %v254
      %v930 = vunpack.c.h.b16 %v254
      %v931 = vunpack.c.l.b16 %v255
      %v932 = vunpack.c.h.b16 %v255
      %v933 = vunpack.c.l.b16 %v256
      %v934 = vunpack.c.h.b16 %v256
      %v935 = vunpack.c.l.b16 %v257
      %v936 = vunpack.c.h.b16 %v257
      %v937 = vunpack.c.l.b16 %v258
      %v938 = vunpack.c.h.b16 %v258
      %v939 = vunpack.c.l.b16 %v259
      %v940 = vunpack.c.h.b16 %v259
      %v941 = vunpack.c.l.b16 %v260
      %v942 = vunpack.c.h.b16 %v260
      %v943 = vunpack.c.l.b16 %v261
      %v944 = vunpack.c.h.b16 %v261
      %v945 = vunpack.c.l.b16 %v262
      %v946 = vunpack.c.h.b16 %v262
      %v947 = vunpack.c.l.b16 %v263
      %v948 = vunpack.c.h.b16 %v263
      %v949 = vunpack.c.l.b16 %v264
      %v950 = vunpack.c.h.b16 %v264
      %v951 = vunpack.c.l.b16 %v265
      %v952 = vunpack.c.h.b16 %v265
      %v953 = vunpack.c.l.b16 %v266
      %v954 = vunpack.c.h.b16 %v266
      %v955 = vunpack.c.l.b16 %v267
      %v956 = vunpack.c.h.b16 %v267
      %v957 = vunpack.c.l.b16 %v268
      %v958 = vunpack.c.h.b16 %v268
      %v959 = vunpack.c.l.b16 %v269
      %v960 = vunpack.c.h.b16 %v269
      %v961 = vunpack.c.l.b16 %v270
      %v962 = vunpack.c.h.b16 %v270
      %v963 = vunpack.c.l.b16 %v271
      %v964 = vunpack.c.h.b16 %v271
      %v965 = vunpack.c.l.b16 %v272
      %v966 = vunpack.c.h.b16 %v272
      %v967 = vunpack.c.l.b16 %v273
      %v968 = vunpack.c.h.b16 %v273
      %v969 = vunpack.c.l.b16 %v274
      %v970 = vunpack.c.h.b16 %v274
      %v971 = vunpack.c.l.b16 %v275
      %v972 = vunpack.c.h.b16 %v275
      %v973 = vunpack.c.l.b16 %v276
      %v974 = vunpack.c.h.b16 %v276
      %v975 = vunpack.c.l.b16 %v277
      %v976 = vunpack.c.h.b16 %v277
      %v977 = vunpack.c.l.b16 %v278
      %v978 = vunpack.c.h.b16 %v278
      %v979 = vunpack.c.l.b16 %v279
      %v980 = vunpack.c.h.b16 %v279
      %v981 = vunpack.c.l.b16 %v280
      %v982 = vunpack.c.h.b16 %v280
      %v983 = vunpack.c.l.b16 %v281
      %v984 = vunpack.c.h.b16 %v281
      %v985 = vunpack.c.l.b16 %v282
      %v986 = vunpack.c.h.b16 %v282
      %v987 = vunpack.c.l.b16 %v283
      %v988 = vunpack.c.h.b16 %v283
      %v989 = vunpack.c.l.b16 %v284
      %v990 = vunpack.c.h.b16 %v284
      %v991 = vunpack.c.l.b16 %v285
      %v992 = vunpack.c.h.b16 %v285
      %v993 = vunpack.c.l.b16 %v286
      %v994 = vunpack.c.h.b16 %v286
      %v995 = vunpack.c.l.b16 %v287
      %v996 = vunpack.c.h.b16 %v287
      %v997 = vunpack.c.l.b16 %v288
      %v998 = vunpack.c.h.b16 %v288
      %v999 = vunpack.c.l.b16 %v289
      %v1000 = vunpack.c.h.b16 %v289
      %v1001 = vunpack.c.l.b16 %v290
      %v1002 = vunpack.c.h.b16 %v290
      %v1003 = vunpack.c.l.b16 %v291
      %v1004 = vunpack.c.h.b16 %v291
      %v1005 = vunpack.c.l.b16 %v292
      %v1006 = vunpack.c.h.b16 %v292
      %v1007 = vunpack.c.l.b16 %v293
      %v1008 = vunpack.c.h.b16 %v293
      %v1009 = vunpack.c.l.b16 %v294
      %v1010 = vunpack.c.h.b16 %v294
      %v1011 = vunpack.c.l.b16 %v295
      %v1012 = vunpack.c.h.b16 %v295
      %v1013 = vunpack.c.l.b16 %v296
      %v1014 = vunpack.c.h.b16 %v296
      %v1015 = vunpack.c.l.b16 %v297
      %v1016 = vunpack.c.h.b16 %v297
      %v1017 = vunpack.c.l.b16 %v298
      %v1018 = vunpack.c.h.b16 %v298
      %v1019 = vunpack.c.l.b16 %v299
      %v1020 = vunpack.c.h.b16 %v299
      %v1021 = vunpack.c.l.b16 %v300
      %v1022 = vunpack.c.h.b16 %v300
      %v1023 = vunpack.c.l.b16 %v301
      %v1024 = vunpack.c.h.b16 %v301
      %v1025 = vunpack.c.l.b16 %v302
      %v1026 = vunpack.c.h.b16 %v302
      %v1027 = vunpack.c.l.b16 %v303
      %v1028 = vunpack.c.h.b16 %v303
      %v1029 = vunpack.c.l.b16 %v304
      %v1030 = vunpack.c.h.b16 %v304
      %v1031 = vunpack.c.l.b16 %v305
      %v1032 = vunpack.c.h.b16 %v305
      %v1033 = vunpack.c.l.b16 %v306
      %v1034 = vunpack.c.h.b16 %v306
      %v1035 = vunpack.c.l.b16 %v307
      %v1036 = vunpack.c.h.b16 %v307
      %v1037 = vunpack.c.l.b16 %v308
      %v1038 = vunpack.c.h.b16 %v308
      %v1039 = vunpack.c.l.b16 %v309
      %v1040 = vunpack.c.h.b16 %v309
      %v1041 = vunpack.c.l.b16 %v310
      %v1042 = vunpack.c.h.b16 %v310
      %v1043 = vunpack.c.l.b16 %v311
      %v1044 = vunpack.c.h.b16 %v311
      %v1045 = vunpack.c.l.b16 %v312
      %v1046 = vunpack.c.h.b16 %v312
      %v1047 = vunpack.c.l.b16 %v313
      %v1048 = vunpack.c.h.b16 %v313
      %v1049 = vunpack.c.l.b16 %v314
      %v1050 = vunpack.c.h.b16 %v314
      %v1051 = vunpack.c.l.b16 %v315
      %v1052 = vunpack.c.h.b16 %v315
      %v1053 = vunpack.c.l.b16 %v316
      %v1054 = vunpack.c.h.b16 %v316
      %v1055 = vunpack.c.l.b16 %v317
      %v1056 = vunpack.c.h.b16 %v317
      %v1057 = vunpack.c.l.b16 %v318
      %v1058 = vunpack.c.h.b16 %v318
      %v1059 = vunpack.c.l.b16 %v319
      %v1060 = vunpack.c.h.b16 %v319
      %v1061 = vunpack.c.l.b16 %v320
      %v1062 = vunpack.c.h.b16 %v320
      %v1063 = vunpack.c.l.b16 %v321
      %v1064 = vunpack.c.h.b16 %v321
      %v1065 = vunpack.c.l.b16 %v322
      %v1066 = vunpack.c.h.b16 %v322
      %v1067 = vunpack.c.l.b16 %v323
      %v1068 = vunpack.c.h.b16 %v323
      %v1069 = vunpack.c.l.b16 %v324
      %v1070 = vunpack.c.h.b16 %v324
      %v1071 = vunpack.c.l.b16 %v325
      %v1072 = vunpack.c.h.b16 %v325
      %v1073 = vunpack.c.l.b16 %v326
      %v1074 = vunpack.c.h.b16 %v326
      %v1075 = vunpack.c.l.b16 %v327
      %v1076 = vunpack.c.h.b16 %v327
      %v1077 = vunpack.c.l.b16 %v328
      %v1078 = vunpack.c.h.b16 %v328
      %v1079 = vunpack.c.l.b16 %v329
      %v1080 = vunpack.c.h.b16 %v329
      %v1081 = vunpack.c.l.b16 %v330
      %v1082 = vunpack.c.h.b16 %v330
      %v1083 = vunpack.c.l.b16 %v331
      %v1084 = vunpack.c.h.b16 %v331
      %v1085 = vunpack.c.l.b16 %v332
      %v1086 = vunpack.c.h.b16 %v332
      %v1087 = vunpack.c.l.b16 %v333
      %v1088 = vunpack.c.h.b16 %v333
      %v1089 = vunpack.c.l.b16 %v334
      %v1090 = vunpack.c.h.b16 %v334
      %v1091 = vunpack.c.l.b16 %v335
      %v1092 = vunpack.c.h.b16 %v335
      %v1093 = vunpack.c.l.b16 %v336
      %v1094 = vunpack.c.h.b16 %v336
      %v1095 = vunpack.c.l.b16 %v337
      %v1096 = vunpack.c.h.b16 %v337
      %v1097 = vunpack.c.l.b16 %v338
      %v1098 = vunpack.c.h.b16 %v338
      %v1099 = vunpack.c.l.b16 %v339
      %v1100 = vunpack.c.h.b16 %v339
      %v1101 = vunpack.c.l.b16 %v340
      %v1102 = vunpack.c.h.b16 %v340
      %v1103 = vunpack.c.l.b16 %v341
      %v1104 = vunpack.c.h.b16 %v341
      %v1105 = vunpack.c.l.b16 %v342
      %v1106 = vunpack.c.h.b16 %v342
      %v1107 = vunpack.c.l.b16 %v343
      %v1108 = vunpack.c.h.b16 %v343
      %v1109 = vunpack.c.l.b16 %v344
      %v1110 = vunpack.c.h.b16 %v344
      %v1111 = vunpack.c.l.b16 %v345
      %v1112 = vunpack.c.h.b16 %v345
      %v1113 = vunpack.c.l.b16 %v346
      %v1114 = vunpack.c.h.b16 %v346
      %v1115 = vunpack.c.l.b16 %v347
      %v1116 = vunpack.c.h.b16 %v347
      %v1117 = vunpack.c.l.b16 %v348
      %v1118 = vunpack.c.h.b16 %v348
      %v1119 = vunpack.c.l.b16 %v349
      %v1120 = vunpack.c.h.b16 %v349
      %v1121 = vunpack.c.l.b16 %v350
      %v1122 = vunpack.c.h.b16 %v350
      %v1123 = vpack.c.b16 %v643, %v611
      %v1124 = vpack.c.b16 %v644, %v612
      %v1125 = vpack.c.b16 %v645, %v613
      %v1126 = vpack.c.b16 %v646, %v614
      %v1127 = vpack.c.b16 %v647, %v615
      %v1128 = vpack.c.b16 %v648, %v616
      %v1129 = vpack.c.b16 %v649, %v617
      %v1130 = vpack.c.b16 %v650, %v618
      %v1131 = vpack.c.b16 %v651, %v619
      %v1132 = vpack.c.b16 %v652, %v620
      %v1133 = vpack.c.b16 %v653, %v621
      %v1134 = vpack.c.b16 %v654, %v622
      %v1135 = vpack.c.b16 %v655, %v623
      %v1136 = vpack.c.b16 %v656, %v624
      %v1137 = vpack.c.b16 %v657, %v625
      %v1138 = vpack.c.b16 %v658, %v626
      %v1139 = vpack.c.b16 %v659, %v627
      %v1140 = vpack.c.b16 %v660, %v628
      %v1141 = vpack.c.b16 %v661, %v629
      %v1142 = vpack.c.b16 %v662, %v630
      %v1143 = vpack.c.b16 %v663, %v631
      %v1144 = vpack.c.b16 %v664, %v632
      %v1145 = vpack.c.b16 %v665, %v633
      %v1146 = vpack.c.b16 %v666, %v634
      %v1147 = vpack.c.b16 %v667, %v635
      %v1148 = vpack.c.b16 %v668, %v636
      %v1149 = vpack.c.b16 %v669, %v637
      %v1150 = vpack.c.b16 %v670, %v638
      %v1151 = vpack.c.b16 %v671, %v639
      %v1152 = vpack.c.b16 %v672, %v640
      %v1153 = vpack.c.b16 %v673, %v641
      %v1154 = vpack.c.b16 %v674, %v642
      %v1155 = vpack.c.b16 %v707, %v675
      %v1156 = vpack.c.b16 %v708, %v676
      %v1157 = vpack.c.b16 %v709, %v677
      %v1158 = vpack.c.b16 %v710, %v678
      %v1159 = vpack.c.b16 %v711, %v679
      %v1160 = vpack.c.b16 %v712, %v680
      %v1161 = vpack.c.b16 %v713, %v681
      %v1162 = vpack.c.b16 %v714, %v682
      %v1163 = vpack.c.b16 %v715, %v683
      %v1164 = vpack.c.b16 %v716, %v684
      %v1165 = vpack.c.b16 %v717, %v685
      %v1166 = vpack.c.b16 %v718, %v686
      %v1167 = vpack.c.b16 %v719, %v687
      %v1168 = vpack.c.b16 %v720, %v688
      %v1169 = vpack.c.b16 %v721, %v689
      %v1170 = vpack.c.b16 %v722, %v690
      %v1171 = vpack.c.b16 %v723, %v691
      %v1172 = vpack.c.b16 %v724, %v692
      %v1173 = vpack.c.b16 %v725, %v693
      %v1174 = vpack.c.b16 %v726, %v694
      %v1175 = vpack.c.b16 %v727, %v695
      %v1176 = vpack.c.b16 %v728, %v696
      %v1177 = vpack.c.b16 %v729, %v697
      %v1178 = vpack.c.b16 %v730, %v698
      %v1179 = vpack.c.b16 %v731, %v699
      %v1180 = vpack.c.b16 %v732, %v700
      %v1181 = vpack.c.b16 %v733, %v701
      %v1182 = vpack.c.b16 %v734, %v702
      %v1183 = vpack.c.b16 %v735, %v703
      %v1184 = vpack.c.b16 %v736, %v704
      %v1185 = vpack.c.b16 %v737, %v705
      %v1186 = vpack.c.b16 %v738, %v706
      %v1187 = vpack.c.b16 %v771, %v739
      %v1188 = vpack.c.b16 %v772, %v740
      %v1189 = vpack.c.b16 %v773, %v741
      %v1190 = vpack.c.b16 %v774, %v742
      %v1191 = vpack.c.b16 %v775, %v743
      %v1192 = vpack.c.b16 %v776, %v744
      %v1193 = vpack.c.b16 %v777, %v745
      %v1194 = vpack.c.b16 %v778, %v746
      %v1195 = vpack.c.b16 %v779, %v747
      %v1196 = vpack.c.b16 %v780, %v748
      %v1197 = vpack.c.b16 %v781, %v749
      %v1198 = vpack.c.b16 %v782, %v750
      %v1199 = vpack.c.b16 %v783, %v751
      %v1200 = vpack.c.b16 %v784, %v752
      %v1201 = vpack.c.b16 %v785, %v753
      %v1202 = vpack.c.b16 %v786, %v754
      %v1203 = vpack.c.b16 %v787, %v755
      %v1204 = vpack.c.b16 %v788, %v756
      %v1205 = vpack.c.b16 %v789, %v757
      %v1206 = vpack.c.b16 %v790, %v758
      %v1207 = vpack.c.b16 %v791, %v759
      %v1208 = vpack.c.b16 %v792, %v760
      %v1209 = vpack.c.b16 %v793, %v761
      %v1210 = vpack.c.b16 %v794, %v762
      %v1211 = vpack.c.b16 %v795, %v763
      %v1212 = vpack.c.b16 %v796, %v764
      %v1213 = vpack.c.b16 %v797, %v765
      %v1214 = vpack.c.b16 %v798, %v766
      %v1215 = vpack.c.b16 %v799, %v767
      %v1216 = vpack.c.b16 %v800, %v768
      %v1217 = vpack.c.b16 %v801, %v769
      %v1218 = vpack.c.b16 %v802, %v770
      %v1219 = vpack.c.b16 %v835, %v803
      %v1220 = vpack.c.b16 %v836, %v804
      %v1221 = vpack.c.b16 %v837, %v805
      %v1222 = vpack.c.b16 %v838, %v806
      %v1223 = vpack.c.b16 %v839, %v807
      %v1224 = vpack.c.b16 %v840, %v808
      %v1225 = vpack.c.b16 %v841, %v809
      %v1226 = vpack.c.b16 %v842, %v810
      %v1227 = vpack.c.b16 %v843, %v811
      %v1228 = vpack.c.b16 %v844, %v812
      %v1229 = vpack.c.b16 %v845, %v813
      %v1230 = vpack.c.b16 %v846, %v814
      %v1231 = vpack.c.b16 %v847, %v815
      %v1232 = vpack.c.b16 %v848, %v816
      %v1233 = vpack.c.b16 %v849, %v817
      %v1234 = vpack.c.b16 %v850, %v818
      %v1235 = vpack.c.b16 %v851, %v819
      %v1236 = vpack.c.b16 %v852, %v820
      %v1237 = vpack.c.b16 %v853, %v821
      %v1238 = vpack.c.b16 %v854, %v822
      %v1239 = vpack.c.b16 %v855, %v823
      %v1240 = vpack.c.b16 %v856, %v824
      %v1241 = vpack.c.b16 %v857, %v825
      %v1242 = vpack.c.b16 %v858, %v826
      %v1243 = vpack.c.b16 %v859, %v827
      %v1244 = vpack.c.b16 %v860, %v828
      %v1245 = vpack.c.b16 %v861, %v829
      %v1246 = vpack.c.b16 %v862, %v830
      %v1247 = vpack.c.b16 %v863, %v831
      %v1248 = vpack.c.b16 %v864, %v832
      %v1249 = vpack.c.b16 %v865, %v833
      %v1250 = vpack.c.b16 %v866, %v834
      %v1251 = vpack.c.b16 %v899, %v867
      %v1252 = vpack.c.b16 %v900, %v868
      %v1253 = vpack.c.b16 %v901, %v869
      %v1254 = vpack.c.b16 %v902, %v870
      %v1255 = vpack.c.b16 %v903, %v871
      %v1256 = vpack.c.b16 %v904, %v872
      %v1257 = vpack.c.b16 %v905, %v873
      %v1258 = vpack.c.b16 %v906, %v874
      %v1259 = vpack.c.b16 %v907, %v875
      %v1260 = vpack.c.b16 %v908, %v876
      %v1261 = vpack.c.b16 %v909, %v877
      %v1262 = vpack.c.b16 %v910, %v878
      %v1263 = vpack.c.b16 %v911, %v879
      %v1264 = vpack.c.b16 %v912, %v880
      %v1265 = vpack.c.b16 %v913, %v881
      %v1266 = vpack.c.b16 %v914, %v882
      %v1267 = vpack.c.b16 %v915, %v883
      %v1268 = vpack.c.b16 %v916, %v884
      %v1269 = vpack.c.b16 %v917, %v885
      %v1270 = vpack.c.b16 %v918, %v886
      %v1271 = vpack.c.b16 %v919, %v887
      %v1272 = vpack.c.b16 %v920, %v888
      %v1273 = vpack.c.b16 %v921, %v889
      %v1274 = vpack.c.b16 %v922, %v890
      %v1275 = vpack.c.b16 %v923, %v891
      %v1276 = vpack.c.b16 %v924, %v892
      %v1277 = vpack.c.b16 %v925, %v893
      %v1278 = vpack.c.b16 %v926, %v894
      %v1279 = vpack.c.b16 %v927, %v895
      %v1280 = vpack.c.b16 %v928, %v896
      %v1281 = vpack.c.b16 %v929, %v897
      %v1282 = vpack.c.b16 %v930, %v898
      %v1283 = vpack.c.b16 %v963, %v931
      %v1284 = vpack.c.b16 %v964, %v932
      %v1285 = vpack.c.b16 %v965, %v933
      %v1286 = vpack.c.b16 %v966, %v934
      %v1287 = vpack.c.b16 %v967, %v935
      %v1288 = vpack.c.b16 %v968, %v936
      %v1289 = vpack.c.b16 %v969, %v937
      %v1290 = vpack.c.b16 %v970, %v938
      %v1291 = vpack.c.b16 %v971, %v939
      %v1292 = vpack.c.b16 %v972, %v940
      %v1293 = vpack.c.b16 %v973, %v941
      %v1294 = vpack.c.b16 %v974, %v942
      %v1295 = vpack.c.b16 %v975, %v943
      %v1296 = vpack.c.b16 %v976, %v944
      %v1297 = vpack.c.b16 %v977, %v945
      %v1298 = vpack.c.b16 %v978, %v946
      %v1299 = vpack.c.b16 %v979, %v947
      %v1300 = vpack.c.b16 %v980, %v948
      %v1301 = vpack.c.b16 %v981, %v949
      %v1302 = vpack.c.b16 %v982, %v950
      %v1303 = vpack.c.b16 %v983, %v951
      %v1304 = vpack.c.b16 %v984, %v952
      %v1305 = vpack.c.b16 %v985, %v953
      %v1306 = vpack.c.b16 %v986, %v954
      %v1307 = vpack.c.b16 %v987, %v955
      %v1308 = vpack.c.b16 %v988, %v956
      %v1309 = vpack.c.b16 %v989, %v957
      %v1310 = vpack.c.b16 %v990, %v958
      %v1311 = vpack.c.b16 %v991, %v959
      %v1312 = vpack.c.b16 %v992, %v960
      %v1313 = vpack.c.b16 %v993, %v961
      %v1314 = vpack.c.b16 %v994, %v962
      %v1315 = vpack.c.b16 %v1027, %v995
      %v1316 = vpack.c.b16 %v1028, %v996
      %v1317 = vpack.c.b16 %v1029, %v997
      %v1318 = vpack.c.b16 %v1030, %v998
      %v1319 = vpack.c.b16 %v1031, %v999
      %v1320 = vpack.c.b16 %v1032, %v1000
      %v1321 = vpack.c.b16 %v1033, %v1001
      %v1322 = vpack.c.b16 %v1034, %v1002
      %v1323 = vpack.c.b16 %v1035, %v1003
      %v1324 = vpack.c.b16 %v1036, %v1004
      %v1325 = vpack.c.b16 %v1037, %v1005
      %v1326 = vpack.c.b16 %v1038, %v1006
      %v1327 = vpack.c.b16 %v1039, %v1007
      %v1328 = vpack.c.b16 %v1040, %v1008
      %v1329 = vpack.c.b16 %v1041, %v1009
      %v1330 = vpack.c.b16 %v1042, %v1010
      %v1331 = vpack.c.b16 %v1043, %v1011
      %v1332 = vpack.c.b16 %v1044, %v1012
      %v1333 = vpack.c.b16 %v1045, %v1013
      %v1334 = vpack.c.b16 %v1046, %v1014
      %v1335 = vpack.c.b16 %v1047, %v1015
      %v1336 = vpack.c.b16 %v1048, %v1016
      %v1337 = vpack.c.b16 %v1049, %v1017
      %v1338 = vpack.c.b16 %v1050, %v1018
      %v1339 = vpack.c.b16 %v1051, %v1019
      %v1340 = vpack.c.b16 %v1052, %v1020
      %v1341 = vpack.c.b16 %v1053, %v1021
      %v1342 = vpack.c.b16 %v1054, %v1022
      %v1343 = vpack.c.b16 %v1055, %v1023
      %v1344 = vpack.c.b16 %v1056, %v1024
      %v1345 = vpack.c.b16 %v1057, %v1025
      %v1346 = vpack.c.b16 %v1058, %v1026
      %v1347 = vpack.c.b16 %v1091, %v1059
      %v1348 = vpack.c.b16 %v1092, %v1060
      %v1349 = vpack.c.b16 %v1093, %v1061
      %v1350 = vpack.c.b16 %v1094, %v1062
      %v1351 = vpack.c.b16 %v1095, %v1063
      %v1352 = vpack.c.b16 %v1096, %v1064
      %v1353 = vpack.c.b16 %v1097, %v1065
      %v1354 = vpack.c.b16 %v1098, %v1066
      %v1355 = vpack.c.b16 %v1099, %v1067
      %v1356 = vpack.c.b16 %v1100, %v1068
      %v1357 = vpack.c.b16 %v1101, %v1069
      %v1358 = vpack.c.b16 %v1102, %v1070
      %v1359 = vpack.c.b16 %v1103, %v1071
      %v1360 = vpack.c.b16 %v1104, %v1072
      %v1361 = vpack.c.b16 %v1105, %v1073
      %v1362 = vpack.c.b16 %v1106, %v1074
      %v1363 = vpack.c.b16 %v1107, %v1075
      %v1364 = vpack.c.b16 %v1108, %v1076
      %v1365 = vpack.c.b16 %v1109, %v1077
      %v1366 = vpack.c.b16 %v1110, %v1078
      %v1367 = vpack.c.b16 %v1111, %v1079
      %v1368 = vpack.c.b16 %v1112, %v1080
      %v1369 = vpack.c.b16 %v1113, %v1081
      %v1370 = vpack.c.b16 %v1114, %v1082
      %v1371 = vpack.c.b16 %v1115, %v1083
      %v1372 = vpack.c.b16 %v1116, %v1084
      %v1373 = vpack.c.b16 %v1117, %v1085
      %v1374 = vpack.c.b16 %v1118, %v1086
      %v1375 = vpack.c.b16 %v1119, %v1087
      %v1376 = vpack.c.b16 %v1120, %v1088
      %v1377 = vpack.c.b16 %v1121, %v1089
      %v1378 = vpack.c.b16 %v1122, %v1090
      %v1639 = vlaneseq
      %v1640 = vshrl.u32 %v1639, 7
      %v1641 = vsub.s32 0, %v1640
      %v1642 = vrot.slane %v351, %v1641
      %v1643 = vlaneseq
      %v1644 = vshrl.u32 %v1643, 7
      %v1645 = vsub.s32 1, %v1644
      %v1646 = vrot.slane %v351, %v1645
      %v1647 = vlaneseq
      %v1648 = vshrl.u32 %v1647, 7
      %v1649 = vsub.s32 2, %v1648
      %v1650 = vrot.slane %v351, %v1649
      %v1651 = vlaneseq
      %v1652 = vshrl.u32 %v1651, 7
      %v1653 = vsub.s32 3, %v1652
      %v1654 = vrot.slane %v351, %v1653
      %v1655 = vlaneseq
      %v1656 = vshrl.u32 %v1655, 7
      %v1657 = vsub.s32 4, %v1656
      %v1658 = vrot.slane %v351, %v1657
      %v1659 = vlaneseq
      %v1660 = vshrl.u32 %v1659, 7
      %v1661 = vsub.s32 5, %v1660
      %v1662 = vrot.slane %v351, %v1661
      %v1663 = vlaneseq
      %v1664 = vshrl.u32 %v1663, 7
      %v1665 = vsub.s32 6, %v1664
      %v1666 = vrot.slane %v351, %v1665
      %v1667 = vlaneseq
      %v1668 = vshrl.u32 %v1667, 7
      %v1669 = vsub.s32 7, %v1668
      %v1670 = vrot.slane %v351, %v1669
      %v1671 = vlaneseq
      %v1672 = vshrl.u32 %v1671, 7
      %v1673 = vsub.s32 0, %v1672
      %v1674 = vrot.slane %v352, %v1673
      %v1675 = vlaneseq
      %v1676 = vshrl.u32 %v1675, 7
      %v1677 = vsub.s32 1, %v1676
      %v1678 = vrot.slane %v352, %v1677
      %v1679 = vlaneseq
      %v1680 = vshrl.u32 %v1679, 7
      %v1681 = vsub.s32 2, %v1680
      %v1682 = vrot.slane %v352, %v1681
      %v1683 = vlaneseq
      %v1684 = vshrl.u32 %v1683, 7
      %v1685 = vsub.s32 3, %v1684
      %v1686 = vrot.slane %v352, %v1685
      %v1687 = vlaneseq
      %v1688 = vshrl.u32 %v1687, 7
      %v1689 = vsub.s32 4, %v1688
      %v1690 = vrot.slane %v352, %v1689
      %v1691 = vlaneseq
      %v1692 = vshrl.u32 %v1691, 7
      %v1693 = vsub.s32 5, %v1692
      %v1694 = vrot.slane %v352, %v1693
      %v1695 = vlaneseq
      %v1696 = vshrl.u32 %v1695, 7
      %v1697 = vsub.s32 6, %v1696
      %v1698 = vrot.slane %v352, %v1697
      %v1699 = vlaneseq
      %v1700 = vshrl.u32 %v1699, 7
      %v1701 = vsub.s32 7, %v1700
      %v1702 = vrot.slane %v352, %v1701
      %v1703 = vlaneseq
      %v1704 = vshrl.u32 %v1703, 7
      %v1705 = vsub.s32 0, %v1704
      %v1706 = vrot.slane %v353, %v1705
      %v1707 = vlaneseq
      %v1708 = vshrl.u32 %v1707, 7
      %v1709 = vsub.s32 1, %v1708
      %v1710 = vrot.slane %v353, %v1709
      %v1711 = vlaneseq
      %v1712 = vshrl.u32 %v1711, 7
      %v1713 = vsub.s32 2, %v1712
      %v1714 = vrot.slane %v353, %v1713
      %v1715 = vlaneseq
      %v1716 = vshrl.u32 %v1715, 7
      %v1717 = vsub.s32 3, %v1716
      %v1718 = vrot.slane %v353, %v1717
      %v1719 = vlaneseq
      %v1720 = vshrl.u32 %v1719, 7
      %v1721 = vsub.s32 4, %v1720
      %v1722 = vrot.slane %v353, %v1721
      %v1723 = vlaneseq
      %v1724 = vshrl.u32 %v1723, 7
      %v1725 = vsub.s32 5, %v1724
      %v1726 = vrot.slane %v353, %v1725
      %v1727 = vlaneseq
      %v1728 = vshrl.u32 %v1727, 7
      %v1729 = vsub.s32 6, %v1728
      %v1730 = vrot.slane %v353, %v1729
      %v1731 = vlaneseq
      %v1732 = vshrl.u32 %v1731, 7
      %v1733 = vsub.s32 7, %v1732
      %v1734 = vrot.slane %v353, %v1733
      %v1735 = vlaneseq
      %v1736 = vshrl.u32 %v1735, 7
      %v1737 = vsub.s32 0, %v1736
      %v1738 = vrot.slane %v354, %v1737
      %v1739 = vlaneseq
      %v1740 = vshrl.u32 %v1739, 7
      %v1741 = vsub.s32 1, %v1740
      %v1742 = vrot.slane %v354, %v1741
      %v1743 = vlaneseq
      %v1744 = vshrl.u32 %v1743, 7
      %v1745 = vsub.s32 2, %v1744
      %v1746 = vrot.slane %v354, %v1745
      %v1747 = vlaneseq
      %v1748 = vshrl.u32 %v1747, 7
      %v1749 = vsub.s32 3, %v1748
      %v1750 = vrot.slane %v354, %v1749
      %v1751 = vlaneseq
      %v1752 = vshrl.u32 %v1751, 7
      %v1753 = vsub.s32 4, %v1752
      %v1754 = vrot.slane %v354, %v1753
      %v1755 = vlaneseq
      %v1756 = vshrl.u32 %v1755, 7
      %v1757 = vsub.s32 5, %v1756
      %v1758 = vrot.slane %v354, %v1757
      %v1759 = vlaneseq
      %v1760 = vshrl.u32 %v1759, 7
      %v1761 = vsub.s32 6, %v1760
      %v1762 = vrot.slane %v354, %v1761
      %v1763 = vlaneseq
      %v1764 = vshrl.u32 %v1763, 7
      %v1765 = vsub.s32 7, %v1764
      %v1766 = vrot.slane %v354, %v1765
      %1799 = vmatprep.subr.bf16.mxu0 %v1124
      %1800 = vmatpush1.bf16.msra.mxu0 %v1123
      %1801 = vmatprep.subr.bf16.mxu0 %v1156
      %1802 = vmatpush1.bf16.msra.mxu0 %v1155
      %1803 = vmatprep.subr.bf16.mxu0 %v1188
      %1804 = vmatpush1.bf16.msra.mxu0 %v1187
      %1805 = vmatprep.subr.bf16.mxu0 %v1220
      %1806 = vmatpush1.bf16.msra.mxu0 %v1219
      %1807 = vmatprep.subr.bf16.mxu0 %v1252
      %1808 = vmatpush1.bf16.msra.mxu0 %v1251
      %1809 = vmatprep.subr.bf16.mxu0 %v1284
      %1810 = vmatpush1.bf16.msra.mxu0 %v1283
      %1811 = vmatprep.subr.bf16.mxu0 %v1316
      %1812 = vmatpush1.bf16.msra.mxu0 %v1315
      %1813 = vmatprep.subr.bf16.mxu0 %v1348
      %1814 = vmatpush1.bf16.msra.mxu0 %v1347
      %1815 = vmatprep.subr.bf16.mxu0 0
      %1816 = vmatpush1.bf16.msra.mxu0 0
      %1817 = vmatprep.subr.bf16.mxu0 0
      %1818 = vmatpush1.bf16.msra.mxu0 0
      %1819 = vmatprep.subr.bf16.mxu0 0
      %1820 = vmatpush1.bf16.msra.mxu0 0
      %1821 = vmatprep.subr.bf16.mxu0 0
      %1822 = vmatpush1.bf16.msra.mxu0 0
      %1823 = vmatprep.subr.bf16.mxu0 0
      %1824 = vmatpush1.bf16.msra.mxu0 0
      %1825 = vmatprep.subr.bf16.mxu0 0
      %1826 = vmatpush1.bf16.msra.mxu0 0
      %1827 = vmatprep.subr.bf16.mxu0 0
      %1828 = vmatpush1.bf16.msra.mxu0 0
      %1829 = vmatprep.subr.bf16.mxu0 0
      %1830 = vmatpush1.bf16.msra.mxu0 0
      %1831 = vmatprep.mubr.bf16.mxu0 0
      %1832 = vmatmul.mubr.bf16.gmra.mrb[0].mxu0 %v94
      %v1833 = vpop.f32.mrb[0].mxu0
      %v1834 = vadd.f32 %v1642, %v1833
      %v1835 = vpop.f32.mrb[0].mxu0
      %v1836 = vadd.f32 %v1646, %v1835
      %v1837 = vpop.f32.mrb[0].mxu0
      %v1838 = vpop.f32.mrb[0].mxu0
      %1839 = vdwg.mxu0
      %1840 = vmatprep.subr.bf16.mxu0 %v1126
      %1841 = vmatpush1.bf16.msra.mxu0 %v1125
      %1842 = vmatprep.subr.bf16.mxu0 %v1158
      %1843 = vmatpush1.bf16.msra.mxu0 %v1157
      %1844 = vmatprep.subr.bf16.mxu0 %v1190
      %1845 = vmatpush1.bf16.msra.mxu0 %v1189
      %1846 = vmatprep.subr.bf16.mxu0 %v1222
      %1847 = vmatpush1.bf16.msra.mxu0 %v1221
      %1848 = vmatprep.subr.bf16.mxu0 %v1254
      %1849 = vmatpush1.bf16.msra.mxu0 %v1253
      %1850 = vmatprep.subr.bf16.mxu0 %v1286
      %1851 = vmatpush1.bf16.msra.mxu0 %v1285
      %1852 = vmatprep.subr.bf16.mxu0 %v1318
      %1853 = vmatpush1.bf16.msra.mxu0 %v1317
      %1854 = vmatprep.subr.bf16.mxu0 %v1350
      %1855 = vmatpush1.bf16.msra.mxu0 %v1349
      %1856 = vmatprep.subr.bf16.mxu0 0
      %1857 = vmatpush1.bf16.msra.mxu0 0
      %1858 = vmatprep.subr.bf16.mxu0 0
      %1859 = vmatpush1.bf16.msra.mxu0 0
      %1860 = vmatprep.subr.bf16.mxu0 0
      %1861 = vmatpush1.bf16.msra.mxu0 0
      %1862 = vmatprep.subr.bf16.mxu0 0
      %1863 = vmatpush1.bf16.msra.mxu0 0
      %1864 = vmatprep.subr.bf16.mxu0 0
      %1865 = vmatpush1.bf16.msra.mxu0 0
      %1866 = vmatprep.subr.bf16.mxu0 0
      %1867 = vmatpush1.bf16.msra.mxu0 0
      %1868 = vmatprep.subr.bf16.mxu0 0
      %1869 = vmatpush1.bf16.msra.mxu0 0
      %1870 = vmatprep.subr.bf16.mxu0 0
      %1871 = vmatpush1.bf16.msra.mxu0 0
      %1872 = vmatprep.mubr.bf16.mxu0 0
      %1873 = vmatmul.mubr.bf16.gmra.mrb[0].mxu0 %v94
      %v1874 = vpop.f32.mrb[0].mxu0
      %v1875 = vadd.f32 %v1650, %v1874
      %v1876 = vpop.f32.mrb[0].mxu0
      %v1877 = vadd.f32 %v1654, %v1876
      %v1878 = vpop.f32.mrb[0].mxu0
      %v1879 = vpop.f32.mrb[0].mxu0
      %1880 = vdwg.mxu0
      %1881 = vmatprep.subr.bf16.mxu0 %v1128
      %1882 = vmatpush1.bf16.msra.mxu0 %v1127
      %1883 = vmatprep.subr.bf16.mxu0 %v1160
      %1884 = vmatpush1.bf16.msra.mxu0 %v1159
      %1885 = vmatprep.subr.bf16.mxu0 %v1192
      %1886 = vmatpush1.bf16.msra.mxu0 %v1191
      %1887 = vmatprep.subr.bf16.mxu0 %v1224
      %1888 = vmatpush1.bf16.msra.mxu0 %v1223
      %1889 = vmatprep.subr.bf16.mxu0 %v1256
      %1890 = vmatpush1.bf16.msra.mxu0 %v1255
      %1891 = vmatprep.subr.bf16.mxu0 %v1288
      %1892 = vmatpush1.bf16.msra.mxu0 %v1287
      %1893 = vmatprep.subr.bf16.mxu0 %v1320
      %1894 = vmatpush1.bf16.msra.mxu0 %v1319
      %1895 = vmatprep.subr.bf16.mxu0 %v1352
      %1896 = vmatpush1.bf16.msra.mxu0 %v1351
      %1897 = vmatprep.subr.bf16.mxu0 0
      %1898 = vmatpush1.bf16.msra.mxu0 0
      %1899 = vmatprep.subr.bf16.mxu0 0
      %1900 = vmatpush1.bf16.msra.mxu0 0
      %1901 = vmatprep.subr.bf16.mxu0 0
      %1902 = vmatpush1.bf16.msra.mxu0 0
      %1903 = vmatprep.subr.bf16.mxu0 0
      %1904 = vmatpush1.bf16.msra.mxu0 0
      %1905 = vmatprep.subr.bf16.mxu0 0
      %1906 = vmatpush1.bf16.msra.mxu0 0
      %1907 = vmatprep.subr.bf16.mxu0 0
      %1908 = vmatpush1.bf16.msra.mxu0 0
      %1909 = vmatprep.subr.bf16.mxu0 0
      %1910 = vmatpush1.bf16.msra.mxu0 0
      %1911 = vmatprep.subr.bf16.mxu0 0
      %1912 = vmatpush1.bf16.msra.mxu0 0
      %1913 = vmatprep.mubr.bf16.mxu0 0
      %1914 = vmatmul.mubr.bf16.gmra.mrb[0].mxu0 %v94
      %v1915 = vpop.f32.mrb[0].mxu0
      %v1916 = vadd.f32 %v1658, %v1915
      %v1917 = vpop.f32.mrb[0].mxu0
      %v1918 = vadd.f32 %v1662, %v1917
      %v1919 = vpop.f32.mrb[0].mxu0
      %v1920 = vpop.f32.mrb[0].mxu0
      %1921 = vdwg.mxu0
      %1922 = vmatprep.subr.bf16.mxu0 %v1130
      %1923 = vmatpush1.bf16.msra.mxu0 %v1129
      %1924 = vmatprep.subr.bf16.mxu0 %v1162
      %1925 = vmatpush1.bf16.msra.mxu0 %v1161
      %1926 = vmatprep.subr.bf16.mxu0 %v1194
      %1927 = vmatpush1.bf16.msra.mxu0 %v1193
      %1928 = vmatprep.subr.bf16.mxu0 %v1226
      %1929 = vmatpush1.bf16.msra.mxu0 %v1225
      %1930 = vmatprep.subr.bf16.mxu0 %v1258
      %1931 = vmatpush1.bf16.msra.mxu0 %v1257
      %1932 = vmatprep.subr.bf16.mxu0 %v1290
      %1933 = vmatpush1.bf16.msra.mxu0 %v1289
      %1934 = vmatprep.subr.bf16.mxu0 %v1322
      %1935 = vmatpush1.bf16.msra.mxu0 %v1321
      %1936 = vmatprep.subr.bf16.mxu0 %v1354
      %1937 = vmatpush1.bf16.msra.mxu0 %v1353
      %1938 = vmatprep.subr.bf16.mxu0 0
      %1939 = vmatpush1.bf16.msra.mxu0 0
      %1940 = vmatprep.subr.bf16.mxu0 0
      %1941 = vmatpush1.bf16.msra.mxu0 0
      %1942 = vmatprep.subr.bf16.mxu0 0
      %1943 = vmatpush1.bf16.msra.mxu0 0
      %1944 = vmatprep.subr.bf16.mxu0 0
      %1945 = vmatpush1.bf16.msra.mxu0 0
      %1946 = vmatprep.subr.bf16.mxu0 0
      %1947 = vmatpush1.bf16.msra.mxu0 0
      %1948 = vmatprep.subr.bf16.mxu0 0
      %1949 = vmatpush1.bf16.msra.mxu0 0
      %1950 = vmatprep.subr.bf16.mxu0 0
      %1951 = vmatpush1.bf16.msra.mxu0 0
      %1952 = vmatprep.subr.bf16.mxu0 0
      %1953 = vmatpush1.bf16.msra.mxu0 0
      %1954 = vmatprep.mubr.bf16.mxu0 0
      %1955 = vmatmul.mubr.bf16.gmra.mrb[0].mxu0 %v94
      %v1956 = vpop.f32.mrb[0].mxu0
      %v1957 = vadd.f32 %v1666, %v1956
      %v1958 = vpop.f32.mrb[0].mxu0
      %v1959 = vadd.f32 %v1670, %v1958
      %v1960 = vpop.f32.mrb[0].mxu0
      %v1961 = vpop.f32.mrb[0].mxu0
      %1962 = vdwg.mxu0
      %1963 = vmatprep.subr.bf16.mxu0 %v1132
      %1964 = vmatpush1.bf16.msra.mxu0 %v1131
      %1965 = vmatprep.subr.bf16.mxu0 %v1164
      %1966 = vmatpush1.bf16.msra.mxu0 %v1163
      %1967 = vmatprep.subr.bf16.mxu0 %v1196
      %1968 = vmatpush1.bf16.msra.mxu0 %v1195
      %1969 = vmatprep.subr.bf16.mxu0 %v1228
      %1970 = vmatpush1.bf16.msra.mxu0 %v1227
      %1971 = vmatprep.subr.bf16.mxu0 %v1260
      %1972 = vmatpush1.bf16.msra.mxu0 %v1259
      %1973 = vmatprep.subr.bf16.mxu0 %v1292
      %1974 = vmatpush1.bf16.msra.mxu0 %v1291
      %1975 = vmatprep.subr.bf16.mxu0 %v1324
      %1976 = vmatpush1.bf16.msra.mxu0 %v1323
      %1977 = vmatprep.subr.bf16.mxu0 %v1356
      %1978 = vmatpush1.bf16.msra.mxu0 %v1355
      %1979 = vmatprep.subr.bf16.mxu0 0
      %1980 = vmatpush1.bf16.msra.mxu0 0
      %1981 = vmatprep.subr.bf16.mxu0 0
      %1982 = vmatpush1.bf16.msra.mxu0 0
      %1983 = vmatprep.subr.bf16.mxu0 0
      %1984 = vmatpush1.bf16.msra.mxu0 0
      %1985 = vmatprep.subr.bf16.mxu0 0
      %1986 = vmatpush1.bf16.msra.mxu0 0
      %1987 = vmatprep.subr.bf16.mxu0 0
      %1988 = vmatpush1.bf16.msra.mxu0 0
      %1989 = vmatprep.subr.bf16.mxu0 0
      %1990 = vmatpush1.bf16.msra.mxu0 0
      %1991 = vmatprep.subr.bf16.mxu0 0
      %1992 = vmatpush1.bf16.msra.mxu0 0
      %1993 = vmatprep.subr.bf16.mxu0 0
      %1994 = vmatpush1.bf16.msra.mxu0 0
      %1995 = vmatprep.mubr.bf16.mxu0 0
      %1996 = vmatmul.mubr.bf16.gmra.mrb[0].mxu0 %v94
      %v1997 = vpop.f32.mrb[0].mxu0
      %v1998 = vadd.f32 %v1674, %v1997
      %v1999 = vpop.f32.mrb[0].mxu0
      %v2000 = vadd.f32 %v1678, %v1999
      %v2001 = vpop.f32.mrb[0].mxu0
      %v2002 = vpop.f32.mrb[0].mxu0
      %2003 = vdwg.mxu0
      %2004 = vmatprep.subr.bf16.mxu0 %v1134
      %2005 = vmatpush1.bf16.msra.mxu0 %v1133
      %2006 = vmatprep.subr.bf16.mxu0 %v1166
      %2007 = vmatpush1.bf16.msra.mxu0 %v1165
      %2008 = vmatprep.subr.bf16.mxu0 %v1198
      %2009 = vmatpush1.bf16.msra.mxu0 %v1197
      %2010 = vmatprep.subr.bf16.mxu0 %v1230
      %2011 = vmatpush1.bf16.msra.mxu0 %v1229
      %2012 = vmatprep.subr.bf16.mxu0 %v1262
      %2013 = vmatpush1.bf16.msra.mxu0 %v1261
      %2014 = vmatprep.subr.bf16.mxu0 %v1294
      %2015 = vmatpush1.bf16.msra.mxu0 %v1293
      %2016 = vmatprep.subr.bf16.mxu0 %v1326
      %2017 = vmatpush1.bf16.msra.mxu0 %v1325
      %2018 = vmatprep.subr.bf16.mxu0 %v1358
      %2019 = vmatpush1.bf16.msra.mxu0 %v1357
      %2020 = vmatprep.subr.bf16.mxu0 0
      %2021 = vmatpush1.bf16.msra.mxu0 0
      %2022 = vmatprep.subr.bf16.mxu0 0
      %2023 = vmatpush1.bf16.msra.mxu0 0
      %2024 = vmatprep.subr.bf16.mxu0 0
      %2025 = vmatpush1.bf16.msra.mxu0 0
      %2026 = vmatprep.subr.bf16.mxu0 0
      %2027 = vmatpush1.bf16.msra.mxu0 0
      %2028 = vmatprep.subr.bf16.mxu0 0
      %2029 = vmatpush1.bf16.msra.mxu0 0
      %2030 = vmatprep.subr.bf16.mxu0 0
      %2031 = vmatpush1.bf16.msra.mxu0 0
      %2032 = vmatprep.subr.bf16.mxu0 0
      %2033 = vmatpush1.bf16.msra.mxu0 0
      %2034 = vmatprep.subr.bf16.mxu0 0
      %2035 = vmatpush1.bf16.msra.mxu0 0
      %2036 = vmatprep.mubr.bf16.mxu0 0
      %2037 = vmatmul.mubr.bf16.gmra.mrb[0].mxu0 %v94
      %v2038 = vpop.f32.mrb[0].mxu0
      %v2039 = vadd.f32 %v1682, %v2038
      %v2040 = vpop.f32.mrb[0].mxu0
      %v2041 = vadd.f32 %v1686, %v2040
      %v2042 = vpop.f32.mrb[0].mxu0
      %v2043 = vpop.f32.mrb[0].mxu0
      %2044 = vdwg.mxu0
      %2045 = vmatprep.subr.bf16.mxu0 %v1136
      %2046 = vmatpush1.bf16.msra.mxu0 %v1135
      %2047 = vmatprep.subr.bf16.mxu0 %v1168
      %2048 = vmatpush1.bf16.msra.mxu0 %v1167
      %2049 = vmatprep.subr.bf16.mxu0 %v1200
      %2050 = vmatpush1.bf16.msra.mxu0 %v1199
      %2051 = vmatprep.subr.bf16.mxu0 %v1232
      %2052 = vmatpush1.bf16.msra.mxu0 %v1231
      %2053 = vmatprep.subr.bf16.mxu0 %v1264
      %2054 = vmatpush1.bf16.msra.mxu0 %v1263
      %2055 = vmatprep.subr.bf16.mxu0 %v1296
      %2056 = vmatpush1.bf16.msra.mxu0 %v1295
      %2057 = vmatprep.subr.bf16.mxu0 %v1328
      %2058 = vmatpush1.bf16.msra.mxu0 %v1327
      %2059 = vmatprep.subr.bf16.mxu0 %v1360
      %2060 = vmatpush1.bf16.msra.mxu0 %v1359
      %2061 = vmatprep.subr.bf16.mxu0 0
      %2062 = vmatpush1.bf16.msra.mxu0 0
      %2063 = vmatprep.subr.bf16.mxu0 0
      %2064 = vmatpush1.bf16.msra.mxu0 0
      %2065 = vmatprep.subr.bf16.mxu0 0
      %2066 = vmatpush1.bf16.msra.mxu0 0
      %2067 = vmatprep.subr.bf16.mxu0 0
      %2068 = vmatpush1.bf16.msra.mxu0 0
      %2069 = vmatprep.subr.bf16.mxu0 0
      %2070 = vmatpush1.bf16.msra.mxu0 0
      %2071 = vmatprep.subr.bf16.mxu0 0
      %2072 = vmatpush1.bf16.msra.mxu0 0
      %2073 = vmatprep.subr.bf16.mxu0 0
      %2074 = vmatpush1.bf16.msra.mxu0 0
      %2075 = vmatprep.subr.bf16.mxu0 0
      %2076 = vmatpush1.bf16.msra.mxu0 0
      %2077 = vmatprep.mubr.bf16.mxu0 0
      %2078 = vmatmul.mubr.bf16.gmra.mrb[0].mxu0 %v94
      %v2079 = vpop.f32.mrb[0].mxu0
      %v2080 = vadd.f32 %v1690, %v2079
      %v2081 = vpop.f32.mrb[0].mxu0
      %v2082 = vadd.f32 %v1694, %v2081
      %v2083 = vpop.f32.mrb[0].mxu0
      %v2084 = vpop.f32.mrb[0].mxu0
      %2085 = vdwg.mxu0
      %2086 = vmatprep.subr.bf16.mxu0 %v1138
      %2087 = vmatpush1.bf16.msra.mxu0 %v1137
      %2088 = vmatprep.subr.bf16.mxu0 %v1170
      %2089 = vmatpush1.bf16.msra.mxu0 %v1169
      %2090 = vmatprep.subr.bf16.mxu0 %v1202
      %2091 = vmatpush1.bf16.msra.mxu0 %v1201
      %2092 = vmatprep.subr.bf16.mxu0 %v1234
      %2093 = vmatpush1.bf16.msra.mxu0 %v1233
      %2094 = vmatprep.subr.bf16.mxu0 %v1266
      %2095 = vmatpush1.bf16.msra.mxu0 %v1265
      %2096 = vmatprep.subr.bf16.mxu0 %v1298
      %2097 = vmatpush1.bf16.msra.mxu0 %v1297
      %2098 = vmatprep.subr.bf16.mxu0 %v1330
      %2099 = vmatpush1.bf16.msra.mxu0 %v1329
      %2100 = vmatprep.subr.bf16.mxu0 %v1362
      %2101 = vmatpush1.bf16.msra.mxu0 %v1361
      %2102 = vmatprep.subr.bf16.mxu0 0
      %2103 = vmatpush1.bf16.msra.mxu0 0
      %2104 = vmatprep.subr.bf16.mxu0 0
      %2105 = vmatpush1.bf16.msra.mxu0 0
      %2106 = vmatprep.subr.bf16.mxu0 0
      %2107 = vmatpush1.bf16.msra.mxu0 0
      %2108 = vmatprep.subr.bf16.mxu0 0
      %2109 = vmatpush1.bf16.msra.mxu0 0
      %2110 = vmatprep.subr.bf16.mxu0 0
      %2111 = vmatpush1.bf16.msra.mxu0 0
      %2112 = vmatprep.subr.bf16.mxu0 0
      %2113 = vmatpush1.bf16.msra.mxu0 0
      %2114 = vmatprep.subr.bf16.mxu0 0
      %2115 = vmatpush1.bf16.msra.mxu0 0
      %2116 = vmatprep.subr.bf16.mxu0 0
      %2117 = vmatpush1.bf16.msra.mxu0 0
      %2118 = vmatprep.mubr.bf16.mxu0 0
      %2119 = vmatmul.mubr.bf16.gmra.mrb[0].mxu0 %v94
      %v2120 = vpop.f32.mrb[0].mxu0
      %v2121 = vadd.f32 %v1698, %v2120
      %v2122 = vpop.f32.mrb[0].mxu0
      %v2123 = vadd.f32 %v1702, %v2122
      %v2124 = vpop.f32.mrb[0].mxu0
      %v2125 = vpop.f32.mrb[0].mxu0
      %2126 = vdwg.mxu0
      %2127 = vmatprep.subr.bf16.mxu0 %v1140
      %2128 = vmatpush1.bf16.msra.mxu0 %v1139
      %2129 = vmatprep.subr.bf16.mxu0 %v1172
      %2130 = vmatpush1.bf16.msra.mxu0 %v1171
      %2131 = vmatprep.subr.bf16.mxu0 %v1204
      %2132 = vmatpush1.bf16.msra.mxu0 %v1203
      %2133 = vmatprep.subr.bf16.mxu0 %v1236
      %2134 = vmatpush1.bf16.msra.mxu0 %v1235
      %2135 = vmatprep.subr.bf16.mxu0 %v1268
      %2136 = vmatpush1.bf16.msra.mxu0 %v1267
      %2137 = vmatprep.subr.bf16.mxu0 %v1300
      %2138 = vmatpush1.bf16.msra.mxu0 %v1299
      %2139 = vmatprep.subr.bf16.mxu0 %v1332
      %2140 = vmatpush1.bf16.msra.mxu0 %v1331
      %2141 = vmatprep.subr.bf16.mxu0 %v1364
      %2142 = vmatpush1.bf16.msra.mxu0 %v1363
      %2143 = vmatprep.subr.bf16.mxu0 0
      %2144 = vmatpush1.bf16.msra.mxu0 0
      %2145 = vmatprep.subr.bf16.mxu0 0
      %2146 = vmatpush1.bf16.msra.mxu0 0
      %2147 = vmatprep.subr.bf16.mxu0 0
      %2148 = vmatpush1.bf16.msra.mxu0 0
      %2149 = vmatprep.subr.bf16.mxu0 0
      %2150 = vmatpush1.bf16.msra.mxu0 0
      %2151 = vmatprep.subr.bf16.mxu0 0
      %2152 = vmatpush1.bf16.msra.mxu0 0
      %2153 = vmatprep.subr.bf16.mxu0 0
      %2154 = vmatpush1.bf16.msra.mxu0 0
      %2155 = vmatprep.subr.bf16.mxu0 0
      %2156 = vmatpush1.bf16.msra.mxu0 0
      %2157 = vmatprep.subr.bf16.mxu0 0
      %2158 = vmatpush1.bf16.msra.mxu0 0
      %2159 = vmatprep.mubr.bf16.mxu0 0
      %2160 = vmatmul.mubr.bf16.gmra.mrb[0].mxu0 %v94
      %v2161 = vpop.f32.mrb[0].mxu0
      %v2162 = vadd.f32 %v1706, %v2161
      %v2163 = vpop.f32.mrb[0].mxu0
      %v2164 = vadd.f32 %v1710, %v2163
      %v2165 = vpop.f32.mrb[0].mxu0
      %v2166 = vpop.f32.mrb[0].mxu0
      %2167 = vdwg.mxu0
      %2168 = vmatprep.subr.bf16.mxu0 %v1142
      %2169 = vmatpush1.bf16.msra.mxu0 %v1141
      %2170 = vmatprep.subr.bf16.mxu0 %v1174
      %2171 = vmatpush1.bf16.msra.mxu0 %v1173
      %2172 = vmatprep.subr.bf16.mxu0 %v1206
      %2173 = vmatpush1.bf16.msra.mxu0 %v1205
      %2174 = vmatprep.subr.bf16.mxu0 %v1238
      %2175 = vmatpush1.bf16.msra.mxu0 %v1237
      %2176 = vmatprep.subr.bf16.mxu0 %v1270
      %2177 = vmatpush1.bf16.msra.mxu0 %v1269
      %2178 = vmatprep.subr.bf16.mxu0 %v1302
      %2179 = vmatpush1.bf16.msra.mxu0 %v1301
      %2180 = vmatprep.subr.bf16.mxu0 %v1334
      %2181 = vmatpush1.bf16.msra.mxu0 %v1333
      %2182 = vmatprep.subr.bf16.mxu0 %v1366
      %2183 = vmatpush1.bf16.msra.mxu0 %v1365
      %2184 = vmatprep.subr.bf16.mxu0 0
      %2185 = vmatpush1.bf16.msra.mxu0 0
      %2186 = vmatprep.subr.bf16.mxu0 0
      %2187 = vmatpush1.bf16.msra.mxu0 0
      %2188 = vmatprep.subr.bf16.mxu0 0
      %2189 = vmatpush1.bf16.msra.mxu0 0
      %2190 = vmatprep.subr.bf16.mxu0 0
      %2191 = vmatpush1.bf16.msra.mxu0 0
      %2192 = vmatprep.subr.bf16.mxu0 0
      %2193 = vmatpush1.bf16.msra.mxu0 0
      %2194 = vmatprep.subr.bf16.mxu0 0
      %2195 = vmatpush1.bf16.msra.mxu0 0
      %2196 = vmatprep.subr.bf16.mxu0 0
      %2197 = vmatpush1.bf16.msra.mxu0 0
      %2198 = vmatprep.subr.bf16.mxu0 0
      %2199 = vmatpush1.bf16.msra.mxu0 0
      %2200 = vmatprep.mubr.bf16.mxu0 0
      %2201 = vmatmul.mubr.bf16.gmra.mrb[0].mxu0 %v94
      %v2202 = vpop.f32.mrb[0].mxu0
      %v2203 = vadd.f32 %v1714, %v2202
      %v2204 = vpop.f32.mrb[0].mxu0
      %v2205 = vadd.f32 %v1718, %v2204
      %v2206 = vpop.f32.mrb[0].mxu0
      %v2207 = vpop.f32.mrb[0].mxu0
      %2208 = vdwg.mxu0
      %2209 = vmatprep.subr.bf16.mxu0 %v1144
      %2210 = vmatpush1.bf16.msra.mxu0 %v1143
      %2211 = vmatprep.subr.bf16.mxu0 %v1176
      %2212 = vmatpush1.bf16.msra.mxu0 %v1175
      %2213 = vmatprep.subr.bf16.mxu0 %v1208
      %2214 = vmatpush1.bf16.msra.mxu0 %v1207
      %2215 = vmatprep.subr.bf16.mxu0 %v1240
      %2216 = vmatpush1.bf16.msra.mxu0 %v1239
      %2217 = vmatprep.subr.bf16.mxu0 %v1272
      %2218 = vmatpush1.bf16.msra.mxu0 %v1271
      %2219 = vmatprep.subr.bf16.mxu0 %v1304
      %2220 = vmatpush1.bf16.msra.mxu0 %v1303
      %2221 = vmatprep.subr.bf16.mxu0 %v1336
      %2222 = vmatpush1.bf16.msra.mxu0 %v1335
      %2223 = vmatprep.subr.bf16.mxu0 %v1368
      %2224 = vmatpush1.bf16.msra.mxu0 %v1367
      %2225 = vmatprep.subr.bf16.mxu0 0
      %2226 = vmatpush1.bf16.msra.mxu0 0
      %2227 = vmatprep.subr.bf16.mxu0 0
      %2228 = vmatpush1.bf16.msra.mxu0 0
      %2229 = vmatprep.subr.bf16.mxu0 0
      %2230 = vmatpush1.bf16.msra.mxu0 0
      %2231 = vmatprep.subr.bf16.mxu0 0
      %2232 = vmatpush1.bf16.msra.mxu0 0
      %2233 = vmatprep.subr.bf16.mxu0 0
      %2234 = vmatpush1.bf16.msra.mxu0 0
      %2235 = vmatprep.subr.bf16.mxu0 0
      %2236 = vmatpush1.bf16.msra.mxu0 0
      %2237 = vmatprep.subr.bf16.mxu0 0
      %2238 = vmatpush1.bf16.msra.mxu0 0
      %2239 = vmatprep.subr.bf16.mxu0 0
      %2240 = vmatpush1.bf16.msra.mxu0 0
      %2241 = vmatprep.mubr.bf16.mxu0 0
      %2242 = vmatmul.mubr.bf16.gmra.mrb[0].mxu0 %v94
      %v2243 = vpop.f32.mrb[0].mxu0
      %v2244 = vadd.f32 %v1722, %v2243
      %v2245 = vpop.f32.mrb[0].mxu0
      %v2246 = vadd.f32 %v1726, %v2245
      %v2247 = vpop.f32.mrb[0].mxu0
      %v2248 = vpop.f32.mrb[0].mxu0
      %2249 = vdwg.mxu0
      %2250 = vmatprep.subr.bf16.mxu0 %v1146
      %2251 = vmatpush1.bf16.msra.mxu0 %v1145
      %2252 = vmatprep.subr.bf16.mxu0 %v1178
      %2253 = vmatpush1.bf16.msra.mxu0 %v1177
      %2254 = vmatprep.subr.bf16.mxu0 %v1210
      %2255 = vmatpush1.bf16.msra.mxu0 %v1209
      %2256 = vmatprep.subr.bf16.mxu0 %v1242
      %2257 = vmatpush1.bf16.msra.mxu0 %v1241
      %2258 = vmatprep.subr.bf16.mxu0 %v1274
      %2259 = vmatpush1.bf16.msra.mxu0 %v1273
      %2260 = vmatprep.subr.bf16.mxu0 %v1306
      %2261 = vmatpush1.bf16.msra.mxu0 %v1305
      %2262 = vmatprep.subr.bf16.mxu0 %v1338
      %2263 = vmatpush1.bf16.msra.mxu0 %v1337
      %2264 = vmatprep.subr.bf16.mxu0 %v1370
      %2265 = vmatpush1.bf16.msra.mxu0 %v1369
      %2266 = vmatprep.subr.bf16.mxu0 0
      %2267 = vmatpush1.bf16.msra.mxu0 0
      %2268 = vmatprep.subr.bf16.mxu0 0
      %2269 = vmatpush1.bf16.msra.mxu0 0
      %2270 = vmatprep.subr.bf16.mxu0 0
      %2271 = vmatpush1.bf16.msra.mxu0 0
      %2272 = vmatprep.subr.bf16.mxu0 0
      %2273 = vmatpush1.bf16.msra.mxu0 0
      %2274 = vmatprep.subr.bf16.mxu0 0
      %2275 = vmatpush1.bf16.msra.mxu0 0
      %2276 = vmatprep.subr.bf16.mxu0 0
      %2277 = vmatpush1.bf16.msra.mxu0 0
      %2278 = vmatprep.subr.bf16.mxu0 0
      %2279 = vmatpush1.bf16.msra.mxu0 0
      %2280 = vmatprep.subr.bf16.mxu0 0
      %2281 = vmatpush1.bf16.msra.mxu0 0
      %2282 = vmatprep.mubr.bf16.mxu0 0
      %2283 = vmatmul.mubr.bf16.gmra.mrb[0].mxu0 %v94
      %v2284 = vpop.f32.mrb[0].mxu0
      %v2285 = vadd.f32 %v1730, %v2284
      %v2286 = vpop.f32.mrb[0].mxu0
      %v2287 = vadd.f32 %v1734, %v2286
      %v2288 = vpop.f32.mrb[0].mxu0
      %v2289 = vpop.f32.mrb[0].mxu0
      %2290 = vdwg.mxu0
      %2291 = vmatprep.subr.bf16.mxu0 %v1148
      %2292 = vmatpush1.bf16.msra.mxu0 %v1147
      %2293 = vmatprep.subr.bf16.mxu0 %v1180
      %2294 = vmatpush1.bf16.msra.mxu0 %v1179
      %2295 = vmatprep.subr.bf16.mxu0 %v1212
      %2296 = vmatpush1.bf16.msra.mxu0 %v1211
      %2297 = vmatprep.subr.bf16.mxu0 %v1244
      %2298 = vmatpush1.bf16.msra.mxu0 %v1243
      %2299 = vmatprep.subr.bf16.mxu0 %v1276
      %2300 = vmatpush1.bf16.msra.mxu0 %v1275
      %2301 = vmatprep.subr.bf16.mxu0 %v1308
      %2302 = vmatpush1.bf16.msra.mxu0 %v1307
      %2303 = vmatprep.subr.bf16.mxu0 %v1340
      %2304 = vmatpush1.bf16.msra.mxu0 %v1339
      %2305 = vmatprep.subr.bf16.mxu0 %v1372
      %2306 = vmatpush1.bf16.msra.mxu0 %v1371
      %2307 = vmatprep.subr.bf16.mxu0 0
      %2308 = vmatpush1.bf16.msra.mxu0 0
      %2309 = vmatprep.subr.bf16.mxu0 0
      %2310 = vmatpush1.bf16.msra.mxu0 0
      %2311 = vmatprep.subr.bf16.mxu0 0
      %2312 = vmatpush1.bf16.msra.mxu0 0
      %2313 = vmatprep.subr.bf16.mxu0 0
      %2314 = vmatpush1.bf16.msra.mxu0 0
      %2315 = vmatprep.subr.bf16.mxu0 0
      %2316 = vmatpush1.bf16.msra.mxu0 0
      %2317 = vmatprep.subr.bf16.mxu0 0
      %2318 = vmatpush1.bf16.msra.mxu0 0
      %2319 = vmatprep.subr.bf16.mxu0 0
      %2320 = vmatpush1.bf16.msra.mxu0 0
      %2321 = vmatprep.subr.bf16.mxu0 0
      %2322 = vmatpush1.bf16.msra.mxu0 0
      %2323 = vmatprep.mubr.bf16.mxu0 0
      %2324 = vmatmul.mubr.bf16.gmra.mrb[0].mxu0 %v94
      %v2325 = vpop.f32.mrb[0].mxu0
      %v2326 = vadd.f32 %v1738, %v2325
      %v2327 = vpop.f32.mrb[0].mxu0
      %v2328 = vadd.f32 %v1742, %v2327
      %v2329 = vpop.f32.mrb[0].mxu0
      %v2330 = vpop.f32.mrb[0].mxu0
      %2331 = vdwg.mxu0
      %2332 = vmatprep.subr.bf16.mxu0 %v1150
      %2333 = vmatpush1.bf16.msra.mxu0 %v1149
      %2334 = vmatprep.subr.bf16.mxu0 %v1182
      %2335 = vmatpush1.bf16.msra.mxu0 %v1181
      %2336 = vmatprep.subr.bf16.mxu0 %v1214
      %2337 = vmatpush1.bf16.msra.mxu0 %v1213
      %2338 = vmatprep.subr.bf16.mxu0 %v1246
      %2339 = vmatpush1.bf16.msra.mxu0 %v1245
      %2340 = vmatprep.subr.bf16.mxu0 %v1278
      %2341 = vmatpush1.bf16.msra.mxu0 %v1277
      %2342 = vmatprep.subr.bf16.mxu0 %v1310
      %2343 = vmatpush1.bf16.msra.mxu0 %v1309
      %2344 = vmatprep.subr.bf16.mxu0 %v1342
      %2345 = vmatpush1.bf16.msra.mxu0 %v1341
      %2346 = vmatprep.subr.bf16.mxu0 %v1374
      %2347 = vmatpush1.bf16.msra.mxu0 %v1373
      %2348 = vmatprep.subr.bf16.mxu0 0
      %2349 = vmatpush1.bf16.msra.mxu0 0
      %2350 = vmatprep.subr.bf16.mxu0 0
      %2351 = vmatpush1.bf16.msra.mxu0 0
      %2352 = vmatprep.subr.bf16.mxu0 0
      %2353 = vmatpush1.bf16.msra.mxu0 0
      %2354 = vmatprep.subr.bf16.mxu0 0
      %2355 = vmatpush1.bf16.msra.mxu0 0
      %2356 = vmatprep.subr.bf16.mxu0 0
      %2357 = vmatpush1.bf16.msra.mxu0 0
      %2358 = vmatprep.subr.bf16.mxu0 0
      %2359 = vmatpush1.bf16.msra.mxu0 0
      %2360 = vmatprep.subr.bf16.mxu0 0
      %2361 = vmatpush1.bf16.msra.mxu0 0
      %2362 = vmatprep.subr.bf16.mxu0 0
      %2363 = vmatpush1.bf16.msra.mxu0 0
      %2364 = vmatprep.mubr.bf16.mxu0 0
      %2365 = vmatmul.mubr.bf16.gmra.mrb[0].mxu0 %v94
      %v2366 = vpop.f32.mrb[0].mxu0
      %v2367 = vadd.f32 %v1746, %v2366
      %v2368 = vpop.f32.mrb[0].mxu0
      %v2369 = vadd.f32 %v1750, %v2368
      %v2370 = vpop.f32.mrb[0].mxu0
      %v2371 = vpop.f32.mrb[0].mxu0
      %2372 = vdwg.mxu0
      %2373 = vmatprep.subr.bf16.mxu0 %v1152
      %2374 = vmatpush1.bf16.msra.mxu0 %v1151
      %2375 = vmatprep.subr.bf16.mxu0 %v1184
      %2376 = vmatpush1.bf16.msra.mxu0 %v1183
      %2377 = vmatprep.subr.bf16.mxu0 %v1216
      %2378 = vmatpush1.bf16.msra.mxu0 %v1215
      %2379 = vmatprep.subr.bf16.mxu0 %v1248
      %2380 = vmatpush1.bf16.msra.mxu0 %v1247
      %2381 = vmatprep.subr.bf16.mxu0 %v1280
      %2382 = vmatpush1.bf16.msra.mxu0 %v1279
      %2383 = vmatprep.subr.bf16.mxu0 %v1312
      %2384 = vmatpush1.bf16.msra.mxu0 %v1311
      %2385 = vmatprep.subr.bf16.mxu0 %v1344
      %2386 = vmatpush1.bf16.msra.mxu0 %v1343
      %2387 = vmatprep.subr.bf16.mxu0 %v1376
      %2388 = vmatpush1.bf16.msra.mxu0 %v1375
      %2389 = vmatprep.subr.bf16.mxu0 0
      %2390 = vmatpush1.bf16.msra.mxu0 0
      %2391 = vmatprep.subr.bf16.mxu0 0
      %2392 = vmatpush1.bf16.msra.mxu0 0
      %2393 = vmatprep.subr.bf16.mxu0 0
      %2394 = vmatpush1.bf16.msra.mxu0 0
      %2395 = vmatprep.subr.bf16.mxu0 0
      %2396 = vmatpush1.bf16.msra.mxu0 0
      %2397 = vmatprep.subr.bf16.mxu0 0
      %2398 = vmatpush1.bf16.msra.mxu0 0
      %2399 = vmatprep.subr.bf16.mxu0 0
      %2400 = vmatpush1.bf16.msra.mxu0 0
      %2401 = vmatprep.subr.bf16.mxu0 0
      %2402 = vmatpush1.bf16.msra.mxu0 0
      %2403 = vmatprep.subr.bf16.mxu0 0
      %2404 = vmatpush1.bf16.msra.mxu0 0
      %2405 = vmatprep.mubr.bf16.mxu0 0
      %2406 = vmatmul.mubr.bf16.gmra.mrb[0].mxu0 %v94
      %v2407 = vpop.f32.mrb[0].mxu0
      %v2408 = vadd.f32 %v1754, %v2407
      %v2409 = vpop.f32.mrb[0].mxu0
      %v2410 = vadd.f32 %v1758, %v2409
      %v2411 = vpop.f32.mrb[0].mxu0
      %v2412 = vpop.f32.mrb[0].mxu0
      %2413 = vdwg.mxu0
      %2414 = vmatprep.subr.bf16.mxu0 %v1154
      %2415 = vmatpush1.bf16.msra.mxu0 %v1153
      %2416 = vmatprep.subr.bf16.mxu0 %v1186
      %2417 = vmatpush1.bf16.msra.mxu0 %v1185
      %2418 = vmatprep.subr.bf16.mxu0 %v1218
      %2419 = vmatpush1.bf16.msra.mxu0 %v1217
      %2420 = vmatprep.subr.bf16.mxu0 %v1250
      %2421 = vmatpush1.bf16.msra.mxu0 %v1249
      %2422 = vmatprep.subr.bf16.mxu0 %v1282
      %2423 = vmatpush1.bf16.msra.mxu0 %v1281
      %2424 = vmatprep.subr.bf16.mxu0 %v1314
      %2425 = vmatpush1.bf16.msra.mxu0 %v1313
      %2426 = vmatprep.subr.bf16.mxu0 %v1346
      %2427 = vmatpush1.bf16.msra.mxu0 %v1345
      %2428 = vmatprep.subr.bf16.mxu0 %v1378
      %2429 = vmatpush1.bf16.msra.mxu0 %v1377
      %2430 = vmatprep.subr.bf16.mxu0 0
      %2431 = vmatpush1.bf16.msra.mxu0 0
      %2432 = vmatprep.subr.bf16.mxu0 0
      %2433 = vmatpush1.bf16.msra.mxu0 0
      %2434 = vmatprep.subr.bf16.mxu0 0
      %2435 = vmatpush1.bf16.msra.mxu0 0
      %2436 = vmatprep.subr.bf16.mxu0 0
      %2437 = vmatpush1.bf16.msra.mxu0 0
      %2438 = vmatprep.subr.bf16.mxu0 0
      %2439 = vmatpush1.bf16.msra.mxu0 0
      %2440 = vmatprep.subr.bf16.mxu0 0
      %2441 = vmatpush1.bf16.msra.mxu0 0
      %2442 = vmatprep.subr.bf16.mxu0 0
      %2443 = vmatpush1.bf16.msra.mxu0 0
      %2444 = vmatprep.subr.bf16.mxu0 0
      %2445 = vmatpush1.bf16.msra.mxu0 0
      %2446 = vmatprep.mubr.bf16.mxu0 0
      %2447 = vmatmul.mubr.bf16.gmra.mrb[0].mxu0 %v94
      %v2448 = vpop.f32.mrb[0].mxu0
      %v2449 = vadd.f32 %v1762, %v2448
      %v2450 = vpop.f32.mrb[0].mxu0
      %v2451 = vadd.f32 %v1766, %v2450
      %v2452 = vpop.f32.mrb[0].mxu0
      %v2453 = vpop.f32.mrb[0].mxu0
      %2454 = vdwg.mxu0
      %v2455 = vmax.f32 %v1834, 0.0
      %v2456 = vmax.f32 %v1836, 0.0
      %v2457 = vmax.f32 %v1875, 0.0
      %v2458 = vmax.f32 %v1877, 0.0
      %v2459 = vmax.f32 %v1916, 0.0
      %v2460 = vmax.f32 %v1918, 0.0
      %v2461 = vmax.f32 %v1957, 0.0
      %v2462 = vmax.f32 %v1959, 0.0
      %v2463 = vmax.f32 %v1998, 0.0
      %v2464 = vmax.f32 %v2000, 0.0
      %v2465 = vmax.f32 %v2039, 0.0
      %v2466 = vmax.f32 %v2041, 0.0
      %v2467 = vmax.f32 %v2080, 0.0
      %v2468 = vmax.f32 %v2082, 0.0
      %v2469 = vmax.f32 %v2121, 0.0
      %v2470 = vmax.f32 %v2123, 0.0
      %v2471 = vmax.f32 %v2162, 0.0
      %v2472 = vmax.f32 %v2164, 0.0
      %v2473 = vmax.f32 %v2203, 0.0
      %v2474 = vmax.f32 %v2205, 0.0
      %v2475 = vmax.f32 %v2244, 0.0
      %v2476 = vmax.f32 %v2246, 0.0
      %v2477 = vmax.f32 %v2285, 0.0
      %v2478 = vmax.f32 %v2287, 0.0
      %v2479 = vmax.f32 %v2326, 0.0
      %v2480 = vmax.f32 %v2328, 0.0
      %v2481 = vmax.f32 %v2367, 0.0
      %v2482 = vmax.f32 %v2369, 0.0
      %v2483 = vmax.f32 %v2408, 0.0
      %v2484 = vmax.f32 %v2410, 0.0
      %v2485 = vmax.f32 %v2449, 0.0
      %v2486 = vmax.f32 %v2451, 0.0
      %v2487 = vpack.c.bf16 %v2455, %v2455
      %v2488 = vpack.c.bf16 %v2456, %v2456
      %v2489 = vpack.c.bf16 %v2457, %v2457
      %v2490 = vpack.c.bf16 %v2458, %v2458
      %v2491 = vpack.c.bf16 %v2459, %v2459
      %v2492 = vpack.c.bf16 %v2460, %v2460
      %v2493 = vpack.c.bf16 %v2461, %v2461
      %v2494 = vpack.c.bf16 %v2462, %v2462
      %v2495 = vpack.c.bf16 %v2463, %v2463
      %v2496 = vpack.c.bf16 %v2464, %v2464
      %v2497 = vpack.c.bf16 %v2465, %v2465
      %v2498 = vpack.c.bf16 %v2466, %v2466
      %v2499 = vpack.c.bf16 %v2467, %v2467
      %v2500 = vpack.c.bf16 %v2468, %v2468
      %v2501 = vpack.c.bf16 %v2469, %v2469
      %v2502 = vpack.c.bf16 %v2470, %v2470
      %v2503 = vpack.c.bf16 %v2471, %v2471
      %v2504 = vpack.c.bf16 %v2472, %v2472
      %v2505 = vpack.c.bf16 %v2473, %v2473
      %v2506 = vpack.c.bf16 %v2474, %v2474
      %v2507 = vpack.c.bf16 %v2475, %v2475
      %v2508 = vpack.c.bf16 %v2476, %v2476
      %v2509 = vpack.c.bf16 %v2477, %v2477
      %v2510 = vpack.c.bf16 %v2478, %v2478
      %v2511 = vpack.c.bf16 %v2479, %v2479
      %v2512 = vpack.c.bf16 %v2480, %v2480
      %v2513 = vpack.c.bf16 %v2481, %v2481
      %v2514 = vpack.c.bf16 %v2482, %v2482
      %v2515 = vpack.c.bf16 %v2483, %v2483
      %v2516 = vpack.c.bf16 %v2484, %v2484
      %v2517 = vpack.c.bf16 %v2485, %v2485
      %v2518 = vpack.c.bf16 %v2486, %v2486
      %v2519 = vld [vmem:[#allocation9] sm:$0xf]
      %v2520 = vld [vmem:[#allocation9 + $0x4] sm:$0xf]
      %v2521 = vld [vmem:[#allocation9 + $0x8] sm:$0xf]
      %v2522 = vld [vmem:[#allocation9 + $0xc] sm:$0xf]
      %v2523 = vld [vmem:[#allocation9 + $0x10] sm:$0xf]
      %v2524 = vld [vmem:[#allocation9 + $0x14] sm:$0xf]
      %v2525 = vld [vmem:[#allocation9 + $0x18] sm:$0xf]
      %v2526 = vld [vmem:[#allocation9 + $0x1c] sm:$0xf]
      %v2527 = vld [vmem:[#allocation9 + $0x20] sm:$0xf]
      %v2528 = vld [vmem:[#allocation9 + $0x24] sm:$0xf]
      %v2529 = vld [vmem:[#allocation9 + $0x28] sm:$0xf]
      %v2530 = vld [vmem:[#allocation9 + $0x2c] sm:$0xf]
      %v2531 = vld [vmem:[#allocation9 + $0x30] sm:$0xf]
      %v2532 = vld [vmem:[#allocation9 + $0x34] sm:$0xf]
      %v2533 = vld [vmem:[#allocation9 + $0x38] sm:$0xf]
      %v2534 = vld [vmem:[#allocation9 + $0x3c] sm:$0xf]
      %v2535 = vld [vmem:[#allocation9 + $0x40] sm:$0xf]
      %v2536 = vld [vmem:[#allocation9 + $0x44] sm:$0xf]
      %v2537 = vld [vmem:[#allocation9 + $0x48] sm:$0xf]
      %v2538 = vld [vmem:[#allocation9 + $0x4c] sm:$0xf]
      %v2539 = vld [vmem:[#allocation9 + $0x50] sm:$0xf]
      %v2540 = vld [vmem:[#allocation9 + $0x54] sm:$0xf]
      %v2541 = vld [vmem:[#allocation9 + $0x58] sm:$0xf]
      %v2542 = vld [vmem:[#allocation9 + $0x5c] sm:$0xf]
      %v2543 = vld [vmem:[#allocation9 + $0x60] sm:$0xf]
      %v2544 = vld [vmem:[#allocation9 + $0x64] sm:$0xf]
      %v2545 = vld [vmem:[#allocation9 + $0x68] sm:$0xf]
      %v2546 = vld [vmem:[#allocation9 + $0x6c] sm:$0xf]
      %v2547 = vld [vmem:[#allocation9 + $0x70] sm:$0xf]
      %v2548 = vld [vmem:[#allocation9 + $0x74] sm:$0xf]
      %v2549 = vld [vmem:[#allocation9 + $0x78] sm:$0xf]
      %v2550 = vld [vmem:[#allocation9 + $0x7c] sm:$0xf]
      %v2551 = vld [vmem:[#allocation9 + $0x80] sm:$0xf]
      %v2552 = vld [vmem:[#allocation9 + $0x84] sm:$0xf]
      %v2553 = vld [vmem:[#allocation9 + $0x88] sm:$0xf]
      %v2554 = vld [vmem:[#allocation9 + $0x8c] sm:$0xf]
      %v2555 = vld [vmem:[#allocation9 + $0x90] sm:$0xf]
      %v2556 = vld [vmem:[#allocation9 + $0x94] sm:$0xf]
      %v2557 = vld [vmem:[#allocation9 + $0x98] sm:$0xf]
      %v2558 = vld [vmem:[#allocation9 + $0x9c] sm:$0xf]
      %v2559 = vld [vmem:[#allocation9 + $0xa0] sm:$0xf]
      %v2560 = vld [vmem:[#allocation9 + $0xa4] sm:$0xf]
      %v2561 = vld [vmem:[#allocation9 + $0xa8] sm:$0xf]
      %v2562 = vld [vmem:[#allocation9 + $0xac] sm:$0xf]
      %v2563 = vld [vmem:[#allocation9 + $0xb0] sm:$0xf]
      %v2564 = vld [vmem:[#allocation9 + $0xb4] sm:$0xf]
      %v2565 = vld [vmem:[#allocation9 + $0xb8] sm:$0xf]
      %v2566 = vld [vmem:[#allocation9 + $0xbc] sm:$0xf]
      %v2567 = vld [vmem:[#allocation9 + $0xc0] sm:$0xf]
      %v2568 = vld [vmem:[#allocation9 + $0xc4] sm:$0xf]
      %v2569 = vld [vmem:[#allocation9 + $0xc8] sm:$0xf]
      %v2570 = vld [vmem:[#allocation9 + $0xcc] sm:$0xf]
      %v2571 = vld [vmem:[#allocation9 + $0xd0] sm:$0xf]
      %v2572 = vld [vmem:[#allocation9 + $0xd4] sm:$0xf]
      %v2573 = vld [vmem:[#allocation9 + $0xd8] sm:$0xf]
      %v2574 = vld [vmem:[#allocation9 + $0xdc] sm:$0xf]
      %v2575 = vld [vmem:[#allocation9 + $0xe0] sm:$0xf]
      %v2576 = vld [vmem:[#allocation9 + $0xe4] sm:$0xf]
      %v2577 = vld [vmem:[#allocation9 + $0xe8] sm:$0xf]
      %v2578 = vld [vmem:[#allocation9 + $0xec] sm:$0xf]
      %v2579 = vld [vmem:[#allocation9 + $0xf0] sm:$0xf]
      %v2580 = vld [vmem:[#allocation9 + $0xf4] sm:$0xf]
      %v2581 = vld [vmem:[#allocation9 + $0xf8] sm:$0xf]
      %v2582 = vld [vmem:[#allocation9 + $0xfc] sm:$0xf]
      %v2583 = vld [vmem:[#allocation9 + $0x100] sm:$0xf]
      %v2584 = vld [vmem:[#allocation9 + $0x104] sm:$0xf]
      %v2585 = vld [vmem:[#allocation9 + $0x108] sm:$0xf]
      %v2586 = vld [vmem:[#allocation9 + $0x10c] sm:$0xf]
      %v2587 = vld [vmem:[#allocation9 + $0x110] sm:$0xf]
      %v2588 = vld [vmem:[#allocation9 + $0x114] sm:$0xf]
      %v2589 = vld [vmem:[#allocation9 + $0x118] sm:$0xf]
      %v2590 = vld [vmem:[#allocation9 + $0x11c] sm:$0xf]
      %v2591 = vld [vmem:[#allocation9 + $0x120] sm:$0xf]
      %v2592 = vld [vmem:[#allocation9 + $0x124] sm:$0xf]
      %v2593 = vld [vmem:[#allocation9 + $0x128] sm:$0xf]
      %v2594 = vld [vmem:[#allocation9 + $0x12c] sm:$0xf]
      %v2595 = vld [vmem:[#allocation9 + $0x130] sm:$0xf]
      %v2596 = vld [vmem:[#allocation9 + $0x134] sm:$0xf]
      %v2597 = vld [vmem:[#allocation9 + $0x138] sm:$0xf]
      %v2598 = vld [vmem:[#allocation9 + $0x13c] sm:$0xf]
      %v2599 = vld [vmem:[#allocation9 + $0x140] sm:$0xf]
      %v2600 = vld [vmem:[#allocation9 + $0x144] sm:$0xf]
      %v2601 = vld [vmem:[#allocation9 + $0x148] sm:$0xf]
      %v2602 = vld [vmem:[#allocation9 + $0x14c] sm:$0xf]
      %v2603 = vld [vmem:[#allocation9 + $0x150] sm:$0xf]
      %v2604 = vld [vmem:[#allocation9 + $0x154] sm:$0xf]
      %v2605 = vld [vmem:[#allocation9 + $0x158] sm:$0xf]
      %v2606 = vld [vmem:[#allocation9 + $0x15c] sm:$0xf]
      %v2607 = vld [vmem:[#allocation9 + $0x160] sm:$0xf]
      %v2608 = vld [vmem:[#allocation9 + $0x164] sm:$0xf]
      %v2609 = vld [vmem:[#allocation9 + $0x168] sm:$0xf]
      %v2610 = vld [vmem:[#allocation9 + $0x16c] sm:$0xf]
      %v2611 = vld [vmem:[#allocation9 + $0x170] sm:$0xf]
      %v2612 = vld [vmem:[#allocation9 + $0x174] sm:$0xf]
      %v2613 = vld [vmem:[#allocation9 + $0x178] sm:$0xf]
      %v2614 = vld [vmem:[#allocation9 + $0x17c] sm:$0xf]
      %v2615 = vld [vmem:[#allocation9 + $0x180] sm:$0xf]
      %v2616 = vld [vmem:[#allocation9 + $0x184] sm:$0xf]
      %v2617 = vld [vmem:[#allocation9 + $0x188] sm:$0xf]
      %v2618 = vld [vmem:[#allocation9 + $0x18c] sm:$0xf]
      %v2619 = vld [vmem:[#allocation9 + $0x190] sm:$0xf]
      %v2620 = vld [vmem:[#allocation9 + $0x194] sm:$0xf]
      %v2621 = vld [vmem:[#allocation9 + $0x198] sm:$0xf]
      %v2622 = vld [vmem:[#allocation9 + $0x19c] sm:$0xf]
      %v2623 = vld [vmem:[#allocation9 + $0x1a0] sm:$0xf]
      %v2624 = vld [vmem:[#allocation9 + $0x1a4] sm:$0xf]
      %v2625 = vld [vmem:[#allocation9 + $0x1a8] sm:$0xf]
      %v2626 = vld [vmem:[#allocation9 + $0x1ac] sm:$0xf]
      %v2627 = vld [vmem:[#allocation9 + $0x1b0] sm:$0xf]
      %v2628 = vld [vmem:[#allocation9 + $0x1b4] sm:$0xf]
      %v2629 = vld [vmem:[#allocation9 + $0x1b8] sm:$0xf]
      %v2630 = vld [vmem:[#allocation9 + $0x1bc] sm:$0xf]
      %v2631 = vld [vmem:[#allocation9 + $0x1c0] sm:$0xf]
      %v2632 = vld [vmem:[#allocation9 + $0x1c4] sm:$0xf]
      %v2633 = vld [vmem:[#allocation9 + $0x1c8] sm:$0xf]
      %v2634 = vld [vmem:[#allocation9 + $0x1cc] sm:$0xf]
      %v2635 = vld [vmem:[#allocation9 + $0x1d0] sm:$0xf]
      %v2636 = vld [vmem:[#allocation9 + $0x1d4] sm:$0xf]
      %v2637 = vld [vmem:[#allocation9 + $0x1d8] sm:$0xf]
      %v2638 = vld [vmem:[#allocation9 + $0x1dc] sm:$0xf]
      %v2639 = vld [vmem:[#allocation9 + $0x1e0] sm:$0xf]
      %v2640 = vld [vmem:[#allocation9 + $0x1e4] sm:$0xf]
      %v2641 = vld [vmem:[#allocation9 + $0x1e8] sm:$0xf]
      %v2642 = vld [vmem:[#allocation9 + $0x1ec] sm:$0xf]
      %v2643 = vld [vmem:[#allocation9 + $0x1f0] sm:$0xf]
      %v2644 = vld [vmem:[#allocation9 + $0x1f4] sm:$0xf]
      %v2645 = vld [vmem:[#allocation9 + $0x1f8] sm:$0xf]
      %v2646 = vld [vmem:[#allocation9 + $0x1fc] sm:$0xf]
      %v2647 = vld [vmem:[#allocation9 + $0x200] sm:$0xf]
      %v2648 = vld [vmem:[#allocation9 + $0x204] sm:$0xf]
      %v2649 = vld [vmem:[#allocation9 + $0x208] sm:$0xf]
      %v2650 = vld [vmem:[#allocation9 + $0x20c] sm:$0xf]
      %v2651 = vld [vmem:[#allocation9 + $0x210] sm:$0xf]
      %v2652 = vld [vmem:[#allocation9 + $0x214] sm:$0xf]
      %v2653 = vld [vmem:[#allocation9 + $0x218] sm:$0xf]
      %v2654 = vld [vmem:[#allocation9 + $0x21c] sm:$0xf]
      %v2655 = vld [vmem:[#allocation9 + $0x220] sm:$0xf]
      %v2656 = vld [vmem:[#allocation9 + $0x224] sm:$0xf]
      %v2657 = vld [vmem:[#allocation9 + $0x228] sm:$0xf]
      %v2658 = vld [vmem:[#allocation9 + $0x22c] sm:$0xf]
      %v2659 = vld [vmem:[#allocation9 + $0x230] sm:$0xf]
      %v2660 = vld [vmem:[#allocation9 + $0x234] sm:$0xf]
      %v2661 = vld [vmem:[#allocation9 + $0x238] sm:$0xf]
      %v2662 = vld [vmem:[#allocation9 + $0x23c] sm:$0xf]
      %v2663 = vld [vmem:[#allocation9 + $0x240] sm:$0xf]
      %v2664 = vld [vmem:[#allocation9 + $0x244] sm:$0xf]
      %v2665 = vld [vmem:[#allocation9 + $0x248] sm:$0xf]
      %v2666 = vld [vmem:[#allocation9 + $0x24c] sm:$0xf]
      %v2667 = vld [vmem:[#allocation9 + $0x250] sm:$0xf]
      %v2668 = vld [vmem:[#allocation9 + $0x254] sm:$0xf]
      %v2669 = vld [vmem:[#allocation9 + $0x258] sm:$0xf]
      %v2670 = vld [vmem:[#allocation9 + $0x25c] sm:$0xf]
      %v2671 = vld [vmem:[#allocation9 + $0x260] sm:$0xf]
      %v2672 = vld [vmem:[#allocation9 + $0x264] sm:$0xf]
      %v2673 = vld [vmem:[#allocation9 + $0x268] sm:$0xf]
      %v2674 = vld [vmem:[#allocation9 + $0x26c] sm:$0xf]
      %v2675 = vld [vmem:[#allocation9 + $0x270] sm:$0xf]
      %v2676 = vld [vmem:[#allocation9 + $0x274] sm:$0xf]
      %v2677 = vld [vmem:[#allocation9 + $0x278] sm:$0xf]
      %v2678 = vld [vmem:[#allocation9 + $0x27c] sm:$0xf]
      %v2679 = vld [vmem:[#allocation9 + $0x280] sm:$0xf]
      %v2680 = vld [vmem:[#allocation9 + $0x284] sm:$0xf]
      %v2681 = vld [vmem:[#allocation9 + $0x288] sm:$0xf]
      %v2682 = vld [vmem:[#allocation9 + $0x28c] sm:$0xf]
      %v2683 = vld [vmem:[#allocation9 + $0x290] sm:$0xf]
      %v2684 = vld [vmem:[#allocation9 + $0x294] sm:$0xf]
      %v2685 = vld [vmem:[#allocation9 + $0x298] sm:$0xf]
      %v2686 = vld [vmem:[#allocation9 + $0x29c] sm:$0xf]
      %v2687 = vld [vmem:[#allocation9 + $0x2a0] sm:$0xf]
      %v2688 = vld [vmem:[#allocation9 + $0x2a4] sm:$0xf]
      %v2689 = vld [vmem:[#allocation9 + $0x2a8] sm:$0xf]
      %v2690 = vld [vmem:[#allocation9 + $0x2ac] sm:$0xf]
      %v2691 = vld [vmem:[#allocation9 + $0x2b0] sm:$0xf]
      %v2692 = vld [vmem:[#allocation9 + $0x2b4] sm:$0xf]
      %v2693 = vld [vmem:[#allocation9 + $0x2b8] sm:$0xf]
      %v2694 = vld [vmem:[#allocation9 + $0x2bc] sm:$0xf]
      %v2695 = vld [vmem:[#allocation9 + $0x2c0] sm:$0xf]
      %v2696 = vld [vmem:[#allocation9 + $0x2c4] sm:$0xf]
      %v2697 = vld [vmem:[#allocation9 + $0x2c8] sm:$0xf]
      %v2698 = vld [vmem:[#allocation9 + $0x2cc] sm:$0xf]
      %v2699 = vld [vmem:[#allocation9 + $0x2d0] sm:$0xf]
      %v2700 = vld [vmem:[#allocation9 + $0x2d4] sm:$0xf]
      %v2701 = vld [vmem:[#allocation9 + $0x2d8] sm:$0xf]
      %v2702 = vld [vmem:[#allocation9 + $0x2dc] sm:$0xf]
      %v2703 = vld [vmem:[#allocation9 + $0x2e0] sm:$0xf]
      %v2704 = vld [vmem:[#allocation9 + $0x2e4] sm:$0xf]
      %v2705 = vld [vmem:[#allocation9 + $0x2e8] sm:$0xf]
      %v2706 = vld [vmem:[#allocation9 + $0x2ec] sm:$0xf]
      %v2707 = vld [vmem:[#allocation9 + $0x2f0] sm:$0xf]
      %v2708 = vld [vmem:[#allocation9 + $0x2f4] sm:$0xf]
      %v2709 = vld [vmem:[#allocation9 + $0x2f8] sm:$0xf]
      %v2710 = vld [vmem:[#allocation9 + $0x2fc] sm:$0xf]
      %v2711 = vld [vmem:[#allocation9 + $0x300] sm:$0xf]
      %v2712 = vld [vmem:[#allocation9 + $0x304] sm:$0xf]
      %v2713 = vld [vmem:[#allocation9 + $0x308] sm:$0xf]
      %v2714 = vld [vmem:[#allocation9 + $0x30c] sm:$0xf]
      %v2715 = vld [vmem:[#allocation9 + $0x310] sm:$0xf]
      %v2716 = vld [vmem:[#allocation9 + $0x314] sm:$0xf]
      %v2717 = vld [vmem:[#allocation9 + $0x318] sm:$0xf]
      %v2718 = vld [vmem:[#allocation9 + $0x31c] sm:$0xf]
      %v2719 = vld [vmem:[#allocation9 + $0x320] sm:$0xf]
      %v2720 = vld [vmem:[#allocation9 + $0x324] sm:$0xf]
      %v2721 = vld [vmem:[#allocation9 + $0x328] sm:$0xf]
      %v2722 = vld [vmem:[#allocation9 + $0x32c] sm:$0xf]
      %v2723 = vld [vmem:[#allocation9 + $0x330] sm:$0xf]
      %v2724 = vld [vmem:[#allocation9 + $0x334] sm:$0xf]
      %v2725 = vld [vmem:[#allocation9 + $0x338] sm:$0xf]
      %v2726 = vld [vmem:[#allocation9 + $0x33c] sm:$0xf]
      %v2727 = vld [vmem:[#allocation9 + $0x340] sm:$0xf]
      %v2728 = vld [vmem:[#allocation9 + $0x344] sm:$0xf]
      %v2729 = vld [vmem:[#allocation9 + $0x348] sm:$0xf]
      %v2730 = vld [vmem:[#allocation9 + $0x34c] sm:$0xf]
      %v2731 = vld [vmem:[#allocation9 + $0x350] sm:$0xf]
      %v2732 = vld [vmem:[#allocation9 + $0x354] sm:$0xf]
      %v2733 = vld [vmem:[#allocation9 + $0x358] sm:$0xf]
      %v2734 = vld [vmem:[#allocation9 + $0x35c] sm:$0xf]
      %v2735 = vld [vmem:[#allocation9 + $0x360] sm:$0xf]
      %v2736 = vld [vmem:[#allocation9 + $0x364] sm:$0xf]
      %v2737 = vld [vmem:[#allocation9 + $0x368] sm:$0xf]
      %v2738 = vld [vmem:[#allocation9 + $0x36c] sm:$0xf]
      %v2739 = vld [vmem:[#allocation9 + $0x370] sm:$0xf]
      %v2740 = vld [vmem:[#allocation9 + $0x374] sm:$0xf]
      %v2741 = vld [vmem:[#allocation9 + $0x378] sm:$0xf]
      %v2742 = vld [vmem:[#allocation9 + $0x37c] sm:$0xf]
      %v2743 = vld [vmem:[#allocation9 + $0x380] sm:$0xf]
      %v2744 = vld [vmem:[#allocation9 + $0x384] sm:$0xf]
      %v2745 = vld [vmem:[#allocation9 + $0x388] sm:$0xf]
      %v2746 = vld [vmem:[#allocation9 + $0x38c] sm:$0xf]
      %v2747 = vld [vmem:[#allocation9 + $0x390] sm:$0xf]
      %v2748 = vld [vmem:[#allocation9 + $0x394] sm:$0xf]
      %v2749 = vld [vmem:[#allocation9 + $0x398] sm:$0xf]
      %v2750 = vld [vmem:[#allocation9 + $0x39c] sm:$0xf]
      %v2751 = vld [vmem:[#allocation9 + $0x3a0] sm:$0xf]
      %v2752 = vld [vmem:[#allocation9 + $0x3a4] sm:$0xf]
      %v2753 = vld [vmem:[#allocation9 + $0x3a8] sm:$0xf]
      %v2754 = vld [vmem:[#allocation9 + $0x3ac] sm:$0xf]
      %v2755 = vld [vmem:[#allocation9 + $0x3b0] sm:$0xf]
      %v2756 = vld [vmem:[#allocation9 + $0x3b4] sm:$0xf]
      %v2757 = vld [vmem:[#allocation9 + $0x3b8] sm:$0xf]
      %v2758 = vld [vmem:[#allocation9 + $0x3bc] sm:$0xf]
      %v2759 = vld [vmem:[#allocation9 + $0x3c0] sm:$0xf]
      %v2760 = vld [vmem:[#allocation9 + $0x3c4] sm:$0xf]
      %v2761 = vld [vmem:[#allocation9 + $0x3c8] sm:$0xf]
      %v2762 = vld [vmem:[#allocation9 + $0x3cc] sm:$0xf]
      %v2763 = vld [vmem:[#allocation9 + $0x3d0] sm:$0xf]
      %v2764 = vld [vmem:[#allocation9 + $0x3d4] sm:$0xf]
      %v2765 = vld [vmem:[#allocation9 + $0x3d8] sm:$0xf]
      %v2766 = vld [vmem:[#allocation9 + $0x3dc] sm:$0xf]
      %v2767 = vld [vmem:[#allocation9 + $0x3e0] sm:$0xf]
      %v2768 = vld [vmem:[#allocation9 + $0x3e4] sm:$0xf]
      %v2769 = vld [vmem:[#allocation9 + $0x3e8] sm:$0xf]
      %v2770 = vld [vmem:[#allocation9 + $0x3ec] sm:$0xf]
      %v2771 = vld [vmem:[#allocation9 + $0x3f0] sm:$0xf]
      %v2772 = vld [vmem:[#allocation9 + $0x3f4] sm:$0xf]
      %v2773 = vld [vmem:[#allocation9 + $0x3f8] sm:$0xf]
      %v2774 = vld [vmem:[#allocation9 + $0x3fc] sm:$0xf]
      %v2775 = vld [vmem:[#allocation9 + $0x400] sm:$0xf]
      %v2776 = vld [vmem:[#allocation9 + $0x404] sm:$0xf]
      %v2777 = vld [vmem:[#allocation9 + $0x408] sm:$0xf]
      %v2778 = vld [vmem:[#allocation9 + $0x40c] sm:$0xf]
      %v2779 = vld [vmem:[#allocation9 + $0x410] sm:$0xf]
      %v2780 = vld [vmem:[#allocation9 + $0x414] sm:$0xf]
      %v2781 = vld [vmem:[#allocation9 + $0x418] sm:$0xf]
      %v2782 = vld [vmem:[#allocation9 + $0x41c] sm:$0xf]
      %v2783 = vld [vmem:[#allocation9 + $0x420] sm:$0xf]
      %v2784 = vld [vmem:[#allocation9 + $0x424] sm:$0xf]
      %v2785 = vld [vmem:[#allocation9 + $0x428] sm:$0xf]
      %v2786 = vld [vmem:[#allocation9 + $0x42c] sm:$0xf]
      %v2787 = vld [vmem:[#allocation9 + $0x430] sm:$0xf]
      %v2788 = vld [vmem:[#allocation9 + $0x434] sm:$0xf]
      %v2789 = vld [vmem:[#allocation9 + $0x438] sm:$0xf]
      %v2790 = vld [vmem:[#allocation9 + $0x43c] sm:$0xf]
      %v2791 = vld [vmem:[#allocation9 + $0x440] sm:$0xf]
      %v2792 = vld [vmem:[#allocation9 + $0x444] sm:$0xf]
      %v2793 = vld [vmem:[#allocation9 + $0x448] sm:$0xf]
      %v2794 = vld [vmem:[#allocation9 + $0x44c] sm:$0xf]
      %v2795 = vld [vmem:[#allocation9 + $0x450] sm:$0xf]
      %v2796 = vld [vmem:[#allocation9 + $0x454] sm:$0xf]
      %v2797 = vld [vmem:[#allocation9 + $0x458] sm:$0xf]
      %v2798 = vld [vmem:[#allocation9 + $0x45c] sm:$0xf]
      %v2799 = vld [vmem:[#allocation9 + $0x460] sm:$0xf]
      %v2800 = vld [vmem:[#allocation9 + $0x464] sm:$0xf]
      %v2801 = vld [vmem:[#allocation9 + $0x468] sm:$0xf]
      %v2802 = vld [vmem:[#allocation9 + $0x46c] sm:$0xf]
      %v2803 = vld [vmem:[#allocation9 + $0x470] sm:$0xf]
      %v2804 = vld [vmem:[#allocation9 + $0x474] sm:$0xf]
      %v2805 = vld [vmem:[#allocation9 + $0x478] sm:$0xf]
      %v2806 = vld [vmem:[#allocation9 + $0x47c] sm:$0xf]
      %v2807 = vld [vmem:[#allocation9 + $0x480] sm:$0xf]
      %v2808 = vld [vmem:[#allocation9 + $0x484] sm:$0xf]
      %v2809 = vld [vmem:[#allocation9 + $0x488] sm:$0xf]
      %v2810 = vld [vmem:[#allocation9 + $0x48c] sm:$0xf]
      %v2811 = vld [vmem:[#allocation9 + $0x490] sm:$0xf]
      %v2812 = vld [vmem:[#allocation9 + $0x494] sm:$0xf]
      %v2813 = vld [vmem:[#allocation9 + $0x498] sm:$0xf]
      %v2814 = vld [vmem:[#allocation9 + $0x49c] sm:$0xf]
      %v2815 = vld [vmem:[#allocation9 + $0x4a0] sm:$0xf]
      %v2816 = vld [vmem:[#allocation9 + $0x4a4] sm:$0xf]
      %v2817 = vld [vmem:[#allocation9 + $0x4a8] sm:$0xf]
      %v2818 = vld [vmem:[#allocation9 + $0x4ac] sm:$0xf]
      %v2819 = vld [vmem:[#allocation9 + $0x4b0] sm:$0xf]
      %v2820 = vld [vmem:[#allocation9 + $0x4b4] sm:$0xf]
      %v2821 = vld [vmem:[#allocation9 + $0x4b8] sm:$0xf]
      %v2822 = vld [vmem:[#allocation9 + $0x4bc] sm:$0xf]
      %v2823 = vld [vmem:[#allocation9 + $0x4c0] sm:$0xf]
      %v2824 = vld [vmem:[#allocation9 + $0x4c4] sm:$0xf]
      %v2825 = vld [vmem:[#allocation9 + $0x4c8] sm:$0xf]
      %v2826 = vld [vmem:[#allocation9 + $0x4cc] sm:$0xf]
      %v2827 = vld [vmem:[#allocation9 + $0x4d0] sm:$0xf]
      %v2828 = vld [vmem:[#allocation9 + $0x4d4] sm:$0xf]
      %v2829 = vld [vmem:[#allocation9 + $0x4d8] sm:$0xf]
      %v2830 = vld [vmem:[#allocation9 + $0x4dc] sm:$0xf]
      %v2831 = vld [vmem:[#allocation9 + $0x4e0] sm:$0xf]
      %v2832 = vld [vmem:[#allocation9 + $0x4e4] sm:$0xf]
      %v2833 = vld [vmem:[#allocation9 + $0x4e8] sm:$0xf]
      %v2834 = vld [vmem:[#allocation9 + $0x4ec] sm:$0xf]
      %v2835 = vld [vmem:[#allocation9 + $0x4f0] sm:$0xf]
      %v2836 = vld [vmem:[#allocation9 + $0x4f4] sm:$0xf]
      %v2837 = vld [vmem:[#allocation9 + $0x4f8] sm:$0xf]
      %v2838 = vld [vmem:[#allocation9 + $0x4fc] sm:$0xf]
      %v2839 = vld [vmem:[#allocation9 + $0x500] sm:$0xf]
      %v2840 = vld [vmem:[#allocation9 + $0x504] sm:$0xf]
      %v2841 = vld [vmem:[#allocation9 + $0x508] sm:$0xf]
      %v2842 = vld [vmem:[#allocation9 + $0x50c] sm:$0xf]
      %v2843 = vld [vmem:[#allocation9 + $0x510] sm:$0xf]
      %v2844 = vld [vmem:[#allocation9 + $0x514] sm:$0xf]
      %v2845 = vld [vmem:[#allocation9 + $0x518] sm:$0xf]
      %v2846 = vld [vmem:[#allocation9 + $0x51c] sm:$0xf]
      %v2847 = vld [vmem:[#allocation9 + $0x520] sm:$0xf]
      %v2848 = vld [vmem:[#allocation9 + $0x524] sm:$0xf]
      %v2849 = vld [vmem:[#allocation9 + $0x528] sm:$0xf]
      %v2850 = vld [vmem:[#allocation9 + $0x52c] sm:$0xf]
      %v2851 = vld [vmem:[#allocation9 + $0x530] sm:$0xf]
      %v2852 = vld [vmem:[#allocation9 + $0x534] sm:$0xf]
      %v2853 = vld [vmem:[#allocation9 + $0x538] sm:$0xf]
      %v2854 = vld [vmem:[#allocation9 + $0x53c] sm:$0xf]
      %v2855 = vld [vmem:[#allocation9 + $0x540] sm:$0xf]
      %v2856 = vld [vmem:[#allocation9 + $0x544] sm:$0xf]
      %v2857 = vld [vmem:[#allocation9 + $0x548] sm:$0xf]
      %v2858 = vld [vmem:[#allocation9 + $0x54c] sm:$0xf]
      %v2859 = vld [vmem:[#allocation9 + $0x550] sm:$0xf]
      %v2860 = vld [vmem:[#allocation9 + $0x554] sm:$0xf]
      %v2861 = vld [vmem:[#allocation9 + $0x558] sm:$0xf]
      %v2862 = vld [vmem:[#allocation9 + $0x55c] sm:$0xf]
      %v2863 = vld [vmem:[#allocation9 + $0x560] sm:$0xf]
      %v2864 = vld [vmem:[#allocation9 + $0x564] sm:$0xf]
      %v2865 = vld [vmem:[#allocation9 + $0x568] sm:$0xf]
      %v2866 = vld [vmem:[#allocation9 + $0x56c] sm:$0xf]
      %v2867 = vld [vmem:[#allocation9 + $0x570] sm:$0xf]
      %v2868 = vld [vmem:[#allocation9 + $0x574] sm:$0xf]
      %v2869 = vld [vmem:[#allocation9 + $0x578] sm:$0xf]
      %v2870 = vld [vmem:[#allocation9 + $0x57c] sm:$0xf]
      %v2871 = vld [vmem:[#allocation9 + $0x580] sm:$0xf]
      %v2872 = vld [vmem:[#allocation9 + $0x584] sm:$0xf]
      %v2873 = vld [vmem:[#allocation9 + $0x588] sm:$0xf]
      %v2874 = vld [vmem:[#allocation9 + $0x58c] sm:$0xf]
      %v2875 = vld [vmem:[#allocation9 + $0x590] sm:$0xf]
      %v2876 = vld [vmem:[#allocation9 + $0x594] sm:$0xf]
      %v2877 = vld [vmem:[#allocation9 + $0x598] sm:$0xf]
      %v2878 = vld [vmem:[#allocation9 + $0x59c] sm:$0xf]
      %v2879 = vld [vmem:[#allocation9 + $0x5a0] sm:$0xf]
      %v2880 = vld [vmem:[#allocation9 + $0x5a4] sm:$0xf]
      %v2881 = vld [vmem:[#allocation9 + $0x5a8] sm:$0xf]
      %v2882 = vld [vmem:[#allocation9 + $0x5ac] sm:$0xf]
      %v2883 = vld [vmem:[#allocation9 + $0x5b0] sm:$0xf]
      %v2884 = vld [vmem:[#allocation9 + $0x5b4] sm:$0xf]
      %v2885 = vld [vmem:[#allocation9 + $0x5b8] sm:$0xf]
      %v2886 = vld [vmem:[#allocation9 + $0x5bc] sm:$0xf]
      %v2887 = vld [vmem:[#allocation9 + $0x5c0] sm:$0xf]
      %v2888 = vld [vmem:[#allocation9 + $0x5c4] sm:$0xf]
      %v2889 = vld [vmem:[#allocation9 + $0x5c8] sm:$0xf]
      %v2890 = vld [vmem:[#allocation9 + $0x5cc] sm:$0xf]
      %v2891 = vld [vmem:[#allocation9 + $0x5d0] sm:$0xf]
      %v2892 = vld [vmem:[#allocation9 + $0x5d4] sm:$0xf]
      %v2893 = vld [vmem:[#allocation9 + $0x5d8] sm:$0xf]
      %v2894 = vld [vmem:[#allocation9 + $0x5dc] sm:$0xf]
      %v2895 = vld [vmem:[#allocation9 + $0x5e0] sm:$0xf]
      %v2896 = vld [vmem:[#allocation9 + $0x5e4] sm:$0xf]
      %v2897 = vld [vmem:[#allocation9 + $0x5e8] sm:$0xf]
      %v2898 = vld [vmem:[#allocation9 + $0x5ec] sm:$0xf]
      %v2899 = vld [vmem:[#allocation9 + $0x5f0] sm:$0xf]
      %v2900 = vld [vmem:[#allocation9 + $0x5f4] sm:$0xf]
      %v2901 = vld [vmem:[#allocation9 + $0x5f8] sm:$0xf]
      %v2902 = vld [vmem:[#allocation9 + $0x5fc] sm:$0xf]
      %v2903 = vld [vmem:[#allocation9 + $0x600] sm:$0xf]
      %v2904 = vld [vmem:[#allocation9 + $0x604] sm:$0xf]
      %v2905 = vld [vmem:[#allocation9 + $0x608] sm:$0xf]
      %v2906 = vld [vmem:[#allocation9 + $0x60c] sm:$0xf]
      %v2907 = vld [vmem:[#allocation9 + $0x610] sm:$0xf]
      %v2908 = vld [vmem:[#allocation9 + $0x614] sm:$0xf]
      %v2909 = vld [vmem:[#allocation9 + $0x618] sm:$0xf]
      %v2910 = vld [vmem:[#allocation9 + $0x61c] sm:$0xf]
      %v2911 = vld [vmem:[#allocation9 + $0x620] sm:$0xf]
      %v2912 = vld [vmem:[#allocation9 + $0x624] sm:$0xf]
      %v2913 = vld [vmem:[#allocation9 + $0x628] sm:$0xf]
      %v2914 = vld [vmem:[#allocation9 + $0x62c] sm:$0xf]
      %v2915 = vld [vmem:[#allocation9 + $0x630] sm:$0xf]
      %v2916 = vld [vmem:[#allocation9 + $0x634] sm:$0xf]
      %v2917 = vld [vmem:[#allocation9 + $0x638] sm:$0xf]
      %v2918 = vld [vmem:[#allocation9 + $0x63c] sm:$0xf]
      %v2919 = vld [vmem:[#allocation9 + $0x640] sm:$0xf]
      %v2920 = vld [vmem:[#allocation9 + $0x644] sm:$0xf]
      %v2921 = vld [vmem:[#allocation9 + $0x648] sm:$0xf]
      %v2922 = vld [vmem:[#allocation9 + $0x64c] sm:$0xf]
      %v2923 = vld [vmem:[#allocation9 + $0x650] sm:$0xf]
      %v2924 = vld [vmem:[#allocation9 + $0x654] sm:$0xf]
      %v2925 = vld [vmem:[#allocation9 + $0x658] sm:$0xf]
      %v2926 = vld [vmem:[#allocation9 + $0x65c] sm:$0xf]
      %v2927 = vld [vmem:[#allocation9 + $0x660] sm:$0xf]
      %v2928 = vld [vmem:[#allocation9 + $0x664] sm:$0xf]
      %v2929 = vld [vmem:[#allocation9 + $0x668] sm:$0xf]
      %v2930 = vld [vmem:[#allocation9 + $0x66c] sm:$0xf]
      %v2931 = vld [vmem:[#allocation9 + $0x670] sm:$0xf]
      %v2932 = vld [vmem:[#allocation9 + $0x674] sm:$0xf]
      %v2933 = vld [vmem:[#allocation9 + $0x678] sm:$0xf]
      %v2934 = vld [vmem:[#allocation9 + $0x67c] sm:$0xf]
      %v2935 = vld [vmem:[#allocation9 + $0x680] sm:$0xf]
      %v2936 = vld [vmem:[#allocation9 + $0x684] sm:$0xf]
      %v2937 = vld [vmem:[#allocation9 + $0x688] sm:$0xf]
      %v2938 = vld [vmem:[#allocation9 + $0x68c] sm:$0xf]
      %v2939 = vld [vmem:[#allocation9 + $0x690] sm:$0xf]
      %v2940 = vld [vmem:[#allocation9 + $0x694] sm:$0xf]
      %v2941 = vld [vmem:[#allocation9 + $0x698] sm:$0xf]
      %v2942 = vld [vmem:[#allocation9 + $0x69c] sm:$0xf]
      %v2943 = vld [vmem:[#allocation9 + $0x6a0] sm:$0xf]
      %v2944 = vld [vmem:[#allocation9 + $0x6a4] sm:$0xf]
      %v2945 = vld [vmem:[#allocation9 + $0x6a8] sm:$0xf]
      %v2946 = vld [vmem:[#allocation9 + $0x6ac] sm:$0xf]
      %v2947 = vld [vmem:[#allocation9 + $0x6b0] sm:$0xf]
      %v2948 = vld [vmem:[#allocation9 + $0x6b4] sm:$0xf]
      %v2949 = vld [vmem:[#allocation9 + $0x6b8] sm:$0xf]
      %v2950 = vld [vmem:[#allocation9 + $0x6bc] sm:$0xf]
      %v2951 = vld [vmem:[#allocation9 + $0x6c0] sm:$0xf]
      %v2952 = vld [vmem:[#allocation9 + $0x6c4] sm:$0xf]
      %v2953 = vld [vmem:[#allocation9 + $0x6c8] sm:$0xf]
      %v2954 = vld [vmem:[#allocation9 + $0x6cc] sm:$0xf]
      %v2955 = vld [vmem:[#allocation9 + $0x6d0] sm:$0xf]
      %v2956 = vld [vmem:[#allocation9 + $0x6d4] sm:$0xf]
      %v2957 = vld [vmem:[#allocation9 + $0x6d8] sm:$0xf]
      %v2958 = vld [vmem:[#allocation9 + $0x6dc] sm:$0xf]
      %v2959 = vld [vmem:[#allocation9 + $0x6e0] sm:$0xf]
      %v2960 = vld [vmem:[#allocation9 + $0x6e4] sm:$0xf]
      %v2961 = vld [vmem:[#allocation9 + $0x6e8] sm:$0xf]
      %v2962 = vld [vmem:[#allocation9 + $0x6ec] sm:$0xf]
      %v2963 = vld [vmem:[#allocation9 + $0x6f0] sm:$0xf]
      %v2964 = vld [vmem:[#allocation9 + $0x6f4] sm:$0xf]
      %v2965 = vld [vmem:[#allocation9 + $0x6f8] sm:$0xf]
      %v2966 = vld [vmem:[#allocation9 + $0x6fc] sm:$0xf]
      %v2967 = vld [vmem:[#allocation9 + $0x700] sm:$0xf]
      %v2968 = vld [vmem:[#allocation9 + $0x704] sm:$0xf]
      %v2969 = vld [vmem:[#allocation9 + $0x708] sm:$0xf]
      %v2970 = vld [vmem:[#allocation9 + $0x70c] sm:$0xf]
      %v2971 = vld [vmem:[#allocation9 + $0x710] sm:$0xf]
      %v2972 = vld [vmem:[#allocation9 + $0x714] sm:$0xf]
      %v2973 = vld [vmem:[#allocation9 + $0x718] sm:$0xf]
      %v2974 = vld [vmem:[#allocation9 + $0x71c] sm:$0xf]
      %v2975 = vld [vmem:[#allocation9 + $0x720] sm:$0xf]
      %v2976 = vld [vmem:[#allocation9 + $0x724] sm:$0xf]
      %v2977 = vld [vmem:[#allocation9 + $0x728] sm:$0xf]
      %v2978 = vld [vmem:[#allocation9 + $0x72c] sm:$0xf]
      %v2979 = vld [vmem:[#allocation9 + $0x730] sm:$0xf]
      %v2980 = vld [vmem:[#allocation9 + $0x734] sm:$0xf]
      %v2981 = vld [vmem:[#allocation9 + $0x738] sm:$0xf]
      %v2982 = vld [vmem:[#allocation9 + $0x73c] sm:$0xf]
      %v2983 = vld [vmem:[#allocation9 + $0x740] sm:$0xf]
      %v2984 = vld [vmem:[#allocation9 + $0x744] sm:$0xf]
      %v2985 = vld [vmem:[#allocation9 + $0x748] sm:$0xf]
      %v2986 = vld [vmem:[#allocation9 + $0x74c] sm:$0xf]
      %v2987 = vld [vmem:[#allocation9 + $0x750] sm:$0xf]
      %v2988 = vld [vmem:[#allocation9 + $0x754] sm:$0xf]
      %v2989 = vld [vmem:[#allocation9 + $0x758] sm:$0xf]
      %v2990 = vld [vmem:[#allocation9 + $0x75c] sm:$0xf]
      %v2991 = vld [vmem:[#allocation9 + $0x760] sm:$0xf]
      %v2992 = vld [vmem:[#allocation9 + $0x764] sm:$0xf]
      %v2993 = vld [vmem:[#allocation9 + $0x768] sm:$0xf]
      %v2994 = vld [vmem:[#allocation9 + $0x76c] sm:$0xf]
      %v2995 = vld [vmem:[#allocation9 + $0x770] sm:$0xf]
      %v2996 = vld [vmem:[#allocation9 + $0x774] sm:$0xf]
      %v2997 = vld [vmem:[#allocation9 + $0x778] sm:$0xf]
      %v2998 = vld [vmem:[#allocation9 + $0x77c] sm:$0xf]
      %v2999 = vld [vmem:[#allocation9 + $0x780] sm:$0xf]
      %v3000 = vld [vmem:[#allocation9 + $0x784] sm:$0xf]
      %v3001 = vld [vmem:[#allocation9 + $0x788] sm:$0xf]
      %v3002 = vld [vmem:[#allocation9 + $0x78c] sm:$0xf]
      %v3003 = vld [vmem:[#allocation9 + $0x790] sm:$0xf]
      %v3004 = vld [vmem:[#allocation9 + $0x794] sm:$0xf]
      %v3005 = vld [vmem:[#allocation9 + $0x798] sm:$0xf]
      %v3006 = vld [vmem:[#allocation9 + $0x79c] sm:$0xf]
      %v3007 = vld [vmem:[#allocation9 + $0x7a0] sm:$0xf]
      %v3008 = vld [vmem:[#allocation9 + $0x7a4] sm:$0xf]
      %v3009 = vld [vmem:[#allocation9 + $0x7a8] sm:$0xf]
      %v3010 = vld [vmem:[#allocation9 + $0x7ac] sm:$0xf]
      %v3011 = vld [vmem:[#allocation9 + $0x7b0] sm:$0xf]
      %v3012 = vld [vmem:[#allocation9 + $0x7b4] sm:$0xf]
      %v3013 = vld [vmem:[#allocation9 + $0x7b8] sm:$0xf]
      %v3014 = vld [vmem:[#allocation9 + $0x7bc] sm:$0xf]
      %v3015 = vld [vmem:[#allocation9 + $0x7c0] sm:$0xf]
      %v3016 = vld [vmem:[#allocation9 + $0x7c4] sm:$0xf]
      %v3017 = vld [vmem:[#allocation9 + $0x7c8] sm:$0xf]
      %v3018 = vld [vmem:[#allocation9 + $0x7cc] sm:$0xf]
      %v3019 = vld [vmem:[#allocation9 + $0x7d0] sm:$0xf]
      %v3020 = vld [vmem:[#allocation9 + $0x7d4] sm:$0xf]
      %v3021 = vld [vmem:[#allocation9 + $0x7d8] sm:$0xf]
      %v3022 = vld [vmem:[#allocation9 + $0x7dc] sm:$0xf]
      %v3023 = vld [vmem:[#allocation9 + $0x7e0] sm:$0xf]
      %v3024 = vld [vmem:[#allocation9 + $0x7e4] sm:$0xf]
      %v3025 = vld [vmem:[#allocation9 + $0x7e8] sm:$0xf]
      %v3026 = vld [vmem:[#allocation9 + $0x7ec] sm:$0xf]
      %v3027 = vld [vmem:[#allocation9 + $0x7f0] sm:$0xf]
      %v3028 = vld [vmem:[#allocation9 + $0x7f4] sm:$0xf]
      %v3029 = vld [vmem:[#allocation9 + $0x7f8] sm:$0xf]
      %v3030 = vld [vmem:[#allocation9 + $0x7fc] sm:$0xf]
      %v3031 = vld [vmem:[%s4] sm:$0x1]
      %v3544 = vunpack.c.l.b16 %v2519
      %v3545 = vunpack.c.l.b16 %v2520
      %v3546 = vunpack.c.l.b16 %v2521
      %v3547 = vunpack.c.l.b16 %v2522
      %v3548 = vunpack.c.l.b16 %v2523
      %v3549 = vunpack.c.l.b16 %v2524
      %v3550 = vunpack.c.l.b16 %v2525
      %v3551 = vunpack.c.l.b16 %v2526
      %v3552 = vunpack.c.l.b16 %v2527
      %v3553 = vunpack.c.l.b16 %v2528
      %v3554 = vunpack.c.l.b16 %v2529
      %v3555 = vunpack.c.l.b16 %v2530
      %v3556 = vunpack.c.l.b16 %v2531
      %v3557 = vunpack.c.l.b16 %v2532
      %v3558 = vunpack.c.l.b16 %v2533
      %v3559 = vunpack.c.l.b16 %v2534
      %v3560 = vunpack.c.l.b16 %v2535
      %v3561 = vunpack.c.l.b16 %v2536
      %v3562 = vunpack.c.l.b16 %v2537
      %v3563 = vunpack.c.l.b16 %v2538
      %v3564 = vunpack.c.l.b16 %v2539
      %v3565 = vunpack.c.l.b16 %v2540
      %v3566 = vunpack.c.l.b16 %v2541
      %v3567 = vunpack.c.l.b16 %v2542
      %v3568 = vunpack.c.l.b16 %v2543
      %v3569 = vunpack.c.l.b16 %v2544
      %v3570 = vunpack.c.l.b16 %v2545
      %v3571 = vunpack.c.l.b16 %v2546
      %v3572 = vunpack.c.l.b16 %v2547
      %v3573 = vunpack.c.l.b16 %v2548
      %v3574 = vunpack.c.l.b16 %v2549
      %v3575 = vunpack.c.l.b16 %v2550
      %v3576 = vunpack.c.l.b16 %v2551
      %v3577 = vunpack.c.l.b16 %v2552
      %v3578 = vunpack.c.l.b16 %v2553
      %v3579 = vunpack.c.l.b16 %v2554
      %v3580 = vunpack.c.l.b16 %v2555
      %v3581 = vunpack.c.l.b16 %v2556
      %v3582 = vunpack.c.l.b16 %v2557
      %v3583 = vunpack.c.l.b16 %v2558
      %v3584 = vunpack.c.l.b16 %v2559
      %v3585 = vunpack.c.l.b16 %v2560
      %v3586 = vunpack.c.l.b16 %v2561
      %v3587 = vunpack.c.l.b16 %v2562
      %v3588 = vunpack.c.l.b16 %v2563
      %v3589 = vunpack.c.l.b16 %v2564
      %v3590 = vunpack.c.l.b16 %v2565
      %v3591 = vunpack.c.l.b16 %v2566
      %v3592 = vunpack.c.l.b16 %v2567
      %v3593 = vunpack.c.l.b16 %v2568
      %v3594 = vunpack.c.l.b16 %v2569
      %v3595 = vunpack.c.l.b16 %v2570
      %v3596 = vunpack.c.l.b16 %v2571
      %v3597 = vunpack.c.l.b16 %v2572
      %v3598 = vunpack.c.l.b16 %v2573
      %v3599 = vunpack.c.l.b16 %v2574
      %v3600 = vunpack.c.l.b16 %v2575
      %v3601 = vunpack.c.l.b16 %v2576
      %v3602 = vunpack.c.l.b16 %v2577
      %v3603 = vunpack.c.l.b16 %v2578
      %v3604 = vunpack.c.l.b16 %v2579
      %v3605 = vunpack.c.l.b16 %v2580
      %v3606 = vunpack.c.l.b16 %v2581
      %v3607 = vunpack.c.l.b16 %v2582
      %v3608 = vunpack.c.l.b16 %v2583
      %v3609 = vunpack.c.l.b16 %v2584
      %v3610 = vunpack.c.l.b16 %v2585
      %v3611 = vunpack.c.l.b16 %v2586
      %v3612 = vunpack.c.l.b16 %v2587
      %v3613 = vunpack.c.l.b16 %v2588
      %v3614 = vunpack.c.l.b16 %v2589
      %v3615 = vunpack.c.l.b16 %v2590
      %v3616 = vunpack.c.l.b16 %v2591
      %v3617 = vunpack.c.l.b16 %v2592
      %v3618 = vunpack.c.l.b16 %v2593
      %v3619 = vunpack.c.l.b16 %v2594
      %v3620 = vunpack.c.l.b16 %v2595
      %v3621 = vunpack.c.l.b16 %v2596
      %v3622 = vunpack.c.l.b16 %v2597
      %v3623 = vunpack.c.l.b16 %v2598
      %v3624 = vunpack.c.l.b16 %v2599
      %v3625 = vunpack.c.l.b16 %v2600
      %v3626 = vunpack.c.l.b16 %v2601
      %v3627 = vunpack.c.l.b16 %v2602
      %v3628 = vunpack.c.l.b16 %v2603
      %v3629 = vunpack.c.l.b16 %v2604
      %v3630 = vunpack.c.l.b16 %v2605
      %v3631 = vunpack.c.l.b16 %v2606
      %v3632 = vunpack.c.l.b16 %v2607
      %v3633 = vunpack.c.l.b16 %v2608
      %v3634 = vunpack.c.l.b16 %v2609
      %v3635 = vunpack.c.l.b16 %v2610
      %v3636 = vunpack.c.l.b16 %v2611
      %v3637 = vunpack.c.l.b16 %v2612
      %v3638 = vunpack.c.l.b16 %v2613
      %v3639 = vunpack.c.l.b16 %v2614
      %v3640 = vunpack.c.l.b16 %v2615
      %v3641 = vunpack.c.l.b16 %v2616
      %v3642 = vunpack.c.l.b16 %v2617
      %v3643 = vunpack.c.l.b16 %v2618
      %v3644 = vunpack.c.l.b16 %v2619
      %v3645 = vunpack.c.l.b16 %v2620
      %v3646 = vunpack.c.l.b16 %v2621
      %v3647 = vunpack.c.l.b16 %v2622
      %v3648 = vunpack.c.l.b16 %v2623
      %v3649 = vunpack.c.l.b16 %v2624
      %v3650 = vunpack.c.l.b16 %v2625
      %v3651 = vunpack.c.l.b16 %v2626
      %v3652 = vunpack.c.l.b16 %v2627
      %v3653 = vunpack.c.l.b16 %v2628
      %v3654 = vunpack.c.l.b16 %v2629
      %v3655 = vunpack.c.l.b16 %v2630
      %v3656 = vunpack.c.l.b16 %v2631
      %v3657 = vunpack.c.l.b16 %v2632
      %v3658 = vunpack.c.l.b16 %v2633
      %v3659 = vunpack.c.l.b16 %v2634
      %v3660 = vunpack.c.l.b16 %v2635
      %v3661 = vunpack.c.l.b16 %v2636
      %v3662 = vunpack.c.l.b16 %v2637
      %v3663 = vunpack.c.l.b16 %v2638
      %v3664 = vunpack.c.l.b16 %v2639
      %v3665 = vunpack.c.l.b16 %v2640
      %v3666 = vunpack.c.l.b16 %v2641
      %v3667 = vunpack.c.l.b16 %v2642
      %v3668 = vunpack.c.l.b16 %v2643
      %v3669 = vunpack.c.l.b16 %v2644
      %v3670 = vunpack.c.l.b16 %v2645
      %v3671 = vunpack.c.l.b16 %v2646
      %v3672 = vunpack.c.l.b16 %v2647
      %v3673 = vunpack.c.l.b16 %v2648
      %v3674 = vunpack.c.l.b16 %v2649
      %v3675 = vunpack.c.l.b16 %v2650
      %v3676 = vunpack.c.l.b16 %v2651
      %v3677 = vunpack.c.l.b16 %v2652
      %v3678 = vunpack.c.l.b16 %v2653
      %v3679 = vunpack.c.l.b16 %v2654
      %v3680 = vunpack.c.l.b16 %v2655
      %v3681 = vunpack.c.l.b16 %v2656
      %v3682 = vunpack.c.l.b16 %v2657
      %v3683 = vunpack.c.l.b16 %v2658
      %v3684 = vunpack.c.l.b16 %v2659
      %v3685 = vunpack.c.l.b16 %v2660
      %v3686 = vunpack.c.l.b16 %v2661
      %v3687 = vunpack.c.l.b16 %v2662
      %v3688 = vunpack.c.l.b16 %v2663
      %v3689 = vunpack.c.l.b16 %v2664
      %v3690 = vunpack.c.l.b16 %v2665
      %v3691 = vunpack.c.l.b16 %v2666
      %v3692 = vunpack.c.l.b16 %v2667
      %v3693 = vunpack.c.l.b16 %v2668
      %v3694 = vunpack.c.l.b16 %v2669
      %v3695 = vunpack.c.l.b16 %v2670
      %v3696 = vunpack.c.l.b16 %v2671
      %v3697 = vunpack.c.l.b16 %v2672
      %v3698 = vunpack.c.l.b16 %v2673
      %v3699 = vunpack.c.l.b16 %v2674
      %v3700 = vunpack.c.l.b16 %v2675
      %v3701 = vunpack.c.l.b16 %v2676
      %v3702 = vunpack.c.l.b16 %v2677
      %v3703 = vunpack.c.l.b16 %v2678
      %v3704 = vunpack.c.l.b16 %v2679
      %v3705 = vunpack.c.l.b16 %v2680
      %v3706 = vunpack.c.l.b16 %v2681
      %v3707 = vunpack.c.l.b16 %v2682
      %v3708 = vunpack.c.l.b16 %v2683
      %v3709 = vunpack.c.l.b16 %v2684
      %v3710 = vunpack.c.l.b16 %v2685
      %v3711 = vunpack.c.l.b16 %v2686
      %v3712 = vunpack.c.l.b16 %v2687
      %v3713 = vunpack.c.l.b16 %v2688
      %v3714 = vunpack.c.l.b16 %v2689
      %v3715 = vunpack.c.l.b16 %v2690
      %v3716 = vunpack.c.l.b16 %v2691
      %v3717 = vunpack.c.l.b16 %v2692
      %v3718 = vunpack.c.l.b16 %v2693
      %v3719 = vunpack.c.l.b16 %v2694
      %v3720 = vunpack.c.l.b16 %v2695
      %v3721 = vunpack.c.l.b16 %v2696
      %v3722 = vunpack.c.l.b16 %v2697
      %v3723 = vunpack.c.l.b16 %v2698
      %v3724 = vunpack.c.l.b16 %v2699
      %v3725 = vunpack.c.l.b16 %v2700
      %v3726 = vunpack.c.l.b16 %v2701
      %v3727 = vunpack.c.l.b16 %v2702
      %v3728 = vunpack.c.l.b16 %v2703
      %v3729 = vunpack.c.l.b16 %v2704
      %v3730 = vunpack.c.l.b16 %v2705
      %v3731 = vunpack.c.l.b16 %v2706
      %v3732 = vunpack.c.l.b16 %v2707
      %v3733 = vunpack.c.l.b16 %v2708
      %v3734 = vunpack.c.l.b16 %v2709
      %v3735 = vunpack.c.l.b16 %v2710
      %v3736 = vunpack.c.l.b16 %v2711
      %v3737 = vunpack.c.l.b16 %v2712
      %v3738 = vunpack.c.l.b16 %v2713
      %v3739 = vunpack.c.l.b16 %v2714
      %v3740 = vunpack.c.l.b16 %v2715
      %v3741 = vunpack.c.l.b16 %v2716
      %v3742 = vunpack.c.l.b16 %v2717
      %v3743 = vunpack.c.l.b16 %v2718
      %v3744 = vunpack.c.l.b16 %v2719
      %v3745 = vunpack.c.l.b16 %v2720
      %v3746 = vunpack.c.l.b16 %v2721
      %v3747 = vunpack.c.l.b16 %v2722
      %v3748 = vunpack.c.l.b16 %v2723
      %v3749 = vunpack.c.l.b16 %v2724
      %v3750 = vunpack.c.l.b16 %v2725
      %v3751 = vunpack.c.l.b16 %v2726
      %v3752 = vunpack.c.l.b16 %v2727
      %v3753 = vunpack.c.l.b16 %v2728
      %v3754 = vunpack.c.l.b16 %v2729
      %v3755 = vunpack.c.l.b16 %v2730
      %v3756 = vunpack.c.l.b16 %v2731
      %v3757 = vunpack.c.l.b16 %v2732
      %v3758 = vunpack.c.l.b16 %v2733
      %v3759 = vunpack.c.l.b16 %v2734
      %v3760 = vunpack.c.l.b16 %v2735
      %v3761 = vunpack.c.l.b16 %v2736
      %v3762 = vunpack.c.l.b16 %v2737
      %v3763 = vunpack.c.l.b16 %v2738
      %v3764 = vunpack.c.l.b16 %v2739
      %v3765 = vunpack.c.l.b16 %v2740
      %v3766 = vunpack.c.l.b16 %v2741
      %v3767 = vunpack.c.l.b16 %v2742
      %v3768 = vunpack.c.l.b16 %v2743
      %v3769 = vunpack.c.l.b16 %v2744
      %v3770 = vunpack.c.l.b16 %v2745
      %v3771 = vunpack.c.l.b16 %v2746
      %v3772 = vunpack.c.l.b16 %v2747
      %v3773 = vunpack.c.l.b16 %v2748
      %v3774 = vunpack.c.l.b16 %v2749
      %v3775 = vunpack.c.l.b16 %v2750
      %v3776 = vunpack.c.l.b16 %v2751
      %v3777 = vunpack.c.l.b16 %v2752
      %v3778 = vunpack.c.l.b16 %v2753
      %v3779 = vunpack.c.l.b16 %v2754
      %v3780 = vunpack.c.l.b16 %v2755
      %v3781 = vunpack.c.l.b16 %v2756
      %v3782 = vunpack.c.l.b16 %v2757
      %v3783 = vunpack.c.l.b16 %v2758
      %v3784 = vunpack.c.l.b16 %v2759
      %v3785 = vunpack.c.l.b16 %v2760
      %v3786 = vunpack.c.l.b16 %v2761
      %v3787 = vunpack.c.l.b16 %v2762
      %v3788 = vunpack.c.l.b16 %v2763
      %v3789 = vunpack.c.l.b16 %v2764
      %v3790 = vunpack.c.l.b16 %v2765
      %v3791 = vunpack.c.l.b16 %v2766
      %v3792 = vunpack.c.l.b16 %v2767
      %v3793 = vunpack.c.l.b16 %v2768
      %v3794 = vunpack.c.l.b16 %v2769
      %v3795 = vunpack.c.l.b16 %v2770
      %v3796 = vunpack.c.l.b16 %v2771
      %v3797 = vunpack.c.l.b16 %v2772
      %v3798 = vunpack.c.l.b16 %v2773
      %v3799 = vunpack.c.l.b16 %v2774
      %v3800 = vunpack.c.l.b16 %v2775
      %v3801 = vunpack.c.l.b16 %v2776
      %v3802 = vunpack.c.l.b16 %v2777
      %v3803 = vunpack.c.l.b16 %v2778
      %v3804 = vunpack.c.l.b16 %v2779
      %v3805 = vunpack.c.l.b16 %v2780
      %v3806 = vunpack.c.l.b16 %v2781
      %v3807 = vunpack.c.l.b16 %v2782
      %v3808 = vunpack.c.l.b16 %v2783
      %v3809 = vunpack.c.l.b16 %v2784
      %v3810 = vunpack.c.l.b16 %v2785
      %v3811 = vunpack.c.l.b16 %v2786
      %v3812 = vunpack.c.l.b16 %v2787
      %v3813 = vunpack.c.l.b16 %v2788
      %v3814 = vunpack.c.l.b16 %v2789
      %v3815 = vunpack.c.l.b16 %v2790
      %v3816 = vunpack.c.l.b16 %v2791
      %v3817 = vunpack.c.l.b16 %v2792
      %v3818 = vunpack.c.l.b16 %v2793
      %v3819 = vunpack.c.l.b16 %v2794
      %v3820 = vunpack.c.l.b16 %v2795
      %v3821 = vunpack.c.l.b16 %v2796
      %v3822 = vunpack.c.l.b16 %v2797
      %v3823 = vunpack.c.l.b16 %v2798
      %v3824 = vunpack.c.l.b16 %v2799
      %v3825 = vunpack.c.l.b16 %v2800
      %v3826 = vunpack.c.l.b16 %v2801
      %v3827 = vunpack.c.l.b16 %v2802
      %v3828 = vunpack.c.l.b16 %v2803
      %v3829 = vunpack.c.l.b16 %v2804
      %v3830 = vunpack.c.l.b16 %v2805
      %v3831 = vunpack.c.l.b16 %v2806
      %v3832 = vunpack.c.l.b16 %v2807
      %v3833 = vunpack.c.l.b16 %v2808
      %v3834 = vunpack.c.l.b16 %v2809
      %v3835 = vunpack.c.l.b16 %v2810
      %v3836 = vunpack.c.l.b16 %v2811
      %v3837 = vunpack.c.l.b16 %v2812
      %v3838 = vunpack.c.l.b16 %v2813
      %v3839 = vunpack.c.l.b16 %v2814
      %v3840 = vunpack.c.l.b16 %v2815
      %v3841 = vunpack.c.l.b16 %v2816
      %v3842 = vunpack.c.l.b16 %v2817
      %v3843 = vunpack.c.l.b16 %v2818
      %v3844 = vunpack.c.l.b16 %v2819
      %v3845 = vunpack.c.l.b16 %v2820
      %v3846 = vunpack.c.l.b16 %v2821
      %v3847 = vunpack.c.l.b16 %v2822
      %v3848 = vunpack.c.l.b16 %v2823
      %v3849 = vunpack.c.l.b16 %v2824
      %v3850 = vunpack.c.l.b16 %v2825
      %v3851 = vunpack.c.l.b16 %v2826
      %v3852 = vunpack.c.l.b16 %v2827
      %v3853 = vunpack.c.l.b16 %v2828
      %v3854 = vunpack.c.l.b16 %v2829
      %v3855 = vunpack.c.l.b16 %v2830
      %v3856 = vunpack.c.l.b16 %v2831
      %v3857 = vunpack.c.l.b16 %v2832
      %v3858 = vunpack.c.l.b16 %v2833
      %v3859 = vunpack.c.l.b16 %v2834
      %v3860 = vunpack.c.l.b16 %v2835
      %v3861 = vunpack.c.l.b16 %v2836
      %v3862 = vunpack.c.l.b16 %v2837
      %v3863 = vunpack.c.l.b16 %v2838
      %v3864 = vunpack.c.l.b16 %v2839
      %v3865 = vunpack.c.l.b16 %v2840
      %v3866 = vunpack.c.l.b16 %v2841
      %v3867 = vunpack.c.l.b16 %v2842
      %v3868 = vunpack.c.l.b16 %v2843
      %v3869 = vunpack.c.l.b16 %v2844
      %v3870 = vunpack.c.l.b16 %v2845
      %v3871 = vunpack.c.l.b16 %v2846
      %v3872 = vunpack.c.l.b16 %v2847
      %v3873 = vunpack.c.l.b16 %v2848
      %v3874 = vunpack.c.l.b16 %v2849
      %v3875 = vunpack.c.l.b16 %v2850
      %v3876 = vunpack.c.l.b16 %v2851
      %v3877 = vunpack.c.l.b16 %v2852
      %v3878 = vunpack.c.l.b16 %v2853
      %v3879 = vunpack.c.l.b16 %v2854
      %v3880 = vunpack.c.l.b16 %v2855
      %v3881 = vunpack.c.l.b16 %v2856
      %v3882 = vunpack.c.l.b16 %v2857
      %v3883 = vunpack.c.l.b16 %v2858
      %v3884 = vunpack.c.l.b16 %v2859
      %v3885 = vunpack.c.l.b16 %v2860
      %v3886 = vunpack.c.l.b16 %v2861
      %v3887 = vunpack.c.l.b16 %v2862
      %v3888 = vunpack.c.l.b16 %v2863
      %v3889 = vunpack.c.l.b16 %v2864
      %v3890 = vunpack.c.l.b16 %v2865
      %v3891 = vunpack.c.l.b16 %v2866
      %v3892 = vunpack.c.l.b16 %v2867
      %v3893 = vunpack.c.l.b16 %v2868
      %v3894 = vunpack.c.l.b16 %v2869
      %v3895 = vunpack.c.l.b16 %v2870
      %v3896 = vunpack.c.l.b16 %v2871
      %v3897 = vunpack.c.l.b16 %v2872
      %v3898 = vunpack.c.l.b16 %v2873
      %v3899 = vunpack.c.l.b16 %v2874
      %v3900 = vunpack.c.l.b16 %v2875
      %v3901 = vunpack.c.l.b16 %v2876
      %v3902 = vunpack.c.l.b16 %v2877
      %v3903 = vunpack.c.l.b16 %v2878
      %v3904 = vunpack.c.l.b16 %v2879
      %v3905 = vunpack.c.l.b16 %v2880
      %v3906 = vunpack.c.l.b16 %v2881
      %v3907 = vunpack.c.l.b16 %v2882
      %v3908 = vunpack.c.l.b16 %v2883
      %v3909 = vunpack.c.l.b16 %v2884
      %v3910 = vunpack.c.l.b16 %v2885
      %v3911 = vunpack.c.l.b16 %v2886
      %v3912 = vunpack.c.l.b16 %v2887
      %v3913 = vunpack.c.l.b16 %v2888
      %v3914 = vunpack.c.l.b16 %v2889
      %v3915 = vunpack.c.l.b16 %v2890
      %v3916 = vunpack.c.l.b16 %v2891
      %v3917 = vunpack.c.l.b16 %v2892
      %v3918 = vunpack.c.l.b16 %v2893
      %v3919 = vunpack.c.l.b16 %v2894
      %v3920 = vunpack.c.l.b16 %v2895
      %v3921 = vunpack.c.l.b16 %v2896
      %v3922 = vunpack.c.l.b16 %v2897
      %v3923 = vunpack.c.l.b16 %v2898
      %v3924 = vunpack.c.l.b16 %v2899
      %v3925 = vunpack.c.l.b16 %v2900
      %v3926 = vunpack.c.l.b16 %v2901
      %v3927 = vunpack.c.l.b16 %v2902
      %v3928 = vunpack.c.l.b16 %v2903
      %v3929 = vunpack.c.l.b16 %v2904
      %v3930 = vunpack.c.l.b16 %v2905
      %v3931 = vunpack.c.l.b16 %v2906
      %v3932 = vunpack.c.l.b16 %v2907
      %v3933 = vunpack.c.l.b16 %v2908
      %v3934 = vunpack.c.l.b16 %v2909
      %v3935 = vunpack.c.l.b16 %v2910
      %v3936 = vunpack.c.l.b16 %v2911
      %v3937 = vunpack.c.l.b16 %v2912
      %v3938 = vunpack.c.l.b16 %v2913
      %v3939 = vunpack.c.l.b16 %v2914
      %v3940 = vunpack.c.l.b16 %v2915
      %v3941 = vunpack.c.l.b16 %v2916
      %v3942 = vunpack.c.l.b16 %v2917
      %v3943 = vunpack.c.l.b16 %v2918
      %v3944 = vunpack.c.l.b16 %v2919
      %v3945 = vunpack.c.l.b16 %v2920
      %v3946 = vunpack.c.l.b16 %v2921
      %v3947 = vunpack.c.l.b16 %v2922
      %v3948 = vunpack.c.l.b16 %v2923
      %v3949 = vunpack.c.l.b16 %v2924
      %v3950 = vunpack.c.l.b16 %v2925
      %v3951 = vunpack.c.l.b16 %v2926
      %v3952 = vunpack.c.l.b16 %v2927
      %v3953 = vunpack.c.l.b16 %v2928
      %v3954 = vunpack.c.l.b16 %v2929
      %v3955 = vunpack.c.l.b16 %v2930
      %v3956 = vunpack.c.l.b16 %v2931
      %v3957 = vunpack.c.l.b16 %v2932
      %v3958 = vunpack.c.l.b16 %v2933
      %v3959 = vunpack.c.l.b16 %v2934
      %v3960 = vunpack.c.l.b16 %v2935
      %v3961 = vunpack.c.l.b16 %v2936
      %v3962 = vunpack.c.l.b16 %v2937
      %v3963 = vunpack.c.l.b16 %v2938
      %v3964 = vunpack.c.l.b16 %v2939
      %v3965 = vunpack.c.l.b16 %v2940
      %v3966 = vunpack.c.l.b16 %v2941
      %v3967 = vunpack.c.l.b16 %v2942
      %v3968 = vunpack.c.l.b16 %v2943
      %v3969 = vunpack.c.l.b16 %v2944
      %v3970 = vunpack.c.l.b16 %v2945
      %v3971 = vunpack.c.l.b16 %v2946
      %v3972 = vunpack.c.l.b16 %v2947
      %v3973 = vunpack.c.l.b16 %v2948
      %v3974 = vunpack.c.l.b16 %v2949
      %v3975 = vunpack.c.l.b16 %v2950
      %v3976 = vunpack.c.l.b16 %v2951
      %v3977 = vunpack.c.l.b16 %v2952
      %v3978 = vunpack.c.l.b16 %v2953
      %v3979 = vunpack.c.l.b16 %v2954
      %v3980 = vunpack.c.l.b16 %v2955
      %v3981 = vunpack.c.l.b16 %v2956
      %v3982 = vunpack.c.l.b16 %v2957
      %v3983 = vunpack.c.l.b16 %v2958
      %v3984 = vunpack.c.l.b16 %v2959
      %v3985 = vunpack.c.l.b16 %v2960
      %v3986 = vunpack.c.l.b16 %v2961
      %v3987 = vunpack.c.l.b16 %v2962
      %v3988 = vunpack.c.l.b16 %v2963
      %v3989 = vunpack.c.l.b16 %v2964
      %v3990 = vunpack.c.l.b16 %v2965
      %v3991 = vunpack.c.l.b16 %v2966
      %v3992 = vunpack.c.l.b16 %v2967
      %v3993 = vunpack.c.l.b16 %v2968
      %v3994 = vunpack.c.l.b16 %v2969
      %v3995 = vunpack.c.l.b16 %v2970
      %v3996 = vunpack.c.l.b16 %v2971
      %v3997 = vunpack.c.l.b16 %v2972
      %v3998 = vunpack.c.l.b16 %v2973
      %v3999 = vunpack.c.l.b16 %v2974
      %v4000 = vunpack.c.l.b16 %v2975
      %v4001 = vunpack.c.l.b16 %v2976
      %v4002 = vunpack.c.l.b16 %v2977
      %v4003 = vunpack.c.l.b16 %v2978
      %v4004 = vunpack.c.l.b16 %v2979
      %v4005 = vunpack.c.l.b16 %v2980
      %v4006 = vunpack.c.l.b16 %v2981
      %v4007 = vunpack.c.l.b16 %v2982
      %v4008 = vunpack.c.l.b16 %v2983
      %v4009 = vunpack.c.l.b16 %v2984
      %v4010 = vunpack.c.l.b16 %v2985
      %v4011 = vunpack.c.l.b16 %v2986
      %v4012 = vunpack.c.l.b16 %v2987
      %v4013 = vunpack.c.l.b16 %v2988
      %v4014 = vunpack.c.l.b16 %v2989
      %v4015 = vunpack.c.l.b16 %v2990
      %v4016 = vunpack.c.l.b16 %v2991
      %v4017 = vunpack.c.l.b16 %v2992
      %v4018 = vunpack.c.l.b16 %v2993
      %v4019 = vunpack.c.l.b16 %v2994
      %v4020 = vunpack.c.l.b16 %v2995
      %v4021 = vunpack.c.l.b16 %v2996
      %v4022 = vunpack.c.l.b16 %v2997
      %v4023 = vunpack.c.l.b16 %v2998
      %v4024 = vunpack.c.l.b16 %v2999
      %v4025 = vunpack.c.l.b16 %v3000
      %v4026 = vunpack.c.l.b16 %v3001
      %v4027 = vunpack.c.l.b16 %v3002
      %v4028 = vunpack.c.l.b16 %v3003
      %v4029 = vunpack.c.l.b16 %v3004
      %v4030 = vunpack.c.l.b16 %v3005
      %v4031 = vunpack.c.l.b16 %v3006
      %v4032 = vunpack.c.l.b16 %v3007
      %v4033 = vunpack.c.l.b16 %v3008
      %v4034 = vunpack.c.l.b16 %v3009
      %v4035 = vunpack.c.l.b16 %v3010
      %v4036 = vunpack.c.l.b16 %v3011
      %v4037 = vunpack.c.l.b16 %v3012
      %v4038 = vunpack.c.l.b16 %v3013
      %v4039 = vunpack.c.l.b16 %v3014
      %v4040 = vunpack.c.l.b16 %v3015
      %v4041 = vunpack.c.l.b16 %v3016
      %v4042 = vunpack.c.l.b16 %v3017
      %v4043 = vunpack.c.l.b16 %v3018
      %v4044 = vunpack.c.l.b16 %v3019
      %v4045 = vunpack.c.l.b16 %v3020
      %v4046 = vunpack.c.l.b16 %v3021
      %v4047 = vunpack.c.l.b16 %v3022
      %v4048 = vunpack.c.l.b16 %v3023
      %v4049 = vunpack.c.l.b16 %v3024
      %v4050 = vunpack.c.l.b16 %v3025
      %v4051 = vunpack.c.l.b16 %v3026
      %v4052 = vunpack.c.l.b16 %v3027
      %v4053 = vunpack.c.l.b16 %v3028
      %v4054 = vunpack.c.l.b16 %v3029
      %v4055 = vunpack.c.l.b16 %v3030
      %v4056 = vpack.c.b16 %v3545, %v3544
      %v4057 = vpack.c.b16 %v3547, %v3546
      %v4058 = vpack.c.b16 %v3549, %v3548
      %v4059 = vpack.c.b16 %v3551, %v3550
      %v4060 = vpack.c.b16 %v3553, %v3552
      %v4061 = vpack.c.b16 %v3555, %v3554
      %v4062 = vpack.c.b16 %v3557, %v3556
      %v4063 = vpack.c.b16 %v3559, %v3558
      %v4064 = vpack.c.b16 %v3561, %v3560
      %v4065 = vpack.c.b16 %v3563, %v3562
      %v4066 = vpack.c.b16 %v3565, %v3564
      %v4067 = vpack.c.b16 %v3567, %v3566
      %v4068 = vpack.c.b16 %v3569, %v3568
      %v4069 = vpack.c.b16 %v3571, %v3570
      %v4070 = vpack.c.b16 %v3573, %v3572
      %v4071 = vpack.c.b16 %v3575, %v3574
      %v4072 = vpack.c.b16 %v3577, %v3576
      %v4073 = vpack.c.b16 %v3579, %v3578
      %v4074 = vpack.c.b16 %v3581, %v3580
      %v4075 = vpack.c.b16 %v3583, %v3582
      %v4076 = vpack.c.b16 %v3585, %v3584
      %v4077 = vpack.c.b16 %v3587, %v3586
      %v4078 = vpack.c.b16 %v3589, %v3588
      %v4079 = vpack.c.b16 %v3591, %v3590
      %v4080 = vpack.c.b16 %v3593, %v3592
      %v4081 = vpack.c.b16 %v3595, %v3594
      %v4082 = vpack.c.b16 %v3597, %v3596
      %v4083 = vpack.c.b16 %v3599, %v3598
      %v4084 = vpack.c.b16 %v3601, %v3600
      %v4085 = vpack.c.b16 %v3603, %v3602
      %v4086 = vpack.c.b16 %v3605, %v3604
      %v4087 = vpack.c.b16 %v3607, %v3606
      %v4088 = vpack.c.b16 %v3609, %v3608
      %v4089 = vpack.c.b16 %v3611, %v3610
      %v4090 = vpack.c.b16 %v3613, %v3612
      %v4091 = vpack.c.b16 %v3615, %v3614
      %v4092 = vpack.c.b16 %v3617, %v3616
      %v4093 = vpack.c.b16 %v3619, %v3618
      %v4094 = vpack.c.b16 %v3621, %v3620
      %v4095 = vpack.c.b16 %v3623, %v3622
      %v4096 = vpack.c.b16 %v3625, %v3624
      %v4097 = vpack.c.b16 %v3627, %v3626
      %v4098 = vpack.c.b16 %v3629, %v3628
      %v4099 = vpack.c.b16 %v3631, %v3630
      %v4100 = vpack.c.b16 %v3633, %v3632
      %v4101 = vpack.c.b16 %v3635, %v3634
      %v4102 = vpack.c.b16 %v3637, %v3636
      %v4103 = vpack.c.b16 %v3639, %v3638
      %v4104 = vpack.c.b16 %v3641, %v3640
      %v4105 = vpack.c.b16 %v3643, %v3642
      %v4106 = vpack.c.b16 %v3645, %v3644
      %v4107 = vpack.c.b16 %v3647, %v3646
      %v4108 = vpack.c.b16 %v3649, %v3648
      %v4109 = vpack.c.b16 %v3651, %v3650
      %v4110 = vpack.c.b16 %v3653, %v3652
      %v4111 = vpack.c.b16 %v3655, %v3654
      %v4112 = vpack.c.b16 %v3657, %v3656
      %v4113 = vpack.c.b16 %v3659, %v3658
      %v4114 = vpack.c.b16 %v3661, %v3660
      %v4115 = vpack.c.b16 %v3663, %v3662
      %v4116 = vpack.c.b16 %v3665, %v3664
      %v4117 = vpack.c.b16 %v3667, %v3666
      %v4118 = vpack.c.b16 %v3669, %v3668
      %v4119 = vpack.c.b16 %v3671, %v3670
      %v4120 = vpack.c.b16 %v3673, %v3672
      %v4121 = vpack.c.b16 %v3675, %v3674
      %v4122 = vpack.c.b16 %v3677, %v3676
      %v4123 = vpack.c.b16 %v3679, %v3678
      %v4124 = vpack.c.b16 %v3681, %v3680
      %v4125 = vpack.c.b16 %v3683, %v3682
      %v4126 = vpack.c.b16 %v3685, %v3684
      %v4127 = vpack.c.b16 %v3687, %v3686
      %v4128 = vpack.c.b16 %v3689, %v3688
      %v4129 = vpack.c.b16 %v3691, %v3690
      %v4130 = vpack.c.b16 %v3693, %v3692
      %v4131 = vpack.c.b16 %v3695, %v3694
      %v4132 = vpack.c.b16 %v3697, %v3696
      %v4133 = vpack.c.b16 %v3699, %v3698
      %v4134 = vpack.c.b16 %v3701, %v3700
      %v4135 = vpack.c.b16 %v3703, %v3702
      %v4136 = vpack.c.b16 %v3705, %v3704
      %v4137 = vpack.c.b16 %v3707, %v3706
      %v4138 = vpack.c.b16 %v3709, %v3708
      %v4139 = vpack.c.b16 %v3711, %v3710
      %v4140 = vpack.c.b16 %v3713, %v3712
      %v4141 = vpack.c.b16 %v3715, %v3714
      %v4142 = vpack.c.b16 %v3717, %v3716
      %v4143 = vpack.c.b16 %v3719, %v3718
      %v4144 = vpack.c.b16 %v3721, %v3720
      %v4145 = vpack.c.b16 %v3723, %v3722
      %v4146 = vpack.c.b16 %v3725, %v3724
      %v4147 = vpack.c.b16 %v3727, %v3726
      %v4148 = vpack.c.b16 %v3729, %v3728
      %v4149 = vpack.c.b16 %v3731, %v3730
      %v4150 = vpack.c.b16 %v3733, %v3732
      %v4151 = vpack.c.b16 %v3735, %v3734
      %v4152 = vpack.c.b16 %v3737, %v3736
      %v4153 = vpack.c.b16 %v3739, %v3738
      %v4154 = vpack.c.b16 %v3741, %v3740
      %v4155 = vpack.c.b16 %v3743, %v3742
      %v4156 = vpack.c.b16 %v3745, %v3744
      %v4157 = vpack.c.b16 %v3747, %v3746
      %v4158 = vpack.c.b16 %v3749, %v3748
      %v4159 = vpack.c.b16 %v3751, %v3750
      %v4160 = vpack.c.b16 %v3753, %v3752
      %v4161 = vpack.c.b16 %v3755, %v3754
      %v4162 = vpack.c.b16 %v3757, %v3756
      %v4163 = vpack.c.b16 %v3759, %v3758
      %v4164 = vpack.c.b16 %v3761, %v3760
      %v4165 = vpack.c.b16 %v3763, %v3762
      %v4166 = vpack.c.b16 %v3765, %v3764
      %v4167 = vpack.c.b16 %v3767, %v3766
      %v4168 = vpack.c.b16 %v3769, %v3768
      %v4169 = vpack.c.b16 %v3771, %v3770
      %v4170 = vpack.c.b16 %v3773, %v3772
      %v4171 = vpack.c.b16 %v3775, %v3774
      %v4172 = vpack.c.b16 %v3777, %v3776
      %v4173 = vpack.c.b16 %v3779, %v3778
      %v4174 = vpack.c.b16 %v3781, %v3780
      %v4175 = vpack.c.b16 %v3783, %v3782
      %v4176 = vpack.c.b16 %v3785, %v3784
      %v4177 = vpack.c.b16 %v3787, %v3786
      %v4178 = vpack.c.b16 %v3789, %v3788
      %v4179 = vpack.c.b16 %v3791, %v3790
      %v4180 = vpack.c.b16 %v3793, %v3792
      %v4181 = vpack.c.b16 %v3795, %v3794
      %v4182 = vpack.c.b16 %v3797, %v3796
      %v4183 = vpack.c.b16 %v3799, %v3798
      %v4184 = vpack.c.b16 %v3801, %v3800
      %v4185 = vpack.c.b16 %v3803, %v3802
      %v4186 = vpack.c.b16 %v3805, %v3804
      %v4187 = vpack.c.b16 %v3807, %v3806
      %v4188 = vpack.c.b16 %v3809, %v3808
      %v4189 = vpack.c.b16 %v3811, %v3810
      %v4190 = vpack.c.b16 %v3813, %v3812
      %v4191 = vpack.c.b16 %v3815, %v3814
      %v4192 = vpack.c.b16 %v3817, %v3816
      %v4193 = vpack.c.b16 %v3819, %v3818
      %v4194 = vpack.c.b16 %v3821, %v3820
      %v4195 = vpack.c.b16 %v3823, %v3822
      %v4196 = vpack.c.b16 %v3825, %v3824
      %v4197 = vpack.c.b16 %v3827, %v3826
      %v4198 = vpack.c.b16 %v3829, %v3828
      %v4199 = vpack.c.b16 %v3831, %v3830
      %v4200 = vpack.c.b16 %v3833, %v3832
      %v4201 = vpack.c.b16 %v3835, %v3834
      %v4202 = vpack.c.b16 %v3837, %v3836
      %v4203 = vpack.c.b16 %v3839, %v3838
      %v4204 = vpack.c.b16 %v3841, %v3840
      %v4205 = vpack.c.b16 %v3843, %v3842
      %v4206 = vpack.c.b16 %v3845, %v3844
      %v4207 = vpack.c.b16 %v3847, %v3846
      %v4208 = vpack.c.b16 %v3849, %v3848
      %v4209 = vpack.c.b16 %v3851, %v3850
      %v4210 = vpack.c.b16 %v3853, %v3852
      %v4211 = vpack.c.b16 %v3855, %v3854
      %v4212 = vpack.c.b16 %v3857, %v3856
      %v4213 = vpack.c.b16 %v3859, %v3858
      %v4214 = vpack.c.b16 %v3861, %v3860
      %v4215 = vpack.c.b16 %v3863, %v3862
      %v4216 = vpack.c.b16 %v3865, %v3864
      %v4217 = vpack.c.b16 %v3867, %v3866
      %v4218 = vpack.c.b16 %v3869, %v3868
      %v4219 = vpack.c.b16 %v3871, %v3870
      %v4220 = vpack.c.b16 %v3873, %v3872
      %v4221 = vpack.c.b16 %v3875, %v3874
      %v4222 = vpack.c.b16 %v3877, %v3876
      %v4223 = vpack.c.b16 %v3879, %v3878
      %v4224 = vpack.c.b16 %v3881, %v3880
      %v4225 = vpack.c.b16 %v3883, %v3882
      %v4226 = vpack.c.b16 %v3885, %v3884
      %v4227 = vpack.c.b16 %v3887, %v3886
      %v4228 = vpack.c.b16 %v3889, %v3888
      %v4229 = vpack.c.b16 %v3891, %v3890
      %v4230 = vpack.c.b16 %v3893, %v3892
      %v4231 = vpack.c.b16 %v3895, %v3894
      %v4232 = vpack.c.b16 %v3897, %v3896
      %v4233 = vpack.c.b16 %v3899, %v3898
      %v4234 = vpack.c.b16 %v3901, %v3900
      %v4235 = vpack.c.b16 %v3903, %v3902
      %v4236 = vpack.c.b16 %v3905, %v3904
      %v4237 = vpack.c.b16 %v3907, %v3906
      %v4238 = vpack.c.b16 %v3909, %v3908
      %v4239 = vpack.c.b16 %v3911, %v3910
      %v4240 = vpack.c.b16 %v3913, %v3912
      %v4241 = vpack.c.b16 %v3915, %v3914
      %v4242 = vpack.c.b16 %v3917, %v3916
      %v4243 = vpack.c.b16 %v3919, %v3918
      %v4244 = vpack.c.b16 %v3921, %v3920
      %v4245 = vpack.c.b16 %v3923, %v3922
      %v4246 = vpack.c.b16 %v3925, %v3924
      %v4247 = vpack.c.b16 %v3927, %v3926
      %v4248 = vpack.c.b16 %v3929, %v3928
      %v4249 = vpack.c.b16 %v3931, %v3930
      %v4250 = vpack.c.b16 %v3933, %v3932
      %v4251 = vpack.c.b16 %v3935, %v3934
      %v4252 = vpack.c.b16 %v3937, %v3936
      %v4253 = vpack.c.b16 %v3939, %v3938
      %v4254 = vpack.c.b16 %v3941, %v3940
      %v4255 = vpack.c.b16 %v3943, %v3942
      %v4256 = vpack.c.b16 %v3945, %v3944
      %v4257 = vpack.c.b16 %v3947, %v3946
      %v4258 = vpack.c.b16 %v3949, %v3948
      %v4259 = vpack.c.b16 %v3951, %v3950
      %v4260 = vpack.c.b16 %v3953, %v3952
      %v4261 = vpack.c.b16 %v3955, %v3954
      %v4262 = vpack.c.b16 %v3957, %v3956
      %v4263 = vpack.c.b16 %v3959, %v3958
      %v4264 = vpack.c.b16 %v3961, %v3960
      %v4265 = vpack.c.b16 %v3963, %v3962
      %v4266 = vpack.c.b16 %v3965, %v3964
      %v4267 = vpack.c.b16 %v3967, %v3966
      %v4268 = vpack.c.b16 %v3969, %v3968
      %v4269 = vpack.c.b16 %v3971, %v3970
      %v4270 = vpack.c.b16 %v3973, %v3972
      %v4271 = vpack.c.b16 %v3975, %v3974
      %v4272 = vpack.c.b16 %v3977, %v3976
      %v4273 = vpack.c.b16 %v3979, %v3978
      %v4274 = vpack.c.b16 %v3981, %v3980
      %v4275 = vpack.c.b16 %v3983, %v3982
      %v4276 = vpack.c.b16 %v3985, %v3984
      %v4277 = vpack.c.b16 %v3987, %v3986
      %v4278 = vpack.c.b16 %v3989, %v3988
      %v4279 = vpack.c.b16 %v3991, %v3990
      %v4280 = vpack.c.b16 %v3993, %v3992
      %v4281 = vpack.c.b16 %v3995, %v3994
      %v4282 = vpack.c.b16 %v3997, %v3996
      %v4283 = vpack.c.b16 %v3999, %v3998
      %v4284 = vpack.c.b16 %v4001, %v4000
      %v4285 = vpack.c.b16 %v4003, %v4002
      %v4286 = vpack.c.b16 %v4005, %v4004
      %v4287 = vpack.c.b16 %v4007, %v4006
      %v4288 = vpack.c.b16 %v4009, %v4008
      %v4289 = vpack.c.b16 %v4011, %v4010
      %v4290 = vpack.c.b16 %v4013, %v4012
      %v4291 = vpack.c.b16 %v4015, %v4014
      %v4292 = vpack.c.b16 %v4017, %v4016
      %v4293 = vpack.c.b16 %v4019, %v4018
      %v4294 = vpack.c.b16 %v4021, %v4020
      %v4295 = vpack.c.b16 %v4023, %v4022
      %v4296 = vpack.c.b16 %v4025, %v4024
      %v4297 = vpack.c.b16 %v4027, %v4026
      %v4298 = vpack.c.b16 %v4029, %v4028
      %v4299 = vpack.c.b16 %v4031, %v4030
      %v4300 = vpack.c.b16 %v4033, %v4032
      %v4301 = vpack.c.b16 %v4035, %v4034
      %v4302 = vpack.c.b16 %v4037, %v4036
      %v4303 = vpack.c.b16 %v4039, %v4038
      %v4304 = vpack.c.b16 %v4041, %v4040
      %v4305 = vpack.c.b16 %v4043, %v4042
      %v4306 = vpack.c.b16 %v4045, %v4044
      %v4307 = vpack.c.b16 %v4047, %v4046
      %v4308 = vpack.c.b16 %v4049, %v4048
      %v4309 = vpack.c.b16 %v4051, %v4050
      %v4310 = vpack.c.b16 %v4053, %v4052
      %v4311 = vpack.c.b16 %v4055, %v4054
      %4568 = vmatprep.subr.bf16.mxu0 0
      %4569 = vmatpush1.bf16.msra.mxu0 %v4056
      %4570 = vmatprep.subr.bf16.mxu0 0
      %4571 = vmatpush1.bf16.msra.mxu0 %v4057
      %4572 = vmatprep.subr.bf16.mxu0 0
      %4573 = vmatpush1.bf16.msra.mxu0 %v4058
      %4574 = vmatprep.subr.bf16.mxu0 0
      %4575 = vmatpush1.bf16.msra.mxu0 %v4059
      %4576 = vmatprep.subr.bf16.mxu0 0
      %4577 = vmatpush1.bf16.msra.mxu0 %v4060
      %4578 = vmatprep.subr.bf16.mxu0 0
      %4579 = vmatpush1.bf16.msra.mxu0 %v4061
      %4580 = vmatprep.subr.bf16.mxu0 0
      %4581 = vmatpush1.bf16.msra.mxu0 %v4062
      %4582 = vmatprep.subr.bf16.mxu0 0
      %4583 = vmatpush1.bf16.msra.mxu0 %v4063
      %4584 = vmatprep.subr.bf16.mxu0 0
      %4585 = vmatpush1.bf16.msra.mxu0 %v4064
      %4586 = vmatprep.subr.bf16.mxu0 0
      %4587 = vmatpush1.bf16.msra.mxu0 %v4065
      %4588 = vmatprep.subr.bf16.mxu0 0
      %4589 = vmatpush1.bf16.msra.mxu0 %v4066
      %4590 = vmatprep.subr.bf16.mxu0 0
      %4591 = vmatpush1.bf16.msra.mxu0 %v4067
      %4592 = vmatprep.subr.bf16.mxu0 0
      %4593 = vmatpush1.bf16.msra.mxu0 %v4068
      %4594 = vmatprep.subr.bf16.mxu0 0
      %4595 = vmatpush1.bf16.msra.mxu0 %v4069
      %4596 = vmatprep.subr.bf16.mxu0 0
      %4597 = vmatpush1.bf16.msra.mxu0 %v4070
      %4598 = vmatprep.subr.bf16.mxu0 0
      %4599 = vmatpush1.bf16.msra.mxu0 %v4071
      %4600 = vmatprep.mubr.bf16.mxu0 %v2488
      %4601 = vmatmul.mubr.bf16.gmra.mrb[0].mxu0 %v2487
      %v4602 = vpop.f32.mrb[0].mxu0
      %v4603 = vadd.f32 %v3031, %v4602
      %v4604 = vpop.f32.mrb[0].mxu0
      %v4605 = vpop.f32.mrb[0].mxu0
      %v4606 = vpop.f32.mrb[0].mxu0
      %4607 = vdwg.mxu0
      %4608 = vmatprep.subr.bf16.mxu0 0
      %4609 = vmatpush1.bf16.msra.mxu0 %v4072
      %4610 = vmatprep.subr.bf16.mxu0 0
      %4611 = vmatpush1.bf16.msra.mxu0 %v4073
      %4612 = vmatprep.subr.bf16.mxu0 0
      %4613 = vmatpush1.bf16.msra.mxu0 %v4074
      %4614 = vmatprep.subr.bf16.mxu0 0
      %4615 = vmatpush1.bf16.msra.mxu0 %v4075
      %4616 = vmatprep.subr.bf16.mxu0 0
      %4617 = vmatpush1.bf16.msra.mxu0 %v4076
      %4618 = vmatprep.subr.bf16.mxu0 0
      %4619 = vmatpush1.bf16.msra.mxu0 %v4077
      %4620 = vmatprep.subr.bf16.mxu0 0
      %4621 = vmatpush1.bf16.msra.mxu0 %v4078
      %4622 = vmatprep.subr.bf16.mxu0 0
      %4623 = vmatpush1.bf16.msra.mxu0 %v4079
      %4624 = vmatprep.subr.bf16.mxu0 0
      %4625 = vmatpush1.bf16.msra.mxu0 %v4080
      %4626 = vmatprep.subr.bf16.mxu0 0
      %4627 = vmatpush1.bf16.msra.mxu0 %v4081
      %4628 = vmatprep.subr.bf16.mxu0 0
      %4629 = vmatpush1.bf16.msra.mxu0 %v4082
      %4630 = vmatprep.subr.bf16.mxu0 0
      %4631 = vmatpush1.bf16.msra.mxu0 %v4083
      %4632 = vmatprep.subr.bf16.mxu0 0
      %4633 = vmatpush1.bf16.msra.mxu0 %v4084
      %4634 = vmatprep.subr.bf16.mxu0 0
      %4635 = vmatpush1.bf16.msra.mxu0 %v4085
      %4636 = vmatprep.subr.bf16.mxu0 0
      %4637 = vmatpush1.bf16.msra.mxu0 %v4086
      %4638 = vmatprep.subr.bf16.mxu0 0
      %4639 = vmatpush1.bf16.msra.mxu0 %v4087
      %4640 = vmatprep.mubr.bf16.mxu0 %v2490
      %4641 = vmatmul.mubr.bf16.gmra.mrb[0].mxu0 %v2489
      %v4642 = vpop.f32.mrb[0].mxu0
      %v4643 = vadd.f32 %v4603, %v4642
      %v4644 = vpop.f32.mrb[0].mxu0
      %v4645 = vpop.f32.mrb[0].mxu0
      %v4646 = vpop.f32.mrb[0].mxu0
      %4647 = vdwg.mxu0
      %4648 = vmatprep.subr.bf16.mxu0 0
      %4649 = vmatpush1.bf16.msra.mxu0 %v4088
      %4650 = vmatprep.subr.bf16.mxu0 0
      %4651 = vmatpush1.bf16.msra.mxu0 %v4089
      %4652 = vmatprep.subr.bf16.mxu0 0
      %4653 = vmatpush1.bf16.msra.mxu0 %v4090
      %4654 = vmatprep.subr.bf16.mxu0 0
      %4655 = vmatpush1.bf16.msra.mxu0 %v4091
      %4656 = vmatprep.subr.bf16.mxu0 0
      %4657 = vmatpush1.bf16.msra.mxu0 %v4092
      %4658 = vmatprep.subr.bf16.mxu0 0
      %4659 = vmatpush1.bf16.msra.mxu0 %v4093
      %4660 = vmatprep.subr.bf16.mxu0 0
      %4661 = vmatpush1.bf16.msra.mxu0 %v4094
      %4662 = vmatprep.subr.bf16.mxu0 0
      %4663 = vmatpush1.bf16.msra.mxu0 %v4095
      %4664 = vmatprep.subr.bf16.mxu0 0
      %4665 = vmatpush1.bf16.msra.mxu0 %v4096
      %4666 = vmatprep.subr.bf16.mxu0 0
      %4667 = vmatpush1.bf16.msra.mxu0 %v4097
      %4668 = vmatprep.subr.bf16.mxu0 0
      %4669 = vmatpush1.bf16.msra.mxu0 %v4098
      %4670 = vmatprep.subr.bf16.mxu0 0
      %4671 = vmatpush1.bf16.msra.mxu0 %v4099
      %4672 = vmatprep.subr.bf16.mxu0 0
      %4673 = vmatpush1.bf16.msra.mxu0 %v4100
      %4674 = vmatprep.subr.bf16.mxu0 0
      %4675 = vmatpush1.bf16.msra.mxu0 %v4101
      %4676 = vmatprep.subr.bf16.mxu0 0
      %4677 = vmatpush1.bf16.msra.mxu0 %v4102
      %4678 = vmatprep.subr.bf16.mxu0 0
      %4679 = vmatpush1.bf16.msra.mxu0 %v4103
      %4680 = vmatprep.mubr.bf16.mxu0 %v2492
      %4681 = vmatmul.mubr.bf16.gmra.mrb[0].mxu0 %v2491
      %v4682 = vpop.f32.mrb[0].mxu0
      %v4683 = vadd.f32 %v4643, %v4682
      %v4684 = vpop.f32.mrb[0].mxu0
      %v4685 = vpop.f32.mrb[0].mxu0
      %v4686 = vpop.f32.mrb[0].mxu0
      %4687 = vdwg.mxu0
      %4688 = vmatprep.subr.bf16.mxu0 0
      %4689 = vmatpush1.bf16.msra.mxu0 %v4104
      %4690 = vmatprep.subr.bf16.mxu0 0
      %4691 = vmatpush1.bf16.msra.mxu0 %v4105
      %4692 = vmatprep.subr.bf16.mxu0 0
      %4693 = vmatpush1.bf16.msra.mxu0 %v4106
      %4694 = vmatprep.subr.bf16.mxu0 0
      %4695 = vmatpush1.bf16.msra.mxu0 %v4107
      %4696 = vmatprep.subr.bf16.mxu0 0
      %4697 = vmatpush1.bf16.msra.mxu0 %v4108
      %4698 = vmatprep.subr.bf16.mxu0 0
      %4699 = vmatpush1.bf16.msra.mxu0 %v4109
      %4700 = vmatprep.subr.bf16.mxu0 0
      %4701 = vmatpush1.bf16.msra.mxu0 %v4110
      %4702 = vmatprep.subr.bf16.mxu0 0
      %4703 = vmatpush1.bf16.msra.mxu0 %v4111
      %4704 = vmatprep.subr.bf16.mxu0 0
      %4705 = vmatpush1.bf16.msra.mxu0 %v4112
      %4706 = vmatprep.subr.bf16.mxu0 0
      %4707 = vmatpush1.bf16.msra.mxu0 %v4113
      %4708 = vmatprep.subr.bf16.mxu0 0
      %4709 = vmatpush1.bf16.msra.mxu0 %v4114
      %4710 = vmatprep.subr.bf16.mxu0 0
      %4711 = vmatpush1.bf16.msra.mxu0 %v4115
      %4712 = vmatprep.subr.bf16.mxu0 0
      %4713 = vmatpush1.bf16.msra.mxu0 %v4116
      %4714 = vmatprep.subr.bf16.mxu0 0
      %4715 = vmatpush1.bf16.msra.mxu0 %v4117
      %4716 = vmatprep.subr.bf16.mxu0 0
      %4717 = vmatpush1.bf16.msra.mxu0 %v4118
      %4718 = vmatprep.subr.bf16.mxu0 0
      %4719 = vmatpush1.bf16.msra.mxu0 %v4119
      %4720 = vmatprep.mubr.bf16.mxu0 %v2494
      %4721 = vmatmul.mubr.bf16.gmra.mrb[0].mxu0 %v2493
      %v4722 = vpop.f32.mrb[0].mxu0
      %v4723 = vadd.f32 %v4683, %v4722
      %v4724 = vpop.f32.mrb[0].mxu0
      %v4725 = vpop.f32.mrb[0].mxu0
      %v4726 = vpop.f32.mrb[0].mxu0
      %4727 = vdwg.mxu0
      %4728 = vmatprep.subr.bf16.mxu0 0
      %4729 = vmatpush1.bf16.msra.mxu0 %v4120
      %4730 = vmatprep.subr.bf16.mxu0 0
      %4731 = vmatpush1.bf16.msra.mxu0 %v4121
      %4732 = vmatprep.subr.bf16.mxu0 0
      %4733 = vmatpush1.bf16.msra.mxu0 %v4122
      %4734 = vmatprep.subr.bf16.mxu0 0
      %4735 = vmatpush1.bf16.msra.mxu0 %v4123
      %4736 = vmatprep.subr.bf16.mxu0 0
      %4737 = vmatpush1.bf16.msra.mxu0 %v4124
      %4738 = vmatprep.subr.bf16.mxu0 0
      %4739 = vmatpush1.bf16.msra.mxu0 %v4125
      %4740 = vmatprep.subr.bf16.mxu0 0
      %4741 = vmatpush1.bf16.msra.mxu0 %v4126
      %4742 = vmatprep.subr.bf16.mxu0 0
      %4743 = vmatpush1.bf16.msra.mxu0 %v4127
      %4744 = vmatprep.subr.bf16.mxu0 0
      %4745 = vmatpush1.bf16.msra.mxu0 %v4128
      %4746 = vmatprep.subr.bf16.mxu0 0
      %4747 = vmatpush1.bf16.msra.mxu0 %v4129
      %4748 = vmatprep.subr.bf16.mxu0 0
      %4749 = vmatpush1.bf16.msra.mxu0 %v4130
      %4750 = vmatprep.subr.bf16.mxu0 0
      %4751 = vmatpush1.bf16.msra.mxu0 %v4131
      %4752 = vmatprep.subr.bf16.mxu0 0
      %4753 = vmatpush1.bf16.msra.mxu0 %v4132
      %4754 = vmatprep.subr.bf16.mxu0 0
      %4755 = vmatpush1.bf16.msra.mxu0 %v4133
      %4756 = vmatprep.subr.bf16.mxu0 0
      %4757 = vmatpush1.bf16.msra.mxu0 %v4134
      %4758 = vmatprep.subr.bf16.mxu0 0
      %4759 = vmatpush1.bf16.msra.mxu0 %v4135
      %4760 = vmatprep.mubr.bf16.mxu0 %v2496
      %4761 = vmatmul.mubr.bf16.gmra.mrb[0].mxu0 %v2495
      %v4762 = vpop.f32.mrb[0].mxu0
      %v4763 = vadd.f32 %v4723, %v4762
      %v4764 = vpop.f32.mrb[0].mxu0
      %v4765 = vpop.f32.mrb[0].mxu0
      %v4766 = vpop.f32.mrb[0].mxu0
      %4767 = vdwg.mxu0
      %4768 = vmatprep.subr.bf16.mxu0 0
      %4769 = vmatpush1.bf16.msra.mxu0 %v4136
      %4770 = vmatprep.subr.bf16.mxu0 0
      %4771 = vmatpush1.bf16.msra.mxu0 %v4137
      %4772 = vmatprep.subr.bf16.mxu0 0
      %4773 = vmatpush1.bf16.msra.mxu0 %v4138
      %4774 = vmatprep.subr.bf16.mxu0 0
      %4775 = vmatpush1.bf16.msra.mxu0 %v4139
      %4776 = vmatprep.subr.bf16.mxu0 0
      %4777 = vmatpush1.bf16.msra.mxu0 %v4140
      %4778 = vmatprep.subr.bf16.mxu0 0
      %4779 = vmatpush1.bf16.msra.mxu0 %v4141
      %4780 = vmatprep.subr.bf16.mxu0 0
      %4781 = vmatpush1.bf16.msra.mxu0 %v4142
      %4782 = vmatprep.subr.bf16.mxu0 0
      %4783 = vmatpush1.bf16.msra.mxu0 %v4143
      %4784 = vmatprep.subr.bf16.mxu0 0
      %4785 = vmatpush1.bf16.msra.mxu0 %v4144
      %4786 = vmatprep.subr.bf16.mxu0 0
      %4787 = vmatpush1.bf16.msra.mxu0 %v4145
      %4788 = vmatprep.subr.bf16.mxu0 0
      %4789 = vmatpush1.bf16.msra.mxu0 %v4146
      %4790 = vmatprep.subr.bf16.mxu0 0
      %4791 = vmatpush1.bf16.msra.mxu0 %v4147
      %4792 = vmatprep.subr.bf16.mxu0 0
      %4793 = vmatpush1.bf16.msra.mxu0 %v4148
      %4794 = vmatprep.subr.bf16.mxu0 0
      %4795 = vmatpush1.bf16.msra.mxu0 %v4149
      %4796 = vmatprep.subr.bf16.mxu0 0
      %4797 = vmatpush1.bf16.msra.mxu0 %v4150
      %4798 = vmatprep.subr.bf16.mxu0 0
      %4799 = vmatpush1.bf16.msra.mxu0 %v4151
      %4800 = vmatprep.mubr.bf16.mxu0 %v2498
      %4801 = vmatmul.mubr.bf16.gmra.mrb[0].mxu0 %v2497
      %v4802 = vpop.f32.mrb[0].mxu0
      %v4803 = vadd.f32 %v4763, %v4802
      %v4804 = vpop.f32.mrb[0].mxu0
      %v4805 = vpop.f32.mrb[0].mxu0
      %v4806 = vpop.f32.mrb[0].mxu0
      %4807 = vdwg.mxu0
      %4808 = vmatprep.subr.bf16.mxu0 0
      %4809 = vmatpush1.bf16.msra.mxu0 %v4152
      %4810 = vmatprep.subr.bf16.mxu0 0
      %4811 = vmatpush1.bf16.msra.mxu0 %v4153
      %4812 = vmatprep.subr.bf16.mxu0 0
      %4813 = vmatpush1.bf16.msra.mxu0 %v4154
      %4814 = vmatprep.subr.bf16.mxu0 0
      %4815 = vmatpush1.bf16.msra.mxu0 %v4155
      %4816 = vmatprep.subr.bf16.mxu0 0
      %4817 = vmatpush1.bf16.msra.mxu0 %v4156
      %4818 = vmatprep.subr.bf16.mxu0 0
      %4819 = vmatpush1.bf16.msra.mxu0 %v4157
      %4820 = vmatprep.subr.bf16.mxu0 0
      %4821 = vmatpush1.bf16.msra.mxu0 %v4158
      %4822 = vmatprep.subr.bf16.mxu0 0
      %4823 = vmatpush1.bf16.msra.mxu0 %v4159
      %4824 = vmatprep.subr.bf16.mxu0 0
      %4825 = vmatpush1.bf16.msra.mxu0 %v4160
      %4826 = vmatprep.subr.bf16.mxu0 0
      %4827 = vmatpush1.bf16.msra.mxu0 %v4161
      %4828 = vmatprep.subr.bf16.mxu0 0
      %4829 = vmatpush1.bf16.msra.mxu0 %v4162
      %4830 = vmatprep.subr.bf16.mxu0 0
      %4831 = vmatpush1.bf16.msra.mxu0 %v4163
      %4832 = vmatprep.subr.bf16.mxu0 0
      %4833 = vmatpush1.bf16.msra.mxu0 %v4164
      %4834 = vmatprep.subr.bf16.mxu0 0
      %4835 = vmatpush1.bf16.msra.mxu0 %v4165
      %4836 = vmatprep.subr.bf16.mxu0 0
      %4837 = vmatpush1.bf16.msra.mxu0 %v4166
      %4838 = vmatprep.subr.bf16.mxu0 0
      %4839 = vmatpush1.bf16.msra.mxu0 %v4167
      %4840 = vmatprep.mubr.bf16.mxu0 %v2500
      %4841 = vmatmul.mubr.bf16.gmra.mrb[0].mxu0 %v2499
      %v4842 = vpop.f32.mrb[0].mxu0
      %v4843 = vadd.f32 %v4803, %v4842
      %v4844 = vpop.f32.mrb[0].mxu0
      %v4845 = vpop.f32.mrb[0].mxu0
      %v4846 = vpop.f32.mrb[0].mxu0
      %4847 = vdwg.mxu0
      %4848 = vmatprep.subr.bf16.mxu0 0
      %4849 = vmatpush1.bf16.msra.mxu0 %v4168
      %4850 = vmatprep.subr.bf16.mxu0 0
      %4851 = vmatpush1.bf16.msra.mxu0 %v4169
      %4852 = vmatprep.subr.bf16.mxu0 0
      %4853 = vmatpush1.bf16.msra.mxu0 %v4170
      %4854 = vmatprep.subr.bf16.mxu0 0
      %4855 = vmatpush1.bf16.msra.mxu0 %v4171
      %4856 = vmatprep.subr.bf16.mxu0 0
      %4857 = vmatpush1.bf16.msra.mxu0 %v4172
      %4858 = vmatprep.subr.bf16.mxu0 0
      %4859 = vmatpush1.bf16.msra.mxu0 %v4173
      %4860 = vmatprep.subr.bf16.mxu0 0
      %4861 = vmatpush1.bf16.msra.mxu0 %v4174
      %4862 = vmatprep.subr.bf16.mxu0 0
      %4863 = vmatpush1.bf16.msra.mxu0 %v4175
      %4864 = vmatprep.subr.bf16.mxu0 0
      %4865 = vmatpush1.bf16.msra.mxu0 %v4176
      %4866 = vmatprep.subr.bf16.mxu0 0
      %4867 = vmatpush1.bf16.msra.mxu0 %v4177
      %4868 = vmatprep.subr.bf16.mxu0 0
      %4869 = vmatpush1.bf16.msra.mxu0 %v4178
      %4870 = vmatprep.subr.bf16.mxu0 0
      %4871 = vmatpush1.bf16.msra.mxu0 %v4179
      %4872 = vmatprep.subr.bf16.mxu0 0
      %4873 = vmatpush1.bf16.msra.mxu0 %v4180
      %4874 = vmatprep.subr.bf16.mxu0 0
      %4875 = vmatpush1.bf16.msra.mxu0 %v4181
      %4876 = vmatprep.subr.bf16.mxu0 0
      %4877 = vmatpush1.bf16.msra.mxu0 %v4182
      %4878 = vmatprep.subr.bf16.mxu0 0
      %4879 = vmatpush1.bf16.msra.mxu0 %v4183
      %4880 = vmatprep.mubr.bf16.mxu0 %v2502
      %4881 = vmatmul.mubr.bf16.gmra.mrb[0].mxu0 %v2501
      %v4882 = vpop.f32.mrb[0].mxu0
      %v4883 = vadd.f32 %v4843, %v4882
      %v4884 = vpop.f32.mrb[0].mxu0
      %v4885 = vpop.f32.mrb[0].mxu0
      %v4886 = vpop.f32.mrb[0].mxu0
      %4887 = vdwg.mxu0
      %4888 = vmatprep.subr.bf16.mxu0 0
      %4889 = vmatpush1.bf16.msra.mxu0 %v4184
      %4890 = vmatprep.subr.bf16.mxu0 0
      %4891 = vmatpush1.bf16.msra.mxu0 %v4185
      %4892 = vmatprep.subr.bf16.mxu0 0
      %4893 = vmatpush1.bf16.msra.mxu0 %v4186
      %4894 = vmatprep.subr.bf16.mxu0 0
      %4895 = vmatpush1.bf16.msra.mxu0 %v4187
      %4896 = vmatprep.subr.bf16.mxu0 0
      %4897 = vmatpush1.bf16.msra.mxu0 %v4188
      %4898 = vmatprep.subr.bf16.mxu0 0
      %4899 = vmatpush1.bf16.msra.mxu0 %v4189
      %4900 = vmatprep.subr.bf16.mxu0 0
      %4901 = vmatpush1.bf16.msra.mxu0 %v4190
      %4902 = vmatprep.subr.bf16.mxu0 0
      %4903 = vmatpush1.bf16.msra.mxu0 %v4191
      %4904 = vmatprep.subr.bf16.mxu0 0
      %4905 = vmatpush1.bf16.msra.mxu0 %v4192
      %4906 = vmatprep.subr.bf16.mxu0 0
      %4907 = vmatpush1.bf16.msra.mxu0 %v4193
      %4908 = vmatprep.subr.bf16.mxu0 0
      %4909 = vmatpush1.bf16.msra.mxu0 %v4194
      %4910 = vmatprep.subr.bf16.mxu0 0
      %4911 = vmatpush1.bf16.msra.mxu0 %v4195
      %4912 = vmatprep.subr.bf16.mxu0 0
      %4913 = vmatpush1.bf16.msra.mxu0 %v4196
      %4914 = vmatprep.subr.bf16.mxu0 0
      %4915 = vmatpush1.bf16.msra.mxu0 %v4197
      %4916 = vmatprep.subr.bf16.mxu0 0
      %4917 = vmatpush1.bf16.msra.mxu0 %v4198
      %4918 = vmatprep.subr.bf16.mxu0 0
      %4919 = vmatpush1.bf16.msra.mxu0 %v4199
      %4920 = vmatprep.mubr.bf16.mxu0 %v2504
      %4921 = vmatmul.mubr.bf16.gmra.mrb[0].mxu0 %v2503
      %v4922 = vpop.f32.mrb[0].mxu0
      %v4923 = vadd.f32 %v4883, %v4922
      %v4924 = vpop.f32.mrb[0].mxu0
      %v4925 = vpop.f32.mrb[0].mxu0
      %v4926 = vpop.f32.mrb[0].mxu0
      %4927 = vdwg.mxu0
      %4928 = vmatprep.subr.bf16.mxu0 0
      %4929 = vmatpush1.bf16.msra.mxu0 %v4200
      %4930 = vmatprep.subr.bf16.mxu0 0
      %4931 = vmatpush1.bf16.msra.mxu0 %v4201
      %4932 = vmatprep.subr.bf16.mxu0 0
      %4933 = vmatpush1.bf16.msra.mxu0 %v4202
      %4934 = vmatprep.subr.bf16.mxu0 0
      %4935 = vmatpush1.bf16.msra.mxu0 %v4203
      %4936 = vmatprep.subr.bf16.mxu0 0
      %4937 = vmatpush1.bf16.msra.mxu0 %v4204
      %4938 = vmatprep.subr.bf16.mxu0 0
      %4939 = vmatpush1.bf16.msra.mxu0 %v4205
      %4940 = vmatprep.subr.bf16.mxu0 0
      %4941 = vmatpush1.bf16.msra.mxu0 %v4206
      %4942 = vmatprep.subr.bf16.mxu0 0
      %4943 = vmatpush1.bf16.msra.mxu0 %v4207
      %4944 = vmatprep.subr.bf16.mxu0 0
      %4945 = vmatpush1.bf16.msra.mxu0 %v4208
      %4946 = vmatprep.subr.bf16.mxu0 0
      %4947 = vmatpush1.bf16.msra.mxu0 %v4209
      %4948 = vmatprep.subr.bf16.mxu0 0
      %4949 = vmatpush1.bf16.msra.mxu0 %v4210
      %4950 = vmatprep.subr.bf16.mxu0 0
      %4951 = vmatpush1.bf16.msra.mxu0 %v4211
      %4952 = vmatprep.subr.bf16.mxu0 0
      %4953 = vmatpush1.bf16.msra.mxu0 %v4212
      %4954 = vmatprep.subr.bf16.mxu0 0
      %4955 = vmatpush1.bf16.msra.mxu0 %v4213
      %4956 = vmatprep.subr.bf16.mxu0 0
      %4957 = vmatpush1.bf16.msra.mxu0 %v4214
      %4958 = vmatprep.subr.bf16.mxu0 0
      %4959 = vmatpush1.bf16.msra.mxu0 %v4215
      %4960 = vmatprep.mubr.bf16.mxu0 %v2506
      %4961 = vmatmul.mubr.bf16.gmra.mrb[0].mxu0 %v2505
      %v4962 = vpop.f32.mrb[0].mxu0
      %v4963 = vadd.f32 %v4923, %v4962
      %v4964 = vpop.f32.mrb[0].mxu0
      %v4965 = vpop.f32.mrb[0].mxu0
      %v4966 = vpop.f32.mrb[0].mxu0
      %4967 = vdwg.mxu0
      %4968 = vmatprep.subr.bf16.mxu0 0
      %4969 = vmatpush1.bf16.msra.mxu0 %v4216
      %4970 = vmatprep.subr.bf16.mxu0 0
      %4971 = vmatpush1.bf16.msra.mxu0 %v4217
      %4972 = vmatprep.subr.bf16.mxu0 0
      %4973 = vmatpush1.bf16.msra.mxu0 %v4218
      %4974 = vmatprep.subr.bf16.mxu0 0
      %4975 = vmatpush1.bf16.msra.mxu0 %v4219
      %4976 = vmatprep.subr.bf16.mxu0 0
      %4977 = vmatpush1.bf16.msra.mxu0 %v4220
      %4978 = vmatprep.subr.bf16.mxu0 0
      %4979 = vmatpush1.bf16.msra.mxu0 %v4221
      %4980 = vmatprep.subr.bf16.mxu0 0
      %4981 = vmatpush1.bf16.msra.mxu0 %v4222
      %4982 = vmatprep.subr.bf16.mxu0 0
      %4983 = vmatpush1.bf16.msra.mxu0 %v4223
      %4984 = vmatprep.subr.bf16.mxu0 0
      %4985 = vmatpush1.bf16.msra.mxu0 %v4224
      %4986 = vmatprep.subr.bf16.mxu0 0
      %4987 = vmatpush1.bf16.msra.mxu0 %v4225
      %4988 = vmatprep.subr.bf16.mxu0 0
      %4989 = vmatpush1.bf16.msra.mxu0 %v4226
      %4990 = vmatprep.subr.bf16.mxu0 0
      %4991 = vmatpush1.bf16.msra.mxu0 %v4227
      %4992 = vmatprep.subr.bf16.mxu0 0
      %4993 = vmatpush1.bf16.msra.mxu0 %v4228
      %4994 = vmatprep.subr.bf16.mxu0 0
      %4995 = vmatpush1.bf16.msra.mxu0 %v4229
      %4996 = vmatprep.subr.bf16.mxu0 0
      %4997 = vmatpush1.bf16.msra.mxu0 %v4230
      %4998 = vmatprep.subr.bf16.mxu0 0
      %4999 = vmatpush1.bf16.msra.mxu0 %v4231
      %5000 = vmatprep.mubr.bf16.mxu0 %v2508
      %5001 = vmatmul.mubr.bf16.gmra.mrb[0].mxu0 %v2507
      %v5002 = vpop.f32.mrb[0].mxu0
      %v5003 = vadd.f32 %v4963, %v5002
      %v5004 = vpop.f32.mrb[0].mxu0
      %v5005 = vpop.f32.mrb[0].mxu0
      %v5006 = vpop.f32.mrb[0].mxu0
      %5007 = vdwg.mxu0
      %5008 = vmatprep.subr.bf16.mxu0 0
      %5009 = vmatpush1.bf16.msra.mxu0 %v4232
      %5010 = vmatprep.subr.bf16.mxu0 0
      %5011 = vmatpush1.bf16.msra.mxu0 %v4233
      %5012 = vmatprep.subr.bf16.mxu0 0
      %5013 = vmatpush1.bf16.msra.mxu0 %v4234
      %5014 = vmatprep.subr.bf16.mxu0 0
      %5015 = vmatpush1.bf16.msra.mxu0 %v4235
      %5016 = vmatprep.subr.bf16.mxu0 0
      %5017 = vmatpush1.bf16.msra.mxu0 %v4236
      %5018 = vmatprep.subr.bf16.mxu0 0
      %5019 = vmatpush1.bf16.msra.mxu0 %v4237
      %5020 = vmatprep.subr.bf16.mxu0 0
      %5021 = vmatpush1.bf16.msra.mxu0 %v4238
      %5022 = vmatprep.subr.bf16.mxu0 0
      %5023 = vmatpush1.bf16.msra.mxu0 %v4239
      %5024 = vmatprep.subr.bf16.mxu0 0
      %5025 = vmatpush1.bf16.msra.mxu0 %v4240
      %5026 = vmatprep.subr.bf16.mxu0 0
      %5027 = vmatpush1.bf16.msra.mxu0 %v4241
      %5028 = vmatprep.subr.bf16.mxu0 0
      %5029 = vmatpush1.bf16.msra.mxu0 %v4242
      %5030 = vmatprep.subr.bf16.mxu0 0
      %5031 = vmatpush1.bf16.msra.mxu0 %v4243
      %5032 = vmatprep.subr.bf16.mxu0 0
      %5033 = vmatpush1.bf16.msra.mxu0 %v4244
      %5034 = vmatprep.subr.bf16.mxu0 0
      %5035 = vmatpush1.bf16.msra.mxu0 %v4245
      %5036 = vmatprep.subr.bf16.mxu0 0
      %5037 = vmatpush1.bf16.msra.mxu0 %v4246
      %5038 = vmatprep.subr.bf16.mxu0 0
      %5039 = vmatpush1.bf16.msra.mxu0 %v4247
      %5040 = vmatprep.mubr.bf16.mxu0 %v2510
      %5041 = vmatmul.mubr.bf16.gmra.mrb[0].mxu0 %v2509
      %v5042 = vpop.f32.mrb[0].mxu0
      %v5043 = vadd.f32 %v5003, %v5042
      %v5044 = vpop.f32.mrb[0].mxu0
      %v5045 = vpop.f32.mrb[0].mxu0
      %v5046 = vpop.f32.mrb[0].mxu0
      %5047 = vdwg.mxu0
      %5048 = vmatprep.subr.bf16.mxu0 0
      %5049 = vmatpush1.bf16.msra.mxu0 %v4248
      %5050 = vmatprep.subr.bf16.mxu0 0
      %5051 = vmatpush1.bf16.msra.mxu0 %v4249
      %5052 = vmatprep.subr.bf16.mxu0 0
      %5053 = vmatpush1.bf16.msra.mxu0 %v4250
      %5054 = vmatprep.subr.bf16.mxu0 0
      %5055 = vmatpush1.bf16.msra.mxu0 %v4251
      %5056 = vmatprep.subr.bf16.mxu0 0
      %5057 = vmatpush1.bf16.msra.mxu0 %v4252
      %5058 = vmatprep.subr.bf16.mxu0 0
      %5059 = vmatpush1.bf16.msra.mxu0 %v4253
      %5060 = vmatprep.subr.bf16.mxu0 0
      %5061 = vmatpush1.bf16.msra.mxu0 %v4254
      %5062 = vmatprep.subr.bf16.mxu0 0
      %5063 = vmatpush1.bf16.msra.mxu0 %v4255
      %5064 = vmatprep.subr.bf16.mxu0 0
      %5065 = vmatpush1.bf16.msra.mxu0 %v4256
      %5066 = vmatprep.subr.bf16.mxu0 0
      %5067 = vmatpush1.bf16.msra.mxu0 %v4257
      %5068 = vmatprep.subr.bf16.mxu0 0
      %5069 = vmatpush1.bf16.msra.mxu0 %v4258
      %5070 = vmatprep.subr.bf16.mxu0 0
      %5071 = vmatpush1.bf16.msra.mxu0 %v4259
      %5072 = vmatprep.subr.bf16.mxu0 0
      %5073 = vmatpush1.bf16.msra.mxu0 %v4260
      %5074 = vmatprep.subr.bf16.mxu0 0
      %5075 = vmatpush1.bf16.msra.mxu0 %v4261
      %5076 = vmatprep.subr.bf16.mxu0 0
      %5077 = vmatpush1.bf16.msra.mxu0 %v4262
      %5078 = vmatprep.subr.bf16.mxu0 0
      %5079 = vmatpush1.bf16.msra.mxu0 %v4263
      %5080 = vmatprep.mubr.bf16.mxu0 %v2512
      %5081 = vmatmul.mubr.bf16.gmra.mrb[0].mxu0 %v2511
      %v5082 = vpop.f32.mrb[0].mxu0
      %v5083 = vadd.f32 %v5043, %v5082
      %v5084 = vpop.f32.mrb[0].mxu0
      %v5085 = vpop.f32.mrb[0].mxu0
      %v5086 = vpop.f32.mrb[0].mxu0
      %5087 = vdwg.mxu0
      %5088 = vmatprep.subr.bf16.mxu0 0
      %5089 = vmatpush1.bf16.msra.mxu0 %v4264
      %5090 = vmatprep.subr.bf16.mxu0 0
      %5091 = vmatpush1.bf16.msra.mxu0 %v4265
      %5092 = vmatprep.subr.bf16.mxu0 0
      %5093 = vmatpush1.bf16.msra.mxu0 %v4266
      %5094 = vmatprep.subr.bf16.mxu0 0
      %5095 = vmatpush1.bf16.msra.mxu0 %v4267
      %5096 = vmatprep.subr.bf16.mxu0 0
      %5097 = vmatpush1.bf16.msra.mxu0 %v4268
      %5098 = vmatprep.subr.bf16.mxu0 0
      %5099 = vmatpush1.bf16.msra.mxu0 %v4269
      %5100 = vmatprep.subr.bf16.mxu0 0
      %5101 = vmatpush1.bf16.msra.mxu0 %v4270
      %5102 = vmatprep.subr.bf16.mxu0 0
      %5103 = vmatpush1.bf16.msra.mxu0 %v4271
      %5104 = vmatprep.subr.bf16.mxu0 0
      %5105 = vmatpush1.bf16.msra.mxu0 %v4272
      %5106 = vmatprep.subr.bf16.mxu0 0
      %5107 = vmatpush1.bf16.msra.mxu0 %v4273
      %5108 = vmatprep.subr.bf16.mxu0 0
      %5109 = vmatpush1.bf16.msra.mxu0 %v4274
      %5110 = vmatprep.subr.bf16.mxu0 0
      %5111 = vmatpush1.bf16.msra.mxu0 %v4275
      %5112 = vmatprep.subr.bf16.mxu0 0
      %5113 = vmatpush1.bf16.msra.mxu0 %v4276
      %5114 = vmatprep.subr.bf16.mxu0 0
      %5115 = vmatpush1.bf16.msra.mxu0 %v4277
      %5116 = vmatprep.subr.bf16.mxu0 0
      %5117 = vmatpush1.bf16.msra.mxu0 %v4278
      %5118 = vmatprep.subr.bf16.mxu0 0
      %5119 = vmatpush1.bf16.msra.mxu0 %v4279
      %5120 = vmatprep.mubr.bf16.mxu0 %v2514
      %5121 = vmatmul.mubr.bf16.gmra.mrb[0].mxu0 %v2513
      %v5122 = vpop.f32.mrb[0].mxu0
      %v5123 = vadd.f32 %v5083, %v5122
      %v5124 = vpop.f32.mrb[0].mxu0
      %v5125 = vpop.f32.mrb[0].mxu0
      %v5126 = vpop.f32.mrb[0].mxu0
      %5127 = vdwg.mxu0
      %5128 = vmatprep.subr.bf16.mxu0 0
      %5129 = vmatpush1.bf16.msra.mxu0 %v4280
      %5130 = vmatprep.subr.bf16.mxu0 0
      %5131 = vmatpush1.bf16.msra.mxu0 %v4281
      %5132 = vmatprep.subr.bf16.mxu0 0
      %5133 = vmatpush1.bf16.msra.mxu0 %v4282
      %5134 = vmatprep.subr.bf16.mxu0 0
      %5135 = vmatpush1.bf16.msra.mxu0 %v4283
      %5136 = vmatprep.subr.bf16.mxu0 0
      %5137 = vmatpush1.bf16.msra.mxu0 %v4284
      %5138 = vmatprep.subr.bf16.mxu0 0
      %5139 = vmatpush1.bf16.msra.mxu0 %v4285
      %5140 = vmatprep.subr.bf16.mxu0 0
      %5141 = vmatpush1.bf16.msra.mxu0 %v4286
      %5142 = vmatprep.subr.bf16.mxu0 0
      %5143 = vmatpush1.bf16.msra.mxu0 %v4287
      %5144 = vmatprep.subr.bf16.mxu0 0
      %5145 = vmatpush1.bf16.msra.mxu0 %v4288
      %5146 = vmatprep.subr.bf16.mxu0 0
      %5147 = vmatpush1.bf16.msra.mxu0 %v4289
      %5148 = vmatprep.subr.bf16.mxu0 0
      %5149 = vmatpush1.bf16.msra.mxu0 %v4290
      %5150 = vmatprep.subr.bf16.mxu0 0
      %5151 = vmatpush1.bf16.msra.mxu0 %v4291
      %5152 = vmatprep.subr.bf16.mxu0 0
      %5153 = vmatpush1.bf16.msra.mxu0 %v4292
      %5154 = vmatprep.subr.bf16.mxu0 0
      %5155 = vmatpush1.bf16.msra.mxu0 %v4293
      %5156 = vmatprep.subr.bf16.mxu0 0
      %5157 = vmatpush1.bf16.msra.mxu0 %v4294
      %5158 = vmatprep.subr.bf16.mxu0 0
      %5159 = vmatpush1.bf16.msra.mxu0 %v4295
      %5160 = vmatprep.mubr.bf16.mxu0 %v2516
      %5161 = vmatmul.mubr.bf16.gmra.mrb[0].mxu0 %v2515
      %v5162 = vpop.f32.mrb[0].mxu0
      %v5163 = vadd.f32 %v5123, %v5162
      %v5164 = vpop.f32.mrb[0].mxu0
      %v5165 = vpop.f32.mrb[0].mxu0
      %v5166 = vpop.f32.mrb[0].mxu0
      %5167 = vdwg.mxu0
      %5168 = vmatprep.subr.bf16.mxu0 0
      %5169 = vmatpush1.bf16.msra.mxu0 %v4296
      %5170 = vmatprep.subr.bf16.mxu0 0
      %5171 = vmatpush1.bf16.msra.mxu0 %v4297
      %5172 = vmatprep.subr.bf16.mxu0 0
      %5173 = vmatpush1.bf16.msra.mxu0 %v4298
      %5174 = vmatprep.subr.bf16.mxu0 0
      %5175 = vmatpush1.bf16.msra.mxu0 %v4299
      %5176 = vmatprep.subr.bf16.mxu0 0
      %5177 = vmatpush1.bf16.msra.mxu0 %v4300
      %5178 = vmatprep.subr.bf16.mxu0 0
      %5179 = vmatpush1.bf16.msra.mxu0 %v4301
      %5180 = vmatprep.subr.bf16.mxu0 0
      %5181 = vmatpush1.bf16.msra.mxu0 %v4302
      %5182 = vmatprep.subr.bf16.mxu0 0
      %5183 = vmatpush1.bf16.msra.mxu0 %v4303
      %5184 = vmatprep.subr.bf16.mxu0 0
      %5185 = vmatpush1.bf16.msra.mxu0 %v4304
      %5186 = vmatprep.subr.bf16.mxu0 0
      %5187 = vmatpush1.bf16.msra.mxu0 %v4305
      %5188 = vmatprep.subr.bf16.mxu0 0
      %5189 = vmatpush1.bf16.msra.mxu0 %v4306
      %5190 = vmatprep.subr.bf16.mxu0 0
      %5191 = vmatpush1.bf16.msra.mxu0 %v4307
      %5192 = vmatprep.subr.bf16.mxu0 0
      %5193 = vmatpush1.bf16.msra.mxu0 %v4308
      %5194 = vmatprep.subr.bf16.mxu0 0
      %5195 = vmatpush1.bf16.msra.mxu0 %v4309
      %5196 = vmatprep.subr.bf16.mxu0 0
      %5197 = vmatpush1.bf16.msra.mxu0 %v4310
      %5198 = vmatprep.subr.bf16.mxu0 0
      %5199 = vmatpush1.bf16.msra.mxu0 %v4311
      %5200 = vmatprep.mubr.bf16.mxu0 %v2518
      %5201 = vmatmul.mubr.bf16.gmra.mrb[0].mxu0 %v2517
      %v5202 = vpop.f32.mrb[0].mxu0
      %v5203 = vadd.f32 %v5163, %v5202
      %v5204 = vpop.f32.mrb[0].mxu0
      %v5205 = vpop.f32.mrb[0].mxu0
      %v5206 = vpop.f32.mrb[0].mxu0
      %5207 = vdwg.mxu0
      %v5208 = vtanh.pop %v5203
      %5209 = vst [vmem:[#allocation11] sm:$0x1] %v5208
    $region45: #{tpu_custom_call.1} parent=1 // pred_fallthru
      _
    // Predicated region
    $region46: #{tpu_custom_call.1} parent=1 // pred_check
      _
    $region47: #{tpu_custom_call.1} parent=1 // pred_check_branch
      %5211 = sbr.rel (0) target = $region49
    $region48: #{tpu_custom_call.1} parent=1 // pred_region
      %s5213 = ssub.s32 16, 16
      %5214 = vsyncadd [#allocation5], %s5213
      %s5216 = sshll.u32 [#allocation11], 4
      %s5217 = int_to_ptr.vmem [resolvable:$true] %s5216
      %5219 = dma.vmem_to_hbm [thread:$0]  %s5217, 16, %s5, [#allocation5]
    $region49: #{tpu_custom_call.1} parent=1 // pred_fallthru
      _
    // Predicated region
    $region50: #{tpu_custom_call.1} parent=1 // pred_check
      _
    $region51: #{tpu_custom_call.1} parent=1 // pred_check_branch
      %5221 = sbr.rel (0) target = $region53
    $region52: #{tpu_custom_call.1} parent=1 // pred_region
      %5222 = dma.done [#allocation5], 16
    $region53: #{tpu_custom_call.1} parent=1 // pred_fallthru
      _
    %5223 = vsyncpa [#allocation4], 1
    %5224 = vsyncpa [#allocation7], 1
    %5225 = vsyncpa [#allocation10], 1
    %5226 = vsyncpa [#allocation5], 1

</llo_original>
